<compile_context>
chip_gen: v5e
topology: v5e:2x2
jax: 0.10.0
libtpu: 0.0.40
codegen_flags: <defaults>
</compile_context>

<pallas_src>
import math

import jax
import jax.numpy as jnp
from jax.experimental import pallas as pl
from jax.experimental.pallas import tpu as pltpu

_LANES = 1024            # wide lane dim (multiple of 128)
_BLOCK_ROWS = 512        # 512 x 1024 x 4 B = 2 MiB per f32 block
_FAST_PATH_ELEMS = 8192  # below this, plain jnp beats a pallas_call launch


# ---------------------------------------------------------------- kernels ---

def _auglag_tt_kernel(scal_ref, obj_ref, con_ref, out_ref):
    """Both operands streamed as slabs. scal_ref (SMEM, f32[2]) = [alpha, rho/2]."""
    alpha = scal_ref[0]
    half_rho = scal_ref[1]
    obj = obj_ref[...].astype(jnp.float32)
    con = con_ref[...].astype(jnp.float32)
    # Horner: obj + con*(alpha + half_rho*con) == obj + alpha*con + rho*con^2/2
    out_ref[...] = (obj + con * (alpha + half_rho * con)).astype(out_ref.dtype)


def _auglag_scalar_obj_kernel(scal_ref, con_ref, out_ref):
    """Scalar objective.  scal_ref (SMEM, f32[3]) = [alpha, rho/2, objective]."""
    alpha = scal_ref[0]
    half_rho = scal_ref[1]
    obj = scal_ref[2]
    con = con_ref[...].astype(jnp.float32)
    out_ref[...] = (obj + con * (alpha + half_rho * con)).astype(out_ref.dtype)


def _auglag_scalar_con_kernel(scal_ref, obj_ref, out_ref):
    """Scalar constraint.  scal_ref (SMEM, f32[3]) = [alpha, rho/2, constraint]."""
    alpha = scal_ref[0]
    half_rho = scal_ref[1]
    con = scal_ref[2]
    penalty = con * (alpha + half_rho * con)          # scalar-unit arithmetic
    out_ref[...] = (obj_ref[...].astype(jnp.float32) + penalty).astype(out_ref.dtype)


# ---------------------------------------------------------------- wrapper ---

def _to_slab(x, n):
    """Flatten an n-element array into a lane-dense (rows, _LANES) slab."""
    flat = x.reshape(-1)
    rows = pl.cdiv(n, _LANES)
    padded = rows * _LANES
    if padded != n:                      # only the sub-lane remainder is padded
        flat = jnp.pad(flat, (0, padded - n))
    return flat.reshape(rows, _LANES), rows


def _run_slab_kernel(kernel, scal, slabs, rows, out_dtype):
    # Block rows: full extent for small inputs, else a multiple of 8/16/32.
    br = min(_BLOCK_ROWS, rows)
    grid = (pl.cdiv(rows, br),)          # partial last block: OOB writes masked
    slab_specs = [pl.BlockSpec((br, _LANES), lambda i: (i, 0)) for _ in slabs]
    return pl.pallas_call(
        kernel,
        out_shape=jax.ShapeDtypeStruct((rows, _LANES), out_dtype),
        grid=grid,
        in_specs=[pl.BlockSpec(memory_space=pltpu.SMEM)] + slab_specs,
        out_specs=pl.BlockSpec((br, _LANES), lambda i: (i, 0)),
        compiler_params=pltpu.CompilerParams(
            dimension_semantics=("parallel",),     # shard rows across TCs (v7x)
            vmem_limit_bytes=32 * 1024 * 1024,     # headroom; ~12 MiB actually used
        ),
    )(scal, *slabs)


def auglag_loss(objective: jax.Array,
                constraint: jax.Array,
                alpha: jax.Array,
                rho: jax.Array) -> jax.Array:
    """Augmented-Lagrangian loss, elementwise, matching the PyTorch module."""
    objective = jnp.asarray(objective)
    constraint = jnp.asarray(constraint)
    alpha = jnp.asarray(alpha, dtype=jnp.float32)
    rho = jnp.asarray(rho, dtype=jnp.float32)

    out_shape = jnp.broadcast_shapes(objective.shape, constraint.shape)
    out_dtype = jnp.result_type(objective.dtype, constraint.dtype, jnp.float32)
    n = math.prod(out_shape)

    # --- fast path: tiny inputs (the typical scalar/scalar call). ------------
    if n < _FAST_PATH_ELEMS:
        o = objective.astype(out_dtype)
        c = constraint.astype(out_dtype)
        a = alpha.astype(out_dtype)
        hr = (0.5 * rho).astype(out_dtype)
        return jnp.broadcast_to(o + c * (a + hr * c), out_shape)

    half_rho = 0.5 * rho
    obj_is_scalar = objective.size == 1
    con_is_scalar = constraint.size == 1

    if obj_is_scalar and not con_is_scalar:
        # Scalar objective via SMEM; constraint streamed in its native dtype.
        scal = jnp.stack([alpha, half_rho,
                          objective.reshape(()).astype(jnp.float32)])
        con_slab, rows = _to_slab(constraint, n)
        out = _run_slab_kernel(_auglag_scalar_obj_kernel, scal, [con_slab],
                               rows, out_dtype)
    elif con_is_scalar and not obj_is_scalar:
        scal = jnp.stack([alpha, half_rho,
                          constraint.reshape(()).astype(jnp.float32)])
        obj_slab, rows = _to_slab(objective, n)
        out = _run_slab_kernel(_auglag_scalar_con_kernel, scal, [obj_slab],
                               rows, out_dtype)
    else:
        # Both operands full size (broadcast only if the shapes truly differ).
        obj_full = objective if objective.shape == out_shape else \
            jnp.broadcast_to(objective, out_shape)
        con_full = constraint if constraint.shape == out_shape else \
            jnp.broadcast_to(constraint, out_shape)
        scal = jnp.stack([alpha, half_rho])
        obj_slab, rows = _to_slab(obj_full, n)
        con_slab, _ = _to_slab(con_full, n)
        out = _run_slab_kernel(_auglag_tt_kernel, scal, [obj_slab, con_slab],
                               rows, out_dtype)

    flat = out.reshape(-1)
    if flat.shape[0] != n:
        flat = flat[:n]
    return flat.reshape(out_shape)


class AugLagLossCalculator:
    """JAX mirror of the PyTorch module: holds alpha/rho f32 buffers."""

    def __init__(self, init_alpha: float, init_rho: float):
        self.init_alpha = init_alpha
        self.init_rho = init_rho
        self.alpha = jnp.asarray(init_alpha, dtype=jnp.float32)
        self.rho = jnp.asarray(init_rho, dtype=jnp.float32)

    def __call__(self, objective: jax.Array, constraint: jax.Array) -> jax.Array:
        return auglag_loss(objective, constraint, self.alpha, self.rho)


# ------------------------------------------------------------------- main ---

if __name__ == "__main__":
    key = jax.random.PRNGKey(0)
    k1, k2, k3, k4 = jax.random.split(key, 4)

    calc = AugLagLossCalculator(init_alpha=0.5, init_rho=2.0)

    def ref(o, c):
        return o + calc.alpha * c + calc.rho * c * c / 2

    # 1) Typical use: scalar objective / scalar constraint (fast path).
    obj_s = jax.random.normal(k1, (), dtype=jnp.float32)
    con_s = jax.random.normal(k2, (), dtype=jnp.float32)
    out_s = jax.block_until_ready(calc(obj_s, con_s))
    assert out_s.shape == ()
    assert jnp.allclose(out_s, ref(obj_s, con_s), atol=1e-6, rtol=1e-6)

    # 2) Small tensor case (fast path, elementwise semantics).
    obj_t = jax.random.normal(k1, (2, 4, 16, 16), dtype=jnp.float32)
    con_t = jax.random.normal(k2, (2, 4, 16, 16), dtype=jnp.float32)
    out_t = jax.block_until_ready(calc(obj_t, con_t))
    assert jnp.allclose(out_t, ref(obj_t, con_t), atol=1e-6, rtol=1e-6)

    # 3) Larger tensor/tensor -> Pallas slab kernel, 2-step parallel grid with
    #    a partial last block (640 rows of 1024 lanes, 512-row blocks).
    obj_l = jax.random.normal(k3, (8, 16, 64, 80), dtype=jnp.float32)
    con_l = jax.random.normal(k4, (8, 16, 64, 80), dtype=jnp.float32)
    out_l = jax.block_until_ready(calc(obj_l, con_l))
    assert jnp.allclose(out_l, ref(obj_l, con_l), atol=1e-5, rtol=1e-5)

    # 4) Scalar objective + tensor constraint -> SMEM-scalar kernel variant.
    out_m = jax.block_until_ready(calc(obj_s, con_l))
    assert jnp.allclose(out_m, ref(obj_s, con_l), atol=1e-5, rtol=1e-5)

    # 5) bf16 tensor objective + scalar constraint (native-dtype streaming,
    #    f32 accumulation inside the kernel, f32 output like PyTorch).
    obj_b = obj_l.astype(jnp.bfloat16)
    out_b = jax.block_until_ready(calc(obj_b, con_s))
    assert out_b.dtype == jnp.float32
    assert jnp.allclose(out_b, ref(obj_b.astype(jnp.float32), con_s),
                        atol=1e-5, rtol=1e-5)

    print("KERNEL_OK")
</pallas_src>

<mosaic_0001>
module attributes {stable_mosaic.version = 11 : i64} {
  func.func @_auglag_tt_kernel(%arg0: i32, %arg1: memref<2xf32, #tpu.memory_space<smem>>, %arg2: memref<512x1024xf32, #tpu.memory_space<vmem>>, %arg3: memref<512x1024xf32, #tpu.memory_space<vmem>>, %arg4: memref<512x1024xf32, #tpu.memory_space<vmem>>) attributes {dimension_semantics = [#tpu.dimension_semantics<parallel>], iteration_bounds = array<i64: 2>, scalar_prefetch = 0 : i64, scratch_operands = 0 : i64, tpu.core_type = #tpu.core_type<tc>, window_params = [{transform_indices = @transform_0, window_bounds = array<i64: 2>}, {transform_indices = @transform_1, window_bounds = array<i64: 512, 1024>}, {transform_indices = @transform_2, window_bounds = array<i64: 512, 1024>}, {transform_indices = @transform_3, window_bounds = array<i64: 512, 1024>}]} {
    %c0 = arith.constant 0 : index
    %0 = memref.load %arg1[%c0] : memref<2xf32, #tpu.memory_space<smem>>
    %c1 = arith.constant 1 : index
    %1 = memref.load %arg1[%c1] : memref<2xf32, #tpu.memory_space<smem>>
    %c0_0 = arith.constant 0 : index
    %c0_1 = arith.constant 0 : index
    %2 = vector.load %arg2[%c0_0, %c0_1] : memref<512x1024xf32, #tpu.memory_space<vmem>>, vector<512x1024xf32>
    %c0_2 = arith.constant 0 : index
    %c0_3 = arith.constant 0 : index
    %3 = vector.load %arg3[%c0_2, %c0_3] : memref<512x1024xf32, #tpu.memory_space<vmem>>, vector<512x1024xf32>
    %4 = vector.broadcast %1 : f32 to vector<512x1024xf32>
    %5 = arith.mulf %4, %3 : vector<512x1024xf32>
    %6 = vector.broadcast %0 : f32 to vector<512x1024xf32>
    %7 = arith.addf %6, %5 : vector<512x1024xf32>
    %8 = arith.mulf %3, %7 : vector<512x1024xf32>
    %9 = arith.addf %2, %8 : vector<512x1024xf32>
    %c0_4 = arith.constant 0 : index
    %c0_5 = arith.constant 0 : index
    %10 = vector.load %arg4[%c0_4, %c0_5] : memref<512x1024xf32, #tpu.memory_space<vmem>>, vector<512x1024xf32>
    tpu.vector_store %arg4[%c0_4, %c0_5], %9 {strides = array<i32>} : memref<512x1024xf32, #tpu.memory_space<vmem>>, vector<512x1024xf32>,
    return
  }
  func.func @transform_0(%arg0: i32) -> i32 {
    %c0_i32 = arith.constant 0 : i32
    %c0_i32_0 = arith.constant 0 : i32
    return %c0_i32 : i32
  }
  func.func @transform_1(%arg0: i32) -> (i32, i32) {
    %c0_i32 = arith.constant 0 : i32
    %c0_i32_0 = arith.constant 0 : i32
    return %arg0, %c0_i32 : i32, i32
  }
  func.func @transform_2(%arg0: i32) -> (i32, i32) {
    %c0_i32 = arith.constant 0 : i32
    %c0_i32_0 = arith.constant 0 : i32
    return %arg0, %c0_i32 : i32, i32
  }
  func.func @transform_3(%arg0: i32) -> (i32, i32) {
    %c0_i32 = arith.constant 0 : i32
    %c0_i32_0 = arith.constant 0 : i32
    return %arg0, %c0_i32 : i32, i32
  }
}

</mosaic_0001>

<llo_original>
// kernel: tpu_custom_call.1
$region0: #{tpu_custom_call.1}
  #allocation0 [shape = 'u32[]', space=smem, size = 0x4, offset = 0x4, fixed_abs, tag = 'smem constant byte address 0x4 - core index']
  #allocation1 [shape = 'u32[72,128]{1,0:T(1,128)}', space=vmem, size = 0x9000, scoped, tag = 'internal scratch']
  %s0 = inlined_call_operand.hbm [shape: f32[2], index: 0, kind: input, shape index: {}]
  %s1 = inlined_call_operand.hbm [shape: f32[640,1024], index: 1, kind: input, shape index: {}]
  %s2 = inlined_call_operand.hbm [shape: f32[640,1024], index: 2, kind: input, shape index: {}]
  %s3 = inlined_call_operand.hbm [shape: f32[640,1024], index: 3, kind: output, shape index: {}]
  %s4 = sld [smem:[#allocation0]]
  $region57: #{tpu_custom_call.1} parent=0
    _
  %s6 = ssub.s32 1, %s4
  %s7 = scalar_select 0, %s6, %s4
  $region1: #{tpu_custom_call.1} parent=0
    #allocation2 [shape = 'u8[512]{0}', space=smem, size = 0x200, scoped, tag = 'input window, operand 0, single buffered']
    #allocation3 [shape = 's32[2]{0}', space=sflag, size = 0x8, scoped, tag = 'scoped memory for tpu_custom_call.1']
    #allocation4 [shape = 's32[2]{0}', space=sflag, size = 0x8, scoped, tag = 'scoped memory for tpu_custom_call.1']
    #allocation5 [shape = 's32[2]{0}', space=sflag, size = 0x8, scoped, tag = 'scoped memory for tpu_custom_call.1']
    #allocation6 [shape = 'u8[4194304]{0}', space=vmem, size = 0x400000, scoped, tag = 'input window, operand 1']
    #allocation7 [shape = 'u8[4194304]{0}', space=vmem, size = 0x400000, scoped, tag = 'input window, operand 2']
    #allocation8 [shape = 's32[2]{0}', space=sflag, size = 0x8, scoped, tag = 'scoped memory for tpu_custom_call.1']
    #allocation9 [shape = 'u8[4194304]{0}', space=vmem, size = 0x400000, scoped, tag = 'output window, operand 0']
    %8 = vsyncpa [#allocation5], 0
    %9 = vsyncpa [#allocation3], 0
    %s10 = scalar_lea.sflag [#allocation3], 1
    %11 = vsyncpa %s10, 0
    %12 = vsyncpa [#allocation8], 0
    %s13 = scalar_lea.sflag [#allocation8], 1
    %14 = vsyncpa %s13, 0
    %15 = vsyncpa [#allocation4], 0
    %s16 = scalar_lea.sflag [#allocation4], 1
    %17 = vsyncpa %s16, 0
    loop: start=0, step=1, limit=4
    $region2: #{tpu_custom_call.1} parent=1 // loop_pre_header
      _
    $region3: #{tpu_custom_call.1} parent=1 // loop_header
      %s19 = sphi 0, %s23
      %p20 = scmp.ge.s32.totalorder %s19, 4
      %s27 = sphi 0, %s27
      %s29 = sphi 0, %s27
      %s30 = sphi 0, %s29
      %s44 = sphi 0, %s30
      %s50 = sphi 0, %s52
      %s53 = sphi 0, %s50
      %s54 = sphi 0, %s53
      %s70 = sphi 0, %s54
      %s76 = sphi 0, %s78
      %s79 = sphi 0, %s76
      %s80 = sphi 0, %s79
      %s96 = sphi 0, %s80
      %s102 = sphi 0, %s104
      %s105 = sphi 0, %s102
      %s106 = sphi 0, %s105
      %s122 = sphi 0, %s106
    $region4: #{tpu_custom_call.1} parent=1 // loop_header_branch
      %22 = sbr.rel (%p20) target = $region8
    $region5: #{tpu_custom_call.1} parent=1 // loop_body
      %s24 = ssub.s32 %s19, 1
      %s25 = ssub.s32 %s19, 2
      %s26 = sadd.s32 %s19, 1
      %s28 = sadd.s32 %s27, 1
      %p31 = scmp.eq.s32.totalorder %s19, 1
      %p32 = scmp.ne.s32.totalorder %s27, %s29
      %p33 = scmp.eq.s32.totalorder %s19, 0
      %p34 = por %p32, %p33
      %p35 = scmp.ne.s32.totalorder %s27, %s29
      %p36 = scmp.eq.s32.totalorder %s24, 1
      %p37 = por %p35, %p36
      %p38 = scmp.ne.s32.totalorder %s29, %s30
      %p39 = scmp.eq.s32.totalorder %s24, 0
      %p40 = por %p38, %p39
      %p41 = scmp.ne.s32.totalorder %s29, %s30
      %p42 = scmp.eq.s32.totalorder %s25, 1
      %p43 = por %p41, %p42
      %p45 = scmp.ne.s32.totalorder %s30, %s44
      %p46 = scmp.eq.s32.totalorder %s25, 0
      %p47 = por %p45, %p46
      %s48 = ssub.s32 %s19, %s26
      %p49 = scmp.eq.s32.totalorder %s48, 0
      %s51 = sadd.s32 %s50, 1
      %s52 = scalar_select %p49, %s50, %s51
      %p55 = pneg %p49
      %p56 = scmp.eq.s32.totalorder %s19, 1
      %p57 = por %p55, %p56
      %p58 = scmp.ne.s32.totalorder %s50, %s53
      %p59 = scmp.eq.s32.totalorder %s19, 0
      %p60 = por %p58, %p59
      %p61 = scmp.ne.s32.totalorder %s50, %s53
      %p62 = scmp.eq.s32.totalorder %s24, 1
      %p63 = por %p61, %p62
      %p64 = scmp.ne.s32.totalorder %s53, %s54
      %p65 = scmp.eq.s32.totalorder %s24, 0
      %p66 = por %p64, %p65
      %p67 = scmp.ne.s32.totalorder %s53, %s54
      %p68 = scmp.eq.s32.totalorder %s25, 1
      %p69 = por %p67, %p68
      %p71 = scmp.ne.s32.totalorder %s54, %s70
      %p72 = scmp.eq.s32.totalorder %s25, 0
      %p73 = por %p71, %p72
      %s74 = ssub.s32 %s19, %s26
      %p75 = scmp.eq.s32.totalorder %s74, 0
      %s77 = sadd.s32 %s76, 1
      %s78 = scalar_select %p75, %s76, %s77
      %p81 = pneg %p75
      %p82 = scmp.eq.s32.totalorder %s19, 1
      %p83 = por %p81, %p82
      %p84 = scmp.ne.s32.totalorder %s76, %s79
      %p85 = scmp.eq.s32.totalorder %s19, 0
      %p86 = por %p84, %p85
      %p87 = scmp.ne.s32.totalorder %s76, %s79
      %p88 = scmp.eq.s32.totalorder %s24, 1
      %p89 = por %p87, %p88
      %p90 = scmp.ne.s32.totalorder %s79, %s80
      %p91 = scmp.eq.s32.totalorder %s24, 0
      %p92 = por %p90, %p91
      %p93 = scmp.ne.s32.totalorder %s79, %s80
      %p94 = scmp.eq.s32.totalorder %s25, 1
      %p95 = por %p93, %p94
      %p97 = scmp.ne.s32.totalorder %s80, %s96
      %p98 = scmp.eq.s32.totalorder %s25, 0
      %p99 = por %p97, %p98
      %s100 = ssub.s32 %s19, %s26
      %p101 = scmp.eq.s32.totalorder %s100, 0
      %s103 = sadd.s32 %s102, 1
      %s104 = scalar_select %p101, %s102, %s103
      %p107 = pneg %p101
      %p108 = scmp.eq.s32.totalorder %s19, 1
      %p109 = por %p107, %p108
      %p110 = scmp.ne.s32.totalorder %s102, %s105
      %p111 = scmp.eq.s32.totalorder %s19, 0
      %p112 = por %p110, %p111
      %p113 = scmp.ne.s32.totalorder %s102, %s105
      %p114 = scmp.eq.s32.totalorder %s24, 1
      %p115 = por %p113, %p114
      %p116 = scmp.ne.s32.totalorder %s105, %s106
      %p117 = scmp.eq.s32.totalorder %s24, 0
      %p118 = por %p116, %p117
      %p119 = scmp.ne.s32.totalorder %s105, %s106
      %p120 = scmp.eq.s32.totalorder %s25, 1
      %p121 = por %p119, %p120
      %p123 = scmp.ne.s32.totalorder %s106, %s122
      %p124 = scmp.eq.s32.totalorder %s25, 0
      %p125 = por %p123, %p124
      %p126 = scmp.le.s32.totalorder 1, %s19
      %p127 = scmp.lt.s32.totalorder %s19, 3
      %p128 = pnand %p126, %p127
      %p129 = pneg %p128
      // Predicated region
      $region9: #{tpu_custom_call.1} parent=5 // pred_check
        _
      $region10: #{tpu_custom_call.1} parent=5 // pred_check_branch
        %131 = sbr.rel (%p128) target = $region12
      $region11: #{tpu_custom_call.1} parent=5 // pred_region
        %s132 = ssub.s32 %s19, 1
        // Predicated region
        $region13: #{tpu_custom_call.1} parent=11 // pred_check
          %p133 = pneg %p40
        $region14: #{tpu_custom_call.1} parent=11 // pred_check_branch
          %135 = sbr.rel (%p133) target = $region16
        $region15: #{tpu_custom_call.1} parent=11 // pred_region
          %137 = vsyncadd [#allocation5], 0
          %s139 = sshll.u32 %s0, 4
          %s140 = int_to_ptr.hbm [resolvable:$true] %s139
          %142 = dma.hbm_to_smem %s140, 16, [#allocation2], [#allocation5]
        $region16: #{tpu_custom_call.1} parent=11 // pred_fallthru
          _
      $region12: #{tpu_custom_call.1} parent=5 // pred_fallthru
        _
      %p143 = scmp.lt.s32.totalorder %s19, 2
      // Predicated region
      $region17: #{tpu_custom_call.1} parent=5 // pred_check
        %p144 = pneg %p143
      $region18: #{tpu_custom_call.1} parent=5 // pred_check_branch
        %146 = sbr.rel (%p144) target = $region20
      $region19: #{tpu_custom_call.1} parent=5 // pred_region
        // Predicated region
        $region21: #{tpu_custom_call.1} parent=19 // pred_check
          %p147 = pneg %p60
        $region22: #{tpu_custom_call.1} parent=19 // pred_check_branch
          %149 = sbr.rel (%p147) target = $region24
        $region23: #{tpu_custom_call.1} parent=19 // pred_region
          %s150 = sand.u32 %s50, 1
          %s151 = scalar_lea.sflag [#allocation3], %s150
          %s152 = sand.u32 %s50, 1
          %s153 = smul.addr %s152, 4096
          %s154 = scalar_lea.vmem [#allocation6], %s153
          %s155 = smul.u32 64, %s19
          %s156 = ssub.s32 80, %s155
          %p157 = scmp.lt.s32.totalorder %s156, 64
          %s158 = scalar_select %p157, %s156, 64
          %s159 = smul.u32 8, %s158
          %s160 = smul.u32 %s159, 8
          %s161 = ssub.s32 4096, %s160
          %s162 = sshll.u32 %s161, 4
          %163 = vsyncadd %s151, %s162
          %p164 = scmp.ne.s32.totalorder 0, %s160
          %s165 = smul.addr %s155, 8
          %s166 = smul.addr %s165, 8
          %s167 = scalar_lea.hbm %s1, %s166
          %s168 = smul.u32 64, %s158
          %s169 = sshll.u32 %s167, 4
          %s170 = int_to_ptr.hbm [resolvable:$true] %s169
          %s171 = sshll.u32 %s154, 4
          %s172 = int_to_ptr.vmem [resolvable:$true] %s171
          %s173 = sshll.u32 %s168, 4
          %177 = dma.hbm_to_vmem [thread:$0]  (%p164), %s170, %s173, %s172, %s151, 1024, 1024, 64
        $region24: #{tpu_custom_call.1} parent=19 // pred_fallthru
          _
        // Predicated region
        $region25: #{tpu_custom_call.1} parent=19 // pred_check
          %p178 = pneg %p86
        $region26: #{tpu_custom_call.1} parent=19 // pred_check_branch
          %180 = sbr.rel (%p178) target = $region28
        $region27: #{tpu_custom_call.1} parent=19 // pred_region
          %s181 = sand.u32 %s76, 1
          %s182 = scalar_lea.sflag [#allocation8], %s181
          %s183 = sand.u32 %s76, 1
          %s184 = smul.addr %s183, 4096
          %s185 = scalar_lea.vmem [#allocation7], %s184
          %s186 = smul.u32 64, %s19
          %s187 = ssub.s32 80, %s186
          %p188 = scmp.lt.s32.totalorder %s187, 64
          %s189 = scalar_select %p188, %s187, 64
          %s190 = smul.u32 8, %s189
          %s191 = smul.u32 %s190, 8
          %s192 = ssub.s32 4096, %s191
          %s193 = sshll.u32 %s192, 4
          %194 = vsyncadd %s182, %s193
          %p195 = scmp.ne.s32.totalorder 0, %s191
          %s196 = smul.addr %s186, 8
          %s197 = smul.addr %s196, 8
          %s198 = scalar_lea.hbm %s2, %s197
          %s199 = smul.u32 64, %s189
          %s200 = sshll.u32 %s198, 4
          %s201 = int_to_ptr.hbm [resolvable:$true] %s200
          %s202 = sshll.u32 %s185, 4
          %s203 = int_to_ptr.vmem [resolvable:$true] %s202
          %s204 = sshll.u32 %s199, 4
          %208 = dma.hbm_to_vmem [thread:$0]  (%p195), %s201, %s204, %s203, %s182, 1024, 1024, 64
        $region28: #{tpu_custom_call.1} parent=19 // pred_fallthru
          _
      $region20: #{tpu_custom_call.1} parent=5 // pred_fallthru
        _
      %p209 = scmp.le.s32.totalorder 1, %s19
      %p210 = scmp.lt.s32.totalorder %s19, 3
      %p211 = pnand %p209, %p210
      %p212 = pneg %p211
      // Predicated region
      $region29: #{tpu_custom_call.1} parent=5 // pred_check
        _
      $region30: #{tpu_custom_call.1} parent=5 // pred_check_branch
        %214 = sbr.rel (%p211) target = $region32
      $region31: #{tpu_custom_call.1} parent=5 // pred_region
        %s215 = ssub.s32 %s19, 1
        // Predicated region
        $region33: #{tpu_custom_call.1} parent=31 // pred_check
          %p216 = pneg %p40
        $region34: #{tpu_custom_call.1} parent=31 // pred_check_branch
          %218 = sbr.rel (%p216) target = $region36
        $region35: #{tpu_custom_call.1} parent=31 // pred_region
          %220 = dma.done [#allocation5], 16
        $region36: #{tpu_custom_call.1} parent=31 // pred_fallthru
          _
        %s221 = sand.u32 %s53, 1
        %s222 = scalar_lea.sflag [#allocation3], %s221
        %s223 = sand.u32 %s53, 1
        %s224 = smul.addr %s223, 4096
        %s225 = scalar_lea.vmem [#allocation6], %s224
        // Predicated region
        $region37: #{tpu_custom_call.1} parent=31 // pred_check
          %p226 = pneg %p66
        $region38: #{tpu_custom_call.1} parent=31 // pred_check_branch
          %228 = sbr.rel (%p226) target = $region40
        $region39: #{tpu_custom_call.1} parent=31 // pred_region
          %230 = dma.done %s222, 65536
        $region40: #{tpu_custom_call.1} parent=31 // pred_fallthru
          _
        %s231 = sand.u32 %s79, 1
        %s232 = scalar_lea.sflag [#allocation8], %s231
        %s233 = sand.u32 %s79, 1
        %s234 = smul.addr %s233, 4096
        %s235 = scalar_lea.vmem [#allocation7], %s234
        // Predicated region
        $region41: #{tpu_custom_call.1} parent=31 // pred_check
          %p236 = pneg %p92
        $region42: #{tpu_custom_call.1} parent=31 // pred_check_branch
          %238 = sbr.rel (%p236) target = $region44
        $region43: #{tpu_custom_call.1} parent=31 // pred_region
          %240 = dma.done %s232, 65536
        $region44: #{tpu_custom_call.1} parent=31 // pred_fallthru
          _
        %241 = sfence
        %p242 = pneg %p40
        %p243 = pneg %p37
        %s244 = sand.u32 %s53, 1
        %s245 = scalar_lea.sflag [#allocation3], %s244
        %s246 = sand.u32 %s53, 1
        %s247 = smul.addr %s246, 4096
        %s248 = scalar_lea.vmem [#allocation6], %s247
        %p249 = pneg %p66
        %p250 = pneg %p63
        %s251 = sand.u32 %s79, 1
        %s252 = scalar_lea.sflag [#allocation8], %s251
        %s253 = sand.u32 %s79, 1
        %s254 = smul.addr %s253, 4096
        %s255 = scalar_lea.vmem [#allocation7], %s254
        %p256 = pneg %p92
        %p257 = pneg %p89
        %p258 = pneg %p118
        %p259 = pneg %p115
        %s260 = sand.u32 %s105, 1
        %s261 = scalar_lea.sflag [#allocation4], %s260
        %s262 = sand.u32 %s105, 1
        %s263 = smul.addr %s262, 4096
        %s264 = scalar_lea.vmem [#allocation9], %s263
        %s265 = smul.u32 64, %s24
        %s266 = ssub.s32 80, %s265
        %p267 = scmp.lt.s32.totalorder %s266, 64
        %s268 = scalar_select %p267, %s266, 64
        %s269 = smul.u32 8, %s268
        %s270 = smul.u32 %s269, 8
        %s271 = smul.u32 64, %s24
        %s272 = ssub.s32 80, %s271
        %p273 = scmp.lt.s32.totalorder %s272, 64
        %s274 = scalar_select %p273, %s272, 64
        %s275 = smul.u32 8, %s274
        %s276 = smul.u32 %s275, 8
        %s277 = smul.u32 64, %s24
        %s278 = ssub.s32 80, %s277
        %p279 = scmp.lt.s32.totalorder %s278, 64
        %s280 = scalar_select %p279, %s278, 64
        %s281 = smul.u32 8, %s280
        %s282 = smul.u32 %s281, 8
        %s283 = sld [smem:[#allocation2]]
        %s284 = sld [smem:[#allocation2 + $0x1]]
        %v285 = vld [vmem:[%s225] sm:$0xff]
        %v286 = vld [vmem:[%s225 + $0x8] sm:$0xff]
        %v287 = vld [vmem:[%s225 + $0x10] sm:$0xff]
        %v288 = vld [vmem:[%s225 + $0x18] sm:$0xff]
        %v289 = vld [vmem:[%s225 + $0x20] sm:$0xff]
        %v290 = vld [vmem:[%s225 + $0x28] sm:$0xff]
        %v291 = vld [vmem:[%s225 + $0x30] sm:$0xff]
        %v292 = vld [vmem:[%s225 + $0x38] sm:$0xff]
        %v293 = vld [vmem:[%s225 + $0x40] sm:$0xff]
        %v294 = vld [vmem:[%s225 + $0x48] sm:$0xff]
        %v295 = vld [vmem:[%s225 + $0x50] sm:$0xff]
        %v296 = vld [vmem:[%s225 + $0x58] sm:$0xff]
        %v297 = vld [vmem:[%s225 + $0x60] sm:$0xff]
        %v298 = vld [vmem:[%s225 + $0x68] sm:$0xff]
        %v299 = vld [vmem:[%s225 + $0x70] sm:$0xff]
        %v300 = vld [vmem:[%s225 + $0x78] sm:$0xff]
        %v301 = vld [vmem:[%s225 + $0x80] sm:$0xff]
        %v302 = vld [vmem:[%s225 + $0x88] sm:$0xff]
        %v303 = vld [vmem:[%s225 + $0x90] sm:$0xff]
        %v304 = vld [vmem:[%s225 + $0x98] sm:$0xff]
        %v305 = vld [vmem:[%s225 + $0xa0] sm:$0xff]
        %v306 = vld [vmem:[%s225 + $0xa8] sm:$0xff]
        %v307 = vld [vmem:[%s225 + $0xb0] sm:$0xff]
        %v308 = vld [vmem:[%s225 + $0xb8] sm:$0xff]
        %v309 = vld [vmem:[%s225 + $0xc0] sm:$0xff]
        %v310 = vld [vmem:[%s225 + $0xc8] sm:$0xff]
        %v311 = vld [vmem:[%s225 + $0xd0] sm:$0xff]
        %v312 = vld [vmem:[%s225 + $0xd8] sm:$0xff]
        %v313 = vld [vmem:[%s225 + $0xe0] sm:$0xff]
        %v314 = vld [vmem:[%s225 + $0xe8] sm:$0xff]
        %v315 = vld [vmem:[%s225 + $0xf0] sm:$0xff]
        %v316 = vld [vmem:[%s225 + $0xf8] sm:$0xff]
        %v317 = vld [vmem:[%s225 + $0x100] sm:$0xff]
        %v318 = vld [vmem:[%s225 + $0x108] sm:$0xff]
        %v319 = vld [vmem:[%s225 + $0x110] sm:$0xff]
        %v320 = vld [vmem:[%s225 + $0x118] sm:$0xff]
        %v321 = vld [vmem:[%s225 + $0x120] sm:$0xff]
        %v322 = vld [vmem:[%s225 + $0x128] sm:$0xff]
        %v323 = vld [vmem:[%s225 + $0x130] sm:$0xff]
        %v324 = vld [vmem:[%s225 + $0x138] sm:$0xff]
        %v325 = vld [vmem:[%s225 + $0x140] sm:$0xff]
        %v326 = vld [vmem:[%s225 + $0x148] sm:$0xff]
        %v327 = vld [vmem:[%s225 + $0x150] sm:$0xff]
        %v328 = vld [vmem:[%s225 + $0x158] sm:$0xff]
        %v329 = vld [vmem:[%s225 + $0x160] sm:$0xff]
        %v330 = vld [vmem:[%s225 + $0x168] sm:$0xff]
        %v331 = vld [vmem:[%s225 + $0x170] sm:$0xff]
        %v332 = vld [vmem:[%s225 + $0x178] sm:$0xff]
        %v333 = vld [vmem:[%s225 + $0x180] sm:$0xff]
        %v334 = vld [vmem:[%s225 + $0x188] sm:$0xff]
        %v335 = vld [vmem:[%s225 + $0x190] sm:$0xff]
        %v336 = vld [vmem:[%s225 + $0x198] sm:$0xff]
        %v337 = vld [vmem:[%s225 + $0x1a0] sm:$0xff]
        %v338 = vld [vmem:[%s225 + $0x1a8] sm:$0xff]
        %v339 = vld [vmem:[%s225 + $0x1b0] sm:$0xff]
        %v340 = vld [vmem:[%s225 + $0x1b8] sm:$0xff]
        %v341 = vld [vmem:[%s225 + $0x1c0] sm:$0xff]
        %v342 = vld [vmem:[%s225 + $0x1c8] sm:$0xff]
        %v343 = vld [vmem:[%s225 + $0x1d0] sm:$0xff]
        %v344 = vld [vmem:[%s225 + $0x1d8] sm:$0xff]
        %v345 = vld [vmem:[%s225 + $0x1e0] sm:$0xff]
        %v346 = vld [vmem:[%s225 + $0x1e8] sm:$0xff]
        %v347 = vld [vmem:[%s225 + $0x1f0] sm:$0xff]
        %v348 = vld [vmem:[%s225 + $0x1f8] sm:$0xff]
        %v349 = vld [vmem:[%s225 + $0x200] sm:$0xff]
        %v350 = vld [vmem:[%s225 + $0x208] sm:$0xff]
        %v351 = vld [vmem:[%s225 + $0x210] sm:$0xff]
        %v352 = vld [vmem:[%s225 + $0x218] sm:$0xff]
        %v353 = vld [vmem:[%s225 + $0x220] sm:$0xff]
        %v354 = vld [vmem:[%s225 + $0x228] sm:$0xff]
        %v355 = vld [vmem:[%s225 + $0x230] sm:$0xff]
        %v356 = vld [vmem:[%s225 + $0x238] sm:$0xff]
        %v357 = vld [vmem:[%s225 + $0x240] sm:$0xff]
        %v358 = vld [vmem:[%s225 + $0x248] sm:$0xff]
        %v359 = vld [vmem:[%s225 + $0x250] sm:$0xff]
        %v360 = vld [vmem:[%s225 + $0x258] sm:$0xff]
        %v361 = vld [vmem:[%s225 + $0x260] sm:$0xff]
        %v362 = vld [vmem:[%s225 + $0x268] sm:$0xff]
        %v363 = vld [vmem:[%s225 + $0x270] sm:$0xff]
        %v364 = vld [vmem:[%s225 + $0x278] sm:$0xff]
        %v365 = vld [vmem:[%s225 + $0x280] sm:$0xff]
        %v366 = vld [vmem:[%s225 + $0x288] sm:$0xff]
        %v367 = vld [vmem:[%s225 + $0x290] sm:$0xff]
        %v368 = vld [vmem:[%s225 + $0x298] sm:$0xff]
        %v369 = vld [vmem:[%s225 + $0x2a0] sm:$0xff]
        %v370 = vld [vmem:[%s225 + $0x2a8] sm:$0xff]
        %v371 = vld [vmem:[%s225 + $0x2b0] sm:$0xff]
        %v372 = vld [vmem:[%s225 + $0x2b8] sm:$0xff]
        %v373 = vld [vmem:[%s225 + $0x2c0] sm:$0xff]
        %v374 = vld [vmem:[%s225 + $0x2c8] sm:$0xff]
        %v375 = vld [vmem:[%s225 + $0x2d0] sm:$0xff]
        %v376 = vld [vmem:[%s225 + $0x2d8] sm:$0xff]
        %v377 = vld [vmem:[%s225 + $0x2e0] sm:$0xff]
        %v378 = vld [vmem:[%s225 + $0x2e8] sm:$0xff]
        %v379 = vld [vmem:[%s225 + $0x2f0] sm:$0xff]
        %v380 = vld [vmem:[%s225 + $0x2f8] sm:$0xff]
        %v381 = vld [vmem:[%s225 + $0x300] sm:$0xff]
        %v382 = vld [vmem:[%s225 + $0x308] sm:$0xff]
        %v383 = vld [vmem:[%s225 + $0x310] sm:$0xff]
        %v384 = vld [vmem:[%s225 + $0x318] sm:$0xff]
        %v385 = vld [vmem:[%s225 + $0x320] sm:$0xff]
        %v386 = vld [vmem:[%s225 + $0x328] sm:$0xff]
        %v387 = vld [vmem:[%s225 + $0x330] sm:$0xff]
        %v388 = vld [vmem:[%s225 + $0x338] sm:$0xff]
        %v389 = vld [vmem:[%s225 + $0x340] sm:$0xff]
        %v390 = vld [vmem:[%s225 + $0x348] sm:$0xff]
        %v391 = vld [vmem:[%s225 + $0x350] sm:$0xff]
        %v392 = vld [vmem:[%s225 + $0x358] sm:$0xff]
        %v393 = vld [vmem:[%s225 + $0x360] sm:$0xff]
        %v394 = vld [vmem:[%s225 + $0x368] sm:$0xff]
        %v395 = vld [vmem:[%s225 + $0x370] sm:$0xff]
        %v396 = vld [vmem:[%s225 + $0x378] sm:$0xff]
        %v397 = vld [vmem:[%s225 + $0x380] sm:$0xff]
        %v398 = vld [vmem:[%s225 + $0x388] sm:$0xff]
        %v399 = vld [vmem:[%s225 + $0x390] sm:$0xff]
        %v400 = vld [vmem:[%s225 + $0x398] sm:$0xff]
        %v401 = vld [vmem:[%s225 + $0x3a0] sm:$0xff]
        %v402 = vld [vmem:[%s225 + $0x3a8] sm:$0xff]
        %v403 = vld [vmem:[%s225 + $0x3b0] sm:$0xff]
        %v404 = vld [vmem:[%s225 + $0x3b8] sm:$0xff]
        %v405 = vld [vmem:[%s225 + $0x3c0] sm:$0xff]
        %v406 = vld [vmem:[%s225 + $0x3c8] sm:$0xff]
        %v407 = vld [vmem:[%s225 + $0x3d0] sm:$0xff]
        %v408 = vld [vmem:[%s225 + $0x3d8] sm:$0xff]
        %v409 = vld [vmem:[%s225 + $0x3e0] sm:$0xff]
        %v410 = vld [vmem:[%s225 + $0x3e8] sm:$0xff]
        %v411 = vld [vmem:[%s225 + $0x3f0] sm:$0xff]
        %v412 = vld [vmem:[%s225 + $0x3f8] sm:$0xff]
        %v413 = vld [vmem:[%s225 + $0x400] sm:$0xff]
        %v414 = vld [vmem:[%s225 + $0x408] sm:$0xff]
        %v415 = vld [vmem:[%s225 + $0x410] sm:$0xff]
        %v416 = vld [vmem:[%s225 + $0x418] sm:$0xff]
        %v417 = vld [vmem:[%s225 + $0x420] sm:$0xff]
        %v418 = vld [vmem:[%s225 + $0x428] sm:$0xff]
        %v419 = vld [vmem:[%s225 + $0x430] sm:$0xff]
        %v420 = vld [vmem:[%s225 + $0x438] sm:$0xff]
        %v421 = vld [vmem:[%s225 + $0x440] sm:$0xff]
        %v422 = vld [vmem:[%s225 + $0x448] sm:$0xff]
        %v423 = vld [vmem:[%s225 + $0x450] sm:$0xff]
        %v424 = vld [vmem:[%s225 + $0x458] sm:$0xff]
        %v425 = vld [vmem:[%s225 + $0x460] sm:$0xff]
        %v426 = vld [vmem:[%s225 + $0x468] sm:$0xff]
        %v427 = vld [vmem:[%s225 + $0x470] sm:$0xff]
        %v428 = vld [vmem:[%s225 + $0x478] sm:$0xff]
        %v429 = vld [vmem:[%s225 + $0x480] sm:$0xff]
        %v430 = vld [vmem:[%s225 + $0x488] sm:$0xff]
        %v431 = vld [vmem:[%s225 + $0x490] sm:$0xff]
        %v432 = vld [vmem:[%s225 + $0x498] sm:$0xff]
        %v433 = vld [vmem:[%s225 + $0x4a0] sm:$0xff]
        %v434 = vld [vmem:[%s225 + $0x4a8] sm:$0xff]
        %v435 = vld [vmem:[%s225 + $0x4b0] sm:$0xff]
        %v436 = vld [vmem:[%s225 + $0x4b8] sm:$0xff]
        %v437 = vld [vmem:[%s225 + $0x4c0] sm:$0xff]
        %v438 = vld [vmem:[%s225 + $0x4c8] sm:$0xff]
        %v439 = vld [vmem:[%s225 + $0x4d0] sm:$0xff]
        %v440 = vld [vmem:[%s225 + $0x4d8] sm:$0xff]
        %v441 = vld [vmem:[%s225 + $0x4e0] sm:$0xff]
        %v442 = vld [vmem:[%s225 + $0x4e8] sm:$0xff]
        %v443 = vld [vmem:[%s225 + $0x4f0] sm:$0xff]
        %v444 = vld [vmem:[%s225 + $0x4f8] sm:$0xff]
        %v445 = vld [vmem:[%s225 + $0x500] sm:$0xff]
        %v446 = vld [vmem:[%s225 + $0x508] sm:$0xff]
        %v447 = vld [vmem:[%s225 + $0x510] sm:$0xff]
        %v448 = vld [vmem:[%s225 + $0x518] sm:$0xff]
        %v449 = vld [vmem:[%s225 + $0x520] sm:$0xff]
        %v450 = vld [vmem:[%s225 + $0x528] sm:$0xff]
        %v451 = vld [vmem:[%s225 + $0x530] sm:$0xff]
        %v452 = vld [vmem:[%s225 + $0x538] sm:$0xff]
        %v453 = vld [vmem:[%s225 + $0x540] sm:$0xff]
        %v454 = vld [vmem:[%s225 + $0x548] sm:$0xff]
        %v455 = vld [vmem:[%s225 + $0x550] sm:$0xff]
        %v456 = vld [vmem:[%s225 + $0x558] sm:$0xff]
        %v457 = vld [vmem:[%s225 + $0x560] sm:$0xff]
        %v458 = vld [vmem:[%s225 + $0x568] sm:$0xff]
        %v459 = vld [vmem:[%s225 + $0x570] sm:$0xff]
        %v460 = vld [vmem:[%s225 + $0x578] sm:$0xff]
        %v461 = vld [vmem:[%s225 + $0x580] sm:$0xff]
        %v462 = vld [vmem:[%s225 + $0x588] sm:$0xff]
        %v463 = vld [vmem:[%s225 + $0x590] sm:$0xff]
        %v464 = vld [vmem:[%s225 + $0x598] sm:$0xff]
        %v465 = vld [vmem:[%s225 + $0x5a0] sm:$0xff]
        %v466 = vld [vmem:[%s225 + $0x5a8] sm:$0xff]
        %v467 = vld [vmem:[%s225 + $0x5b0] sm:$0xff]
        %v468 = vld [vmem:[%s225 + $0x5b8] sm:$0xff]
        %v469 = vld [vmem:[%s225 + $0x5c0] sm:$0xff]
        %v470 = vld [vmem:[%s225 + $0x5c8] sm:$0xff]
        %v471 = vld [vmem:[%s225 + $0x5d0] sm:$0xff]
        %v472 = vld [vmem:[%s225 + $0x5d8] sm:$0xff]
        %v473 = vld [vmem:[%s225 + $0x5e0] sm:$0xff]
        %v474 = vld [vmem:[%s225 + $0x5e8] sm:$0xff]
        %v475 = vld [vmem:[%s225 + $0x5f0] sm:$0xff]
        %v476 = vld [vmem:[%s225 + $0x5f8] sm:$0xff]
        %v477 = vld [vmem:[%s225 + $0x600] sm:$0xff]
        %v478 = vld [vmem:[%s225 + $0x608] sm:$0xff]
        %v479 = vld [vmem:[%s225 + $0x610] sm:$0xff]
        %v480 = vld [vmem:[%s225 + $0x618] sm:$0xff]
        %v481 = vld [vmem:[%s225 + $0x620] sm:$0xff]
        %v482 = vld [vmem:[%s225 + $0x628] sm:$0xff]
        %v483 = vld [vmem:[%s225 + $0x630] sm:$0xff]
        %v484 = vld [vmem:[%s225 + $0x638] sm:$0xff]
        %v485 = vld [vmem:[%s225 + $0x640] sm:$0xff]
        %v486 = vld [vmem:[%s225 + $0x648] sm:$0xff]
        %v487 = vld [vmem:[%s225 + $0x650] sm:$0xff]
        %v488 = vld [vmem:[%s225 + $0x658] sm:$0xff]
        %v489 = vld [vmem:[%s225 + $0x660] sm:$0xff]
        %v490 = vld [vmem:[%s225 + $0x668] sm:$0xff]
        %v491 = vld [vmem:[%s225 + $0x670] sm:$0xff]
        %v492 = vld [vmem:[%s225 + $0x678] sm:$0xff]
        %v493 = vld [vmem:[%s225 + $0x680] sm:$0xff]
        %v494 = vld [vmem:[%s225 + $0x688] sm:$0xff]
        %v495 = vld [vmem:[%s225 + $0x690] sm:$0xff]
        %v496 = vld [vmem:[%s225 + $0x698] sm:$0xff]
        %v497 = vld [vmem:[%s225 + $0x6a0] sm:$0xff]
        %v498 = vld [vmem:[%s225 + $0x6a8] sm:$0xff]
        %v499 = vld [vmem:[%s225 + $0x6b0] sm:$0xff]
        %v500 = vld [vmem:[%s225 + $0x6b8] sm:$0xff]
        %v501 = vld [vmem:[%s225 + $0x6c0] sm:$0xff]
        %v502 = vld [vmem:[%s225 + $0x6c8] sm:$0xff]
        %v503 = vld [vmem:[%s225 + $0x6d0] sm:$0xff]
        %v504 = vld [vmem:[%s225 + $0x6d8] sm:$0xff]
        %v505 = vld [vmem:[%s225 + $0x6e0] sm:$0xff]
        %v506 = vld [vmem:[%s225 + $0x6e8] sm:$0xff]
        %v507 = vld [vmem:[%s225 + $0x6f0] sm:$0xff]
        %v508 = vld [vmem:[%s225 + $0x6f8] sm:$0xff]
        %v509 = vld [vmem:[%s225 + $0x700] sm:$0xff]
        %v510 = vld [vmem:[%s225 + $0x708] sm:$0xff]
        %v511 = vld [vmem:[%s225 + $0x710] sm:$0xff]
        %v512 = vld [vmem:[%s225 + $0x718] sm:$0xff]
        %v513 = vld [vmem:[%s225 + $0x720] sm:$0xff]
        %v514 = vld [vmem:[%s225 + $0x728] sm:$0xff]
        %v515 = vld [vmem:[%s225 + $0x730] sm:$0xff]
        %v516 = vld [vmem:[%s225 + $0x738] sm:$0xff]
        %v517 = vld [vmem:[%s225 + $0x740] sm:$0xff]
        %v518 = vld [vmem:[%s225 + $0x748] sm:$0xff]
        %v519 = vld [vmem:[%s225 + $0x750] sm:$0xff]
        %v520 = vld [vmem:[%s225 + $0x758] sm:$0xff]
        %v521 = vld [vmem:[%s225 + $0x760] sm:$0xff]
        %v522 = vld [vmem:[%s225 + $0x768] sm:$0xff]
        %v523 = vld [vmem:[%s225 + $0x770] sm:$0xff]
        %v524 = vld [vmem:[%s225 + $0x778] sm:$0xff]
        %v525 = vld [vmem:[%s225 + $0x780] sm:$0xff]
        %v526 = vld [vmem:[%s225 + $0x788] sm:$0xff]
        %v527 = vld [vmem:[%s225 + $0x790] sm:$0xff]
        %v528 = vld [vmem:[%s225 + $0x798] sm:$0xff]
        %v529 = vld [vmem:[%s225 + $0x7a0] sm:$0xff]
        %v530 = vld [vmem:[%s225 + $0x7a8] sm:$0xff]
        %v531 = vld [vmem:[%s225 + $0x7b0] sm:$0xff]
        %v532 = vld [vmem:[%s225 + $0x7b8] sm:$0xff]
        %v533 = vld [vmem:[%s225 + $0x7c0] sm:$0xff]
        %v534 = vld [vmem:[%s225 + $0x7c8] sm:$0xff]
        %v535 = vld [vmem:[%s225 + $0x7d0] sm:$0xff]
        %v536 = vld [vmem:[%s225 + $0x7d8] sm:$0xff]
        %v537 = vld [vmem:[%s225 + $0x7e0] sm:$0xff]
        %v538 = vld [vmem:[%s225 + $0x7e8] sm:$0xff]
        %v539 = vld [vmem:[%s225 + $0x7f0] sm:$0xff]
        %v540 = vld [vmem:[%s225 + $0x7f8] sm:$0xff]
        %v541 = vld [vmem:[%s225 + $0x800] sm:$0xff]
        %v542 = vld [vmem:[%s225 + $0x808] sm:$0xff]
        %v543 = vld [vmem:[%s225 + $0x810] sm:$0xff]
        %v544 = vld [vmem:[%s225 + $0x818] sm:$0xff]
        %v545 = vld [vmem:[%s225 + $0x820] sm:$0xff]
        %v546 = vld [vmem:[%s225 + $0x828] sm:$0xff]
        %v547 = vld [vmem:[%s225 + $0x830] sm:$0xff]
        %v548 = vld [vmem:[%s225 + $0x838] sm:$0xff]
        %v549 = vld [vmem:[%s225 + $0x840] sm:$0xff]
        %v550 = vld [vmem:[%s225 + $0x848] sm:$0xff]
        %v551 = vld [vmem:[%s225 + $0x850] sm:$0xff]
        %v552 = vld [vmem:[%s225 + $0x858] sm:$0xff]
        %v553 = vld [vmem:[%s225 + $0x860] sm:$0xff]
        %v554 = vld [vmem:[%s225 + $0x868] sm:$0xff]
        %v555 = vld [vmem:[%s225 + $0x870] sm:$0xff]
        %v556 = vld [vmem:[%s225 + $0x878] sm:$0xff]
        %v557 = vld [vmem:[%s225 + $0x880] sm:$0xff]
        %v558 = vld [vmem:[%s225 + $0x888] sm:$0xff]
        %v559 = vld [vmem:[%s225 + $0x890] sm:$0xff]
        %v560 = vld [vmem:[%s225 + $0x898] sm:$0xff]
        %v561 = vld [vmem:[%s225 + $0x8a0] sm:$0xff]
        %v562 = vld [vmem:[%s225 + $0x8a8] sm:$0xff]
        %v563 = vld [vmem:[%s225 + $0x8b0] sm:$0xff]
        %v564 = vld [vmem:[%s225 + $0x8b8] sm:$0xff]
        %v565 = vld [vmem:[%s225 + $0x8c0] sm:$0xff]
        %v566 = vld [vmem:[%s225 + $0x8c8] sm:$0xff]
        %v567 = vld [vmem:[%s225 + $0x8d0] sm:$0xff]
        %v568 = vld [vmem:[%s225 + $0x8d8] sm:$0xff]
        %v569 = vld [vmem:[%s225 + $0x8e0] sm:$0xff]
        %v570 = vld [vmem:[%s225 + $0x8e8] sm:$0xff]
        %v571 = vld [vmem:[%s225 + $0x8f0] sm:$0xff]
        %v572 = vld [vmem:[%s225 + $0x8f8] sm:$0xff]
        %v573 = vld [vmem:[%s225 + $0x900] sm:$0xff]
        %v574 = vld [vmem:[%s225 + $0x908] sm:$0xff]
        %v575 = vld [vmem:[%s225 + $0x910] sm:$0xff]
        %v576 = vld [vmem:[%s225 + $0x918] sm:$0xff]
        %v577 = vld [vmem:[%s225 + $0x920] sm:$0xff]
        %v578 = vld [vmem:[%s225 + $0x928] sm:$0xff]
        %v579 = vld [vmem:[%s225 + $0x930] sm:$0xff]
        %v580 = vld [vmem:[%s225 + $0x938] sm:$0xff]
        %v581 = vld [vmem:[%s225 + $0x940] sm:$0xff]
        %v582 = vld [vmem:[%s225 + $0x948] sm:$0xff]
        %v583 = vld [vmem:[%s225 + $0x950] sm:$0xff]
        %v584 = vld [vmem:[%s225 + $0x958] sm:$0xff]
        %v585 = vld [vmem:[%s225 + $0x960] sm:$0xff]
        %v586 = vld [vmem:[%s225 + $0x968] sm:$0xff]
        %v587 = vld [vmem:[%s225 + $0x970] sm:$0xff]
        %v588 = vld [vmem:[%s225 + $0x978] sm:$0xff]
        %v589 = vld [vmem:[%s225 + $0x980] sm:$0xff]
        %v590 = vld [vmem:[%s225 + $0x988] sm:$0xff]
        %v591 = vld [vmem:[%s225 + $0x990] sm:$0xff]
        %v592 = vld [vmem:[%s225 + $0x998] sm:$0xff]
        %v593 = vld [vmem:[%s225 + $0x9a0] sm:$0xff]
        %v594 = vld [vmem:[%s225 + $0x9a8] sm:$0xff]
        %v595 = vld [vmem:[%s225 + $0x9b0] sm:$0xff]
        %v596 = vld [vmem:[%s225 + $0x9b8] sm:$0xff]
        %v597 = vld [vmem:[%s225 + $0x9c0] sm:$0xff]
        %v598 = vld [vmem:[%s225 + $0x9c8] sm:$0xff]
        %v599 = vld [vmem:[%s225 + $0x9d0] sm:$0xff]
        %v600 = vld [vmem:[%s225 + $0x9d8] sm:$0xff]
        %v601 = vld [vmem:[%s225 + $0x9e0] sm:$0xff]
        %v602 = vld [vmem:[%s225 + $0x9e8] sm:$0xff]
        %v603 = vld [vmem:[%s225 + $0x9f0] sm:$0xff]
        %v604 = vld [vmem:[%s225 + $0x9f8] sm:$0xff]
        %v605 = vld [vmem:[%s225 + $0xa00] sm:$0xff]
        %v606 = vld [vmem:[%s225 + $0xa08] sm:$0xff]
        %v607 = vld [vmem:[%s225 + $0xa10] sm:$0xff]
        %v608 = vld [vmem:[%s225 + $0xa18] sm:$0xff]
        %v609 = vld [vmem:[%s225 + $0xa20] sm:$0xff]
        %v610 = vld [vmem:[%s225 + $0xa28] sm:$0xff]
        %v611 = vld [vmem:[%s225 + $0xa30] sm:$0xff]
        %v612 = vld [vmem:[%s225 + $0xa38] sm:$0xff]
        %v613 = vld [vmem:[%s225 + $0xa40] sm:$0xff]
        %v614 = vld [vmem:[%s225 + $0xa48] sm:$0xff]
        %v615 = vld [vmem:[%s225 + $0xa50] sm:$0xff]
        %v616 = vld [vmem:[%s225 + $0xa58] sm:$0xff]
        %v617 = vld [vmem:[%s225 + $0xa60] sm:$0xff]
        %v618 = vld [vmem:[%s225 + $0xa68] sm:$0xff]
        %v619 = vld [vmem:[%s225 + $0xa70] sm:$0xff]
        %v620 = vld [vmem:[%s225 + $0xa78] sm:$0xff]
        %v621 = vld [vmem:[%s225 + $0xa80] sm:$0xff]
        %v622 = vld [vmem:[%s225 + $0xa88] sm:$0xff]
        %v623 = vld [vmem:[%s225 + $0xa90] sm:$0xff]
        %v624 = vld [vmem:[%s225 + $0xa98] sm:$0xff]
        %v625 = vld [vmem:[%s225 + $0xaa0] sm:$0xff]
        %v626 = vld [vmem:[%s225 + $0xaa8] sm:$0xff]
        %v627 = vld [vmem:[%s225 + $0xab0] sm:$0xff]
        %v628 = vld [vmem:[%s225 + $0xab8] sm:$0xff]
        %v629 = vld [vmem:[%s225 + $0xac0] sm:$0xff]
        %v630 = vld [vmem:[%s225 + $0xac8] sm:$0xff]
        %v631 = vld [vmem:[%s225 + $0xad0] sm:$0xff]
        %v632 = vld [vmem:[%s225 + $0xad8] sm:$0xff]
        %v633 = vld [vmem:[%s225 + $0xae0] sm:$0xff]
        %v634 = vld [vmem:[%s225 + $0xae8] sm:$0xff]
        %v635 = vld [vmem:[%s225 + $0xaf0] sm:$0xff]
        %v636 = vld [vmem:[%s225 + $0xaf8] sm:$0xff]
        %v637 = vld [vmem:[%s225 + $0xb00] sm:$0xff]
        %v638 = vld [vmem:[%s225 + $0xb08] sm:$0xff]
        %v639 = vld [vmem:[%s225 + $0xb10] sm:$0xff]
        %v640 = vld [vmem:[%s225 + $0xb18] sm:$0xff]
        %v641 = vld [vmem:[%s225 + $0xb20] sm:$0xff]
        %v642 = vld [vmem:[%s225 + $0xb28] sm:$0xff]
        %v643 = vld [vmem:[%s225 + $0xb30] sm:$0xff]
        %v644 = vld [vmem:[%s225 + $0xb38] sm:$0xff]
        %v645 = vld [vmem:[%s225 + $0xb40] sm:$0xff]
        %v646 = vld [vmem:[%s225 + $0xb48] sm:$0xff]
        %v647 = vld [vmem:[%s225 + $0xb50] sm:$0xff]
        %v648 = vld [vmem:[%s225 + $0xb58] sm:$0xff]
        %v649 = vld [vmem:[%s225 + $0xb60] sm:$0xff]
        %v650 = vld [vmem:[%s225 + $0xb68] sm:$0xff]
        %v651 = vld [vmem:[%s225 + $0xb70] sm:$0xff]
        %v652 = vld [vmem:[%s225 + $0xb78] sm:$0xff]
        %v653 = vld [vmem:[%s225 + $0xb80] sm:$0xff]
        %v654 = vld [vmem:[%s225 + $0xb88] sm:$0xff]
        %v655 = vld [vmem:[%s225 + $0xb90] sm:$0xff]
        %v656 = vld [vmem:[%s225 + $0xb98] sm:$0xff]
        %v657 = vld [vmem:[%s225 + $0xba0] sm:$0xff]
        %v658 = vld [vmem:[%s225 + $0xba8] sm:$0xff]
        %v659 = vld [vmem:[%s225 + $0xbb0] sm:$0xff]
        %v660 = vld [vmem:[%s225 + $0xbb8] sm:$0xff]
        %v661 = vld [vmem:[%s225 + $0xbc0] sm:$0xff]
        %v662 = vld [vmem:[%s225 + $0xbc8] sm:$0xff]
        %v663 = vld [vmem:[%s225 + $0xbd0] sm:$0xff]
        %v664 = vld [vmem:[%s225 + $0xbd8] sm:$0xff]
        %v665 = vld [vmem:[%s225 + $0xbe0] sm:$0xff]
        %v666 = vld [vmem:[%s225 + $0xbe8] sm:$0xff]
        %v667 = vld [vmem:[%s225 + $0xbf0] sm:$0xff]
        %v668 = vld [vmem:[%s225 + $0xbf8] sm:$0xff]
        %v669 = vld [vmem:[%s225 + $0xc00] sm:$0xff]
        %v670 = vld [vmem:[%s225 + $0xc08] sm:$0xff]
        %v671 = vld [vmem:[%s225 + $0xc10] sm:$0xff]
        %v672 = vld [vmem:[%s225 + $0xc18] sm:$0xff]
        %v673 = vld [vmem:[%s225 + $0xc20] sm:$0xff]
        %v674 = vld [vmem:[%s225 + $0xc28] sm:$0xff]
        %v675 = vld [vmem:[%s225 + $0xc30] sm:$0xff]
        %v676 = vld [vmem:[%s225 + $0xc38] sm:$0xff]
        %v677 = vld [vmem:[%s225 + $0xc40] sm:$0xff]
        %v678 = vld [vmem:[%s225 + $0xc48] sm:$0xff]
        %v679 = vld [vmem:[%s225 + $0xc50] sm:$0xff]
        %v680 = vld [vmem:[%s225 + $0xc58] sm:$0xff]
        %v681 = vld [vmem:[%s225 + $0xc60] sm:$0xff]
        %v682 = vld [vmem:[%s225 + $0xc68] sm:$0xff]
        %v683 = vld [vmem:[%s225 + $0xc70] sm:$0xff]
        %v684 = vld [vmem:[%s225 + $0xc78] sm:$0xff]
        %v685 = vld [vmem:[%s225 + $0xc80] sm:$0xff]
        %v686 = vld [vmem:[%s225 + $0xc88] sm:$0xff]
        %v687 = vld [vmem:[%s225 + $0xc90] sm:$0xff]
        %v688 = vld [vmem:[%s225 + $0xc98] sm:$0xff]
        %v689 = vld [vmem:[%s225 + $0xca0] sm:$0xff]
        %v690 = vld [vmem:[%s225 + $0xca8] sm:$0xff]
        %v691 = vld [vmem:[%s225 + $0xcb0] sm:$0xff]
        %v692 = vld [vmem:[%s225 + $0xcb8] sm:$0xff]
        %v693 = vld [vmem:[%s225 + $0xcc0] sm:$0xff]
        %v694 = vld [vmem:[%s225 + $0xcc8] sm:$0xff]
        %v695 = vld [vmem:[%s225 + $0xcd0] sm:$0xff]
        %v696 = vld [vmem:[%s225 + $0xcd8] sm:$0xff]
        %v697 = vld [vmem:[%s225 + $0xce0] sm:$0xff]
        %v698 = vld [vmem:[%s225 + $0xce8] sm:$0xff]
        %v699 = vld [vmem:[%s225 + $0xcf0] sm:$0xff]
        %v700 = vld [vmem:[%s225 + $0xcf8] sm:$0xff]
        %v701 = vld [vmem:[%s225 + $0xd00] sm:$0xff]
        %v702 = vld [vmem:[%s225 + $0xd08] sm:$0xff]
        %v703 = vld [vmem:[%s225 + $0xd10] sm:$0xff]
        %v704 = vld [vmem:[%s225 + $0xd18] sm:$0xff]
        %v705 = vld [vmem:[%s225 + $0xd20] sm:$0xff]
        %v706 = vld [vmem:[%s225 + $0xd28] sm:$0xff]
        %v707 = vld [vmem:[%s225 + $0xd30] sm:$0xff]
        %v708 = vld [vmem:[%s225 + $0xd38] sm:$0xff]
        %v709 = vld [vmem:[%s225 + $0xd40] sm:$0xff]
        %v710 = vld [vmem:[%s225 + $0xd48] sm:$0xff]
        %v711 = vld [vmem:[%s225 + $0xd50] sm:$0xff]
        %v712 = vld [vmem:[%s225 + $0xd58] sm:$0xff]
        %v713 = vld [vmem:[%s225 + $0xd60] sm:$0xff]
        %v714 = vld [vmem:[%s225 + $0xd68] sm:$0xff]
        %v715 = vld [vmem:[%s225 + $0xd70] sm:$0xff]
        %v716 = vld [vmem:[%s225 + $0xd78] sm:$0xff]
        %v717 = vld [vmem:[%s225 + $0xd80] sm:$0xff]
        %v718 = vld [vmem:[%s225 + $0xd88] sm:$0xff]
        %v719 = vld [vmem:[%s225 + $0xd90] sm:$0xff]
        %v720 = vld [vmem:[%s225 + $0xd98] sm:$0xff]
        %v721 = vld [vmem:[%s225 + $0xda0] sm:$0xff]
        %v722 = vld [vmem:[%s225 + $0xda8] sm:$0xff]
        %v723 = vld [vmem:[%s225 + $0xdb0] sm:$0xff]
        %v724 = vld [vmem:[%s225 + $0xdb8] sm:$0xff]
        %v725 = vld [vmem:[%s225 + $0xdc0] sm:$0xff]
        %v726 = vld [vmem:[%s225 + $0xdc8] sm:$0xff]
        %v727 = vld [vmem:[%s225 + $0xdd0] sm:$0xff]
        %v728 = vld [vmem:[%s225 + $0xdd8] sm:$0xff]
        %v729 = vld [vmem:[%s225 + $0xde0] sm:$0xff]
        %v730 = vld [vmem:[%s225 + $0xde8] sm:$0xff]
        %v731 = vld [vmem:[%s225 + $0xdf0] sm:$0xff]
        %v732 = vld [vmem:[%s225 + $0xdf8] sm:$0xff]
        %v733 = vld [vmem:[%s225 + $0xe00] sm:$0xff]
        %v734 = vld [vmem:[%s225 + $0xe08] sm:$0xff]
        %v735 = vld [vmem:[%s225 + $0xe10] sm:$0xff]
        %v736 = vld [vmem:[%s225 + $0xe18] sm:$0xff]
        %v737 = vld [vmem:[%s225 + $0xe20] sm:$0xff]
        %v738 = vld [vmem:[%s225 + $0xe28] sm:$0xff]
        %v739 = vld [vmem:[%s225 + $0xe30] sm:$0xff]
        %v740 = vld [vmem:[%s225 + $0xe38] sm:$0xff]
        %v741 = vld [vmem:[%s225 + $0xe40] sm:$0xff]
        %v742 = vld [vmem:[%s225 + $0xe48] sm:$0xff]
        %v743 = vld [vmem:[%s225 + $0xe50] sm:$0xff]
        %v744 = vld [vmem:[%s225 + $0xe58] sm:$0xff]
        %v745 = vld [vmem:[%s225 + $0xe60] sm:$0xff]
        %v746 = vld [vmem:[%s225 + $0xe68] sm:$0xff]
        %v747 = vld [vmem:[%s225 + $0xe70] sm:$0xff]
        %v748 = vld [vmem:[%s225 + $0xe78] sm:$0xff]
        %v749 = vld [vmem:[%s225 + $0xe80] sm:$0xff]
        %v750 = vld [vmem:[%s225 + $0xe88] sm:$0xff]
        %v751 = vld [vmem:[%s225 + $0xe90] sm:$0xff]
        %v752 = vld [vmem:[%s225 + $0xe98] sm:$0xff]
        %v753 = vld [vmem:[%s225 + $0xea0] sm:$0xff]
        %v754 = vld [vmem:[%s225 + $0xea8] sm:$0xff]
        %v755 = vld [vmem:[%s225 + $0xeb0] sm:$0xff]
        %v756 = vld [vmem:[%s225 + $0xeb8] sm:$0xff]
        %v757 = vld [vmem:[%s225 + $0xec0] sm:$0xff]
        %v758 = vld [vmem:[%s225 + $0xec8] sm:$0xff]
        %v759 = vld [vmem:[%s225 + $0xed0] sm:$0xff]
        %v760 = vld [vmem:[%s225 + $0xed8] sm:$0xff]
        %v761 = vld [vmem:[%s225 + $0xee0] sm:$0xff]
        %v762 = vld [vmem:[%s225 + $0xee8] sm:$0xff]
        %v763 = vld [vmem:[%s225 + $0xef0] sm:$0xff]
        %v764 = vld [vmem:[%s225 + $0xef8] sm:$0xff]
        %v765 = vld [vmem:[%s225 + $0xf00] sm:$0xff]
        %v766 = vld [vmem:[%s225 + $0xf08] sm:$0xff]
        %v767 = vld [vmem:[%s225 + $0xf10] sm:$0xff]
        %v768 = vld [vmem:[%s225 + $0xf18] sm:$0xff]
        %v769 = vld [vmem:[%s225 + $0xf20] sm:$0xff]
        %v770 = vld [vmem:[%s225 + $0xf28] sm:$0xff]
        %v771 = vld [vmem:[%s225 + $0xf30] sm:$0xff]
        %v772 = vld [vmem:[%s225 + $0xf38] sm:$0xff]
        %v773 = vld [vmem:[%s225 + $0xf40] sm:$0xff]
        %v774 = vld [vmem:[%s225 + $0xf48] sm:$0xff]
        %v775 = vld [vmem:[%s225 + $0xf50] sm:$0xff]
        %v776 = vld [vmem:[%s225 + $0xf58] sm:$0xff]
        %v777 = vld [vmem:[%s225 + $0xf60] sm:$0xff]
        %v778 = vld [vmem:[%s225 + $0xf68] sm:$0xff]
        %v779 = vld [vmem:[%s225 + $0xf70] sm:$0xff]
        %v780 = vld [vmem:[%s225 + $0xf78] sm:$0xff]
        %v781 = vld [vmem:[%s225 + $0xf80] sm:$0xff]
        %v782 = vld [vmem:[%s225 + $0xf88] sm:$0xff]
        %v783 = vld [vmem:[%s225 + $0xf90] sm:$0xff]
        %v784 = vld [vmem:[%s225 + $0xf98] sm:$0xff]
        %v785 = vld [vmem:[%s225 + $0xfa0] sm:$0xff]
        %v786 = vld [vmem:[%s225 + $0xfa8] sm:$0xff]
        %v787 = vld [vmem:[%s225 + $0xfb0] sm:$0xff]
        %v788 = vld [vmem:[%s225 + $0xfb8] sm:$0xff]
        %v789 = vld [vmem:[%s225 + $0xfc0] sm:$0xff]
        %v790 = vld [vmem:[%s225 + $0xfc8] sm:$0xff]
        %v791 = vld [vmem:[%s225 + $0xfd0] sm:$0xff]
        %v792 = vld [vmem:[%s225 + $0xfd8] sm:$0xff]
        %v793 = vld [vmem:[%s225 + $0xfe0] sm:$0xff]
        %v794 = vld [vmem:[%s225 + $0xfe8] sm:$0xff]
        %v795 = vld [vmem:[%s225 + $0xff0] sm:$0xff]
        %v796 = vld [vmem:[%s225 + $0xff8] sm:$0xff]
        %v797 = vld [vmem:[%s235] sm:$0xff]
        %v798 = vld [vmem:[%s235 + $0x8] sm:$0xff]
        %v799 = vld [vmem:[%s235 + $0x10] sm:$0xff]
        %v800 = vld [vmem:[%s235 + $0x18] sm:$0xff]
        %v801 = vld [vmem:[%s235 + $0x20] sm:$0xff]
        %v802 = vld [vmem:[%s235 + $0x28] sm:$0xff]
        %v803 = vld [vmem:[%s235 + $0x30] sm:$0xff]
        %v804 = vld [vmem:[%s235 + $0x38] sm:$0xff]
        %v805 = vld [vmem:[%s235 + $0x40] sm:$0xff]
        %v806 = vld [vmem:[%s235 + $0x48] sm:$0xff]
        %v807 = vld [vmem:[%s235 + $0x50] sm:$0xff]
        %v808 = vld [vmem:[%s235 + $0x58] sm:$0xff]
        %v809 = vld [vmem:[%s235 + $0x60] sm:$0xff]
        %v810 = vld [vmem:[%s235 + $0x68] sm:$0xff]
        %v811 = vld [vmem:[%s235 + $0x70] sm:$0xff]
        %v812 = vld [vmem:[%s235 + $0x78] sm:$0xff]
        %v813 = vld [vmem:[%s235 + $0x80] sm:$0xff]
        %v814 = vld [vmem:[%s235 + $0x88] sm:$0xff]
        %v815 = vld [vmem:[%s235 + $0x90] sm:$0xff]
        %v816 = vld [vmem:[%s235 + $0x98] sm:$0xff]
        %v817 = vld [vmem:[%s235 + $0xa0] sm:$0xff]
        %v818 = vld [vmem:[%s235 + $0xa8] sm:$0xff]
        %v819 = vld [vmem:[%s235 + $0xb0] sm:$0xff]
        %v820 = vld [vmem:[%s235 + $0xb8] sm:$0xff]
        %v821 = vld [vmem:[%s235 + $0xc0] sm:$0xff]
        %v822 = vld [vmem:[%s235 + $0xc8] sm:$0xff]
        %v823 = vld [vmem:[%s235 + $0xd0] sm:$0xff]
        %v824 = vld [vmem:[%s235 + $0xd8] sm:$0xff]
        %v825 = vld [vmem:[%s235 + $0xe0] sm:$0xff]
        %v826 = vld [vmem:[%s235 + $0xe8] sm:$0xff]
        %v827 = vld [vmem:[%s235 + $0xf0] sm:$0xff]
        %v828 = vld [vmem:[%s235 + $0xf8] sm:$0xff]
        %v829 = vld [vmem:[%s235 + $0x100] sm:$0xff]
        %v830 = vld [vmem:[%s235 + $0x108] sm:$0xff]
        %v831 = vld [vmem:[%s235 + $0x110] sm:$0xff]
        %v832 = vld [vmem:[%s235 + $0x118] sm:$0xff]
        %v833 = vld [vmem:[%s235 + $0x120] sm:$0xff]
        %v834 = vld [vmem:[%s235 + $0x128] sm:$0xff]
        %v835 = vld [vmem:[%s235 + $0x130] sm:$0xff]
        %v836 = vld [vmem:[%s235 + $0x138] sm:$0xff]
        %v837 = vld [vmem:[%s235 + $0x140] sm:$0xff]
        %v838 = vld [vmem:[%s235 + $0x148] sm:$0xff]
        %v839 = vld [vmem:[%s235 + $0x150] sm:$0xff]
        %v840 = vld [vmem:[%s235 + $0x158] sm:$0xff]
        %v841 = vld [vmem:[%s235 + $0x160] sm:$0xff]
        %v842 = vld [vmem:[%s235 + $0x168] sm:$0xff]
        %v843 = vld [vmem:[%s235 + $0x170] sm:$0xff]
        %v844 = vld [vmem:[%s235 + $0x178] sm:$0xff]
        %v845 = vld [vmem:[%s235 + $0x180] sm:$0xff]
        %v846 = vld [vmem:[%s235 + $0x188] sm:$0xff]
        %v847 = vld [vmem:[%s235 + $0x190] sm:$0xff]
        %v848 = vld [vmem:[%s235 + $0x198] sm:$0xff]
        %v849 = vld [vmem:[%s235 + $0x1a0] sm:$0xff]
        %v850 = vld [vmem:[%s235 + $0x1a8] sm:$0xff]
        %v851 = vld [vmem:[%s235 + $0x1b0] sm:$0xff]
        %v852 = vld [vmem:[%s235 + $0x1b8] sm:$0xff]
        %v853 = vld [vmem:[%s235 + $0x1c0] sm:$0xff]
        %v854 = vld [vmem:[%s235 + $0x1c8] sm:$0xff]
        %v855 = vld [vmem:[%s235 + $0x1d0] sm:$0xff]
        %v856 = vld [vmem:[%s235 + $0x1d8] sm:$0xff]
        %v857 = vld [vmem:[%s235 + $0x1e0] sm:$0xff]
        %v858 = vld [vmem:[%s235 + $0x1e8] sm:$0xff]
        %v859 = vld [vmem:[%s235 + $0x1f0] sm:$0xff]
        %v860 = vld [vmem:[%s235 + $0x1f8] sm:$0xff]
        %v861 = vld [vmem:[%s235 + $0x200] sm:$0xff]
        %v862 = vld [vmem:[%s235 + $0x208] sm:$0xff]
        %v863 = vld [vmem:[%s235 + $0x210] sm:$0xff]
        %v864 = vld [vmem:[%s235 + $0x218] sm:$0xff]
        %v865 = vld [vmem:[%s235 + $0x220] sm:$0xff]
        %v866 = vld [vmem:[%s235 + $0x228] sm:$0xff]
        %v867 = vld [vmem:[%s235 + $0x230] sm:$0xff]
        %v868 = vld [vmem:[%s235 + $0x238] sm:$0xff]
        %v869 = vld [vmem:[%s235 + $0x240] sm:$0xff]
        %v870 = vld [vmem:[%s235 + $0x248] sm:$0xff]
        %v871 = vld [vmem:[%s235 + $0x250] sm:$0xff]
        %v872 = vld [vmem:[%s235 + $0x258] sm:$0xff]
        %v873 = vld [vmem:[%s235 + $0x260] sm:$0xff]
        %v874 = vld [vmem:[%s235 + $0x268] sm:$0xff]
        %v875 = vld [vmem:[%s235 + $0x270] sm:$0xff]
        %v876 = vld [vmem:[%s235 + $0x278] sm:$0xff]
        %v877 = vld [vmem:[%s235 + $0x280] sm:$0xff]
        %v878 = vld [vmem:[%s235 + $0x288] sm:$0xff]
        %v879 = vld [vmem:[%s235 + $0x290] sm:$0xff]
        %v880 = vld [vmem:[%s235 + $0x298] sm:$0xff]
        %v881 = vld [vmem:[%s235 + $0x2a0] sm:$0xff]
        %v882 = vld [vmem:[%s235 + $0x2a8] sm:$0xff]
        %v883 = vld [vmem:[%s235 + $0x2b0] sm:$0xff]
        %v884 = vld [vmem:[%s235 + $0x2b8] sm:$0xff]
        %v885 = vld [vmem:[%s235 + $0x2c0] sm:$0xff]
        %v886 = vld [vmem:[%s235 + $0x2c8] sm:$0xff]
        %v887 = vld [vmem:[%s235 + $0x2d0] sm:$0xff]
        %v888 = vld [vmem:[%s235 + $0x2d8] sm:$0xff]
        %v889 = vld [vmem:[%s235 + $0x2e0] sm:$0xff]
        %v890 = vld [vmem:[%s235 + $0x2e8] sm:$0xff]
        %v891 = vld [vmem:[%s235 + $0x2f0] sm:$0xff]
        %v892 = vld [vmem:[%s235 + $0x2f8] sm:$0xff]
        %v893 = vld [vmem:[%s235 + $0x300] sm:$0xff]
        %v894 = vld [vmem:[%s235 + $0x308] sm:$0xff]
        %v895 = vld [vmem:[%s235 + $0x310] sm:$0xff]
        %v896 = vld [vmem:[%s235 + $0x318] sm:$0xff]
        %v897 = vld [vmem:[%s235 + $0x320] sm:$0xff]
        %v898 = vld [vmem:[%s235 + $0x328] sm:$0xff]
        %v899 = vld [vmem:[%s235 + $0x330] sm:$0xff]
        %v900 = vld [vmem:[%s235 + $0x338] sm:$0xff]
        %v901 = vld [vmem:[%s235 + $0x340] sm:$0xff]
        %v902 = vld [vmem:[%s235 + $0x348] sm:$0xff]
        %v903 = vld [vmem:[%s235 + $0x350] sm:$0xff]
        %v904 = vld [vmem:[%s235 + $0x358] sm:$0xff]
        %v905 = vld [vmem:[%s235 + $0x360] sm:$0xff]
        %v906 = vld [vmem:[%s235 + $0x368] sm:$0xff]
        %v907 = vld [vmem:[%s235 + $0x370] sm:$0xff]
        %v908 = vld [vmem:[%s235 + $0x378] sm:$0xff]
        %v909 = vld [vmem:[%s235 + $0x380] sm:$0xff]
        %v910 = vld [vmem:[%s235 + $0x388] sm:$0xff]
        %v911 = vld [vmem:[%s235 + $0x390] sm:$0xff]
        %v912 = vld [vmem:[%s235 + $0x398] sm:$0xff]
        %v913 = vld [vmem:[%s235 + $0x3a0] sm:$0xff]
        %v914 = vld [vmem:[%s235 + $0x3a8] sm:$0xff]
        %v915 = vld [vmem:[%s235 + $0x3b0] sm:$0xff]
        %v916 = vld [vmem:[%s235 + $0x3b8] sm:$0xff]
        %v917 = vld [vmem:[%s235 + $0x3c0] sm:$0xff]
        %v918 = vld [vmem:[%s235 + $0x3c8] sm:$0xff]
        %v919 = vld [vmem:[%s235 + $0x3d0] sm:$0xff]
        %v920 = vld [vmem:[%s235 + $0x3d8] sm:$0xff]
        %v921 = vld [vmem:[%s235 + $0x3e0] sm:$0xff]
        %v922 = vld [vmem:[%s235 + $0x3e8] sm:$0xff]
        %v923 = vld [vmem:[%s235 + $0x3f0] sm:$0xff]
        %v924 = vld [vmem:[%s235 + $0x3f8] sm:$0xff]
        %v925 = vld [vmem:[%s235 + $0x400] sm:$0xff]
        %v926 = vld [vmem:[%s235 + $0x408] sm:$0xff]
        %v927 = vld [vmem:[%s235 + $0x410] sm:$0xff]
        %v928 = vld [vmem:[%s235 + $0x418] sm:$0xff]
        %v929 = vld [vmem:[%s235 + $0x420] sm:$0xff]
        %v930 = vld [vmem:[%s235 + $0x428] sm:$0xff]
        %v931 = vld [vmem:[%s235 + $0x430] sm:$0xff]
        %v932 = vld [vmem:[%s235 + $0x438] sm:$0xff]
        %v933 = vld [vmem:[%s235 + $0x440] sm:$0xff]
        %v934 = vld [vmem:[%s235 + $0x448] sm:$0xff]
        %v935 = vld [vmem:[%s235 + $0x450] sm:$0xff]
        %v936 = vld [vmem:[%s235 + $0x458] sm:$0xff]
        %v937 = vld [vmem:[%s235 + $0x460] sm:$0xff]
        %v938 = vld [vmem:[%s235 + $0x468] sm:$0xff]
        %v939 = vld [vmem:[%s235 + $0x470] sm:$0xff]
        %v940 = vld [vmem:[%s235 + $0x478] sm:$0xff]
        %v941 = vld [vmem:[%s235 + $0x480] sm:$0xff]
        %v942 = vld [vmem:[%s235 + $0x488] sm:$0xff]
        %v943 = vld [vmem:[%s235 + $0x490] sm:$0xff]
        %v944 = vld [vmem:[%s235 + $0x498] sm:$0xff]
        %v945 = vld [vmem:[%s235 + $0x4a0] sm:$0xff]
        %v946 = vld [vmem:[%s235 + $0x4a8] sm:$0xff]
        %v947 = vld [vmem:[%s235 + $0x4b0] sm:$0xff]
        %v948 = vld [vmem:[%s235 + $0x4b8] sm:$0xff]
        %v949 = vld [vmem:[%s235 + $0x4c0] sm:$0xff]
        %v950 = vld [vmem:[%s235 + $0x4c8] sm:$0xff]
        %v951 = vld [vmem:[%s235 + $0x4d0] sm:$0xff]
        %v952 = vld [vmem:[%s235 + $0x4d8] sm:$0xff]
        %v953 = vld [vmem:[%s235 + $0x4e0] sm:$0xff]
        %v954 = vld [vmem:[%s235 + $0x4e8] sm:$0xff]
        %v955 = vld [vmem:[%s235 + $0x4f0] sm:$0xff]
        %v956 = vld [vmem:[%s235 + $0x4f8] sm:$0xff]
        %v957 = vld [vmem:[%s235 + $0x500] sm:$0xff]
        %v958 = vld [vmem:[%s235 + $0x508] sm:$0xff]
        %v959 = vld [vmem:[%s235 + $0x510] sm:$0xff]
        %v960 = vld [vmem:[%s235 + $0x518] sm:$0xff]
        %v961 = vld [vmem:[%s235 + $0x520] sm:$0xff]
        %v962 = vld [vmem:[%s235 + $0x528] sm:$0xff]
        %v963 = vld [vmem:[%s235 + $0x530] sm:$0xff]
        %v964 = vld [vmem:[%s235 + $0x538] sm:$0xff]
        %v965 = vld [vmem:[%s235 + $0x540] sm:$0xff]
        %v966 = vld [vmem:[%s235 + $0x548] sm:$0xff]
        %v967 = vld [vmem:[%s235 + $0x550] sm:$0xff]
        %v968 = vld [vmem:[%s235 + $0x558] sm:$0xff]
        %v969 = vld [vmem:[%s235 + $0x560] sm:$0xff]
        %v970 = vld [vmem:[%s235 + $0x568] sm:$0xff]
        %v971 = vld [vmem:[%s235 + $0x570] sm:$0xff]
        %v972 = vld [vmem:[%s235 + $0x578] sm:$0xff]
        %v973 = vld [vmem:[%s235 + $0x580] sm:$0xff]
        %v974 = vld [vmem:[%s235 + $0x588] sm:$0xff]
        %v975 = vld [vmem:[%s235 + $0x590] sm:$0xff]
        %v976 = vld [vmem:[%s235 + $0x598] sm:$0xff]
        %v977 = vld [vmem:[%s235 + $0x5a0] sm:$0xff]
        %v978 = vld [vmem:[%s235 + $0x5a8] sm:$0xff]
        %v979 = vld [vmem:[%s235 + $0x5b0] sm:$0xff]
        %v980 = vld [vmem:[%s235 + $0x5b8] sm:$0xff]
        %v981 = vld [vmem:[%s235 + $0x5c0] sm:$0xff]
        %v982 = vld [vmem:[%s235 + $0x5c8] sm:$0xff]
        %v983 = vld [vmem:[%s235 + $0x5d0] sm:$0xff]
        %v984 = vld [vmem:[%s235 + $0x5d8] sm:$0xff]
        %v985 = vld [vmem:[%s235 + $0x5e0] sm:$0xff]
        %v986 = vld [vmem:[%s235 + $0x5e8] sm:$0xff]
        %v987 = vld [vmem:[%s235 + $0x5f0] sm:$0xff]
        %v988 = vld [vmem:[%s235 + $0x5f8] sm:$0xff]
        %v989 = vld [vmem:[%s235 + $0x600] sm:$0xff]
        %v990 = vld [vmem:[%s235 + $0x608] sm:$0xff]
        %v991 = vld [vmem:[%s235 + $0x610] sm:$0xff]
        %v992 = vld [vmem:[%s235 + $0x618] sm:$0xff]
        %v993 = vld [vmem:[%s235 + $0x620] sm:$0xff]
        %v994 = vld [vmem:[%s235 + $0x628] sm:$0xff]
        %v995 = vld [vmem:[%s235 + $0x630] sm:$0xff]
        %v996 = vld [vmem:[%s235 + $0x638] sm:$0xff]
        %v997 = vld [vmem:[%s235 + $0x640] sm:$0xff]
        %v998 = vld [vmem:[%s235 + $0x648] sm:$0xff]
        %v999 = vld [vmem:[%s235 + $0x650] sm:$0xff]
        %v1000 = vld [vmem:[%s235 + $0x658] sm:$0xff]
        %v1001 = vld [vmem:[%s235 + $0x660] sm:$0xff]
        %v1002 = vld [vmem:[%s235 + $0x668] sm:$0xff]
        %v1003 = vld [vmem:[%s235 + $0x670] sm:$0xff]
        %v1004 = vld [vmem:[%s235 + $0x678] sm:$0xff]
        %v1005 = vld [vmem:[%s235 + $0x680] sm:$0xff]
        %v1006 = vld [vmem:[%s235 + $0x688] sm:$0xff]
        %v1007 = vld [vmem:[%s235 + $0x690] sm:$0xff]
        %v1008 = vld [vmem:[%s235 + $0x698] sm:$0xff]
        %v1009 = vld [vmem:[%s235 + $0x6a0] sm:$0xff]
        %v1010 = vld [vmem:[%s235 + $0x6a8] sm:$0xff]
        %v1011 = vld [vmem:[%s235 + $0x6b0] sm:$0xff]
        %v1012 = vld [vmem:[%s235 + $0x6b8] sm:$0xff]
        %v1013 = vld [vmem:[%s235 + $0x6c0] sm:$0xff]
        %v1014 = vld [vmem:[%s235 + $0x6c8] sm:$0xff]
        %v1015 = vld [vmem:[%s235 + $0x6d0] sm:$0xff]
        %v1016 = vld [vmem:[%s235 + $0x6d8] sm:$0xff]
        %v1017 = vld [vmem:[%s235 + $0x6e0] sm:$0xff]
        %v1018 = vld [vmem:[%s235 + $0x6e8] sm:$0xff]
        %v1019 = vld [vmem:[%s235 + $0x6f0] sm:$0xff]
        %v1020 = vld [vmem:[%s235 + $0x6f8] sm:$0xff]
        %v1021 = vld [vmem:[%s235 + $0x700] sm:$0xff]
        %v1022 = vld [vmem:[%s235 + $0x708] sm:$0xff]
        %v1023 = vld [vmem:[%s235 + $0x710] sm:$0xff]
        %v1024 = vld [vmem:[%s235 + $0x718] sm:$0xff]
        %v1025 = vld [vmem:[%s235 + $0x720] sm:$0xff]
        %v1026 = vld [vmem:[%s235 + $0x728] sm:$0xff]
        %v1027 = vld [vmem:[%s235 + $0x730] sm:$0xff]
        %v1028 = vld [vmem:[%s235 + $0x738] sm:$0xff]
        %v1029 = vld [vmem:[%s235 + $0x740] sm:$0xff]
        %v1030 = vld [vmem:[%s235 + $0x748] sm:$0xff]
        %v1031 = vld [vmem:[%s235 + $0x750] sm:$0xff]
        %v1032 = vld [vmem:[%s235 + $0x758] sm:$0xff]
        %v1033 = vld [vmem:[%s235 + $0x760] sm:$0xff]
        %v1034 = vld [vmem:[%s235 + $0x768] sm:$0xff]
        %v1035 = vld [vmem:[%s235 + $0x770] sm:$0xff]
        %v1036 = vld [vmem:[%s235 + $0x778] sm:$0xff]
        %v1037 = vld [vmem:[%s235 + $0x780] sm:$0xff]
        %v1038 = vld [vmem:[%s235 + $0x788] sm:$0xff]
        %v1039 = vld [vmem:[%s235 + $0x790] sm:$0xff]
        %v1040 = vld [vmem:[%s235 + $0x798] sm:$0xff]
        %v1041 = vld [vmem:[%s235 + $0x7a0] sm:$0xff]
        %v1042 = vld [vmem:[%s235 + $0x7a8] sm:$0xff]
        %v1043 = vld [vmem:[%s235 + $0x7b0] sm:$0xff]
        %v1044 = vld [vmem:[%s235 + $0x7b8] sm:$0xff]
        %v1045 = vld [vmem:[%s235 + $0x7c0] sm:$0xff]
        %v1046 = vld [vmem:[%s235 + $0x7c8] sm:$0xff]
        %v1047 = vld [vmem:[%s235 + $0x7d0] sm:$0xff]
        %v1048 = vld [vmem:[%s235 + $0x7d8] sm:$0xff]
        %v1049 = vld [vmem:[%s235 + $0x7e0] sm:$0xff]
        %v1050 = vld [vmem:[%s235 + $0x7e8] sm:$0xff]
        %v1051 = vld [vmem:[%s235 + $0x7f0] sm:$0xff]
        %v1052 = vld [vmem:[%s235 + $0x7f8] sm:$0xff]
        %v1053 = vld [vmem:[%s235 + $0x800] sm:$0xff]
        %v1054 = vld [vmem:[%s235 + $0x808] sm:$0xff]
        %v1055 = vld [vmem:[%s235 + $0x810] sm:$0xff]
        %v1056 = vld [vmem:[%s235 + $0x818] sm:$0xff]
        %v1057 = vld [vmem:[%s235 + $0x820] sm:$0xff]
        %v1058 = vld [vmem:[%s235 + $0x828] sm:$0xff]
        %v1059 = vld [vmem:[%s235 + $0x830] sm:$0xff]
        %v1060 = vld [vmem:[%s235 + $0x838] sm:$0xff]
        %v1061 = vld [vmem:[%s235 + $0x840] sm:$0xff]
        %v1062 = vld [vmem:[%s235 + $0x848] sm:$0xff]
        %v1063 = vld [vmem:[%s235 + $0x850] sm:$0xff]
        %v1064 = vld [vmem:[%s235 + $0x858] sm:$0xff]
        %v1065 = vld [vmem:[%s235 + $0x860] sm:$0xff]
        %v1066 = vld [vmem:[%s235 + $0x868] sm:$0xff]
        %v1067 = vld [vmem:[%s235 + $0x870] sm:$0xff]
        %v1068 = vld [vmem:[%s235 + $0x878] sm:$0xff]
        %v1069 = vld [vmem:[%s235 + $0x880] sm:$0xff]
        %v1070 = vld [vmem:[%s235 + $0x888] sm:$0xff]
        %v1071 = vld [vmem:[%s235 + $0x890] sm:$0xff]
        %v1072 = vld [vmem:[%s235 + $0x898] sm:$0xff]
        %v1073 = vld [vmem:[%s235 + $0x8a0] sm:$0xff]
        %v1074 = vld [vmem:[%s235 + $0x8a8] sm:$0xff]
        %v1075 = vld [vmem:[%s235 + $0x8b0] sm:$0xff]
        %v1076 = vld [vmem:[%s235 + $0x8b8] sm:$0xff]
        %v1077 = vld [vmem:[%s235 + $0x8c0] sm:$0xff]
        %v1078 = vld [vmem:[%s235 + $0x8c8] sm:$0xff]
        %v1079 = vld [vmem:[%s235 + $0x8d0] sm:$0xff]
        %v1080 = vld [vmem:[%s235 + $0x8d8] sm:$0xff]
        %v1081 = vld [vmem:[%s235 + $0x8e0] sm:$0xff]
        %v1082 = vld [vmem:[%s235 + $0x8e8] sm:$0xff]
        %v1083 = vld [vmem:[%s235 + $0x8f0] sm:$0xff]
        %v1084 = vld [vmem:[%s235 + $0x8f8] sm:$0xff]
        %v1085 = vld [vmem:[%s235 + $0x900] sm:$0xff]
        %v1086 = vld [vmem:[%s235 + $0x908] sm:$0xff]
        %v1087 = vld [vmem:[%s235 + $0x910] sm:$0xff]
        %v1088 = vld [vmem:[%s235 + $0x918] sm:$0xff]
        %v1089 = vld [vmem:[%s235 + $0x920] sm:$0xff]
        %v1090 = vld [vmem:[%s235 + $0x928] sm:$0xff]
        %v1091 = vld [vmem:[%s235 + $0x930] sm:$0xff]
        %v1092 = vld [vmem:[%s235 + $0x938] sm:$0xff]
        %v1093 = vld [vmem:[%s235 + $0x940] sm:$0xff]
        %v1094 = vld [vmem:[%s235 + $0x948] sm:$0xff]
        %v1095 = vld [vmem:[%s235 + $0x950] sm:$0xff]
        %v1096 = vld [vmem:[%s235 + $0x958] sm:$0xff]
        %v1097 = vld [vmem:[%s235 + $0x960] sm:$0xff]
        %v1098 = vld [vmem:[%s235 + $0x968] sm:$0xff]
        %v1099 = vld [vmem:[%s235 + $0x970] sm:$0xff]
        %v1100 = vld [vmem:[%s235 + $0x978] sm:$0xff]
        %v1101 = vld [vmem:[%s235 + $0x980] sm:$0xff]
        %v1102 = vld [vmem:[%s235 + $0x988] sm:$0xff]
        %v1103 = vld [vmem:[%s235 + $0x990] sm:$0xff]
        %v1104 = vld [vmem:[%s235 + $0x998] sm:$0xff]
        %v1105 = vld [vmem:[%s235 + $0x9a0] sm:$0xff]
        %v1106 = vld [vmem:[%s235 + $0x9a8] sm:$0xff]
        %v1107 = vld [vmem:[%s235 + $0x9b0] sm:$0xff]
        %v1108 = vld [vmem:[%s235 + $0x9b8] sm:$0xff]
        %v1109 = vld [vmem:[%s235 + $0x9c0] sm:$0xff]
        %v1110 = vld [vmem:[%s235 + $0x9c8] sm:$0xff]
        %v1111 = vld [vmem:[%s235 + $0x9d0] sm:$0xff]
        %v1112 = vld [vmem:[%s235 + $0x9d8] sm:$0xff]
        %v1113 = vld [vmem:[%s235 + $0x9e0] sm:$0xff]
        %v1114 = vld [vmem:[%s235 + $0x9e8] sm:$0xff]
        %v1115 = vld [vmem:[%s235 + $0x9f0] sm:$0xff]
        %v1116 = vld [vmem:[%s235 + $0x9f8] sm:$0xff]
        %v1117 = vld [vmem:[%s235 + $0xa00] sm:$0xff]
        %v1118 = vld [vmem:[%s235 + $0xa08] sm:$0xff]
        %v1119 = vld [vmem:[%s235 + $0xa10] sm:$0xff]
        %v1120 = vld [vmem:[%s235 + $0xa18] sm:$0xff]
        %v1121 = vld [vmem:[%s235 + $0xa20] sm:$0xff]
        %v1122 = vld [vmem:[%s235 + $0xa28] sm:$0xff]
        %v1123 = vld [vmem:[%s235 + $0xa30] sm:$0xff]
        %v1124 = vld [vmem:[%s235 + $0xa38] sm:$0xff]
        %v1125 = vld [vmem:[%s235 + $0xa40] sm:$0xff]
        %v1126 = vld [vmem:[%s235 + $0xa48] sm:$0xff]
        %v1127 = vld [vmem:[%s235 + $0xa50] sm:$0xff]
        %v1128 = vld [vmem:[%s235 + $0xa58] sm:$0xff]
        %v1129 = vld [vmem:[%s235 + $0xa60] sm:$0xff]
        %v1130 = vld [vmem:[%s235 + $0xa68] sm:$0xff]
        %v1131 = vld [vmem:[%s235 + $0xa70] sm:$0xff]
        %v1132 = vld [vmem:[%s235 + $0xa78] sm:$0xff]
        %v1133 = vld [vmem:[%s235 + $0xa80] sm:$0xff]
        %v1134 = vld [vmem:[%s235 + $0xa88] sm:$0xff]
        %v1135 = vld [vmem:[%s235 + $0xa90] sm:$0xff]
        %v1136 = vld [vmem:[%s235 + $0xa98] sm:$0xff]
        %v1137 = vld [vmem:[%s235 + $0xaa0] sm:$0xff]
        %v1138 = vld [vmem:[%s235 + $0xaa8] sm:$0xff]
        %v1139 = vld [vmem:[%s235 + $0xab0] sm:$0xff]
        %v1140 = vld [vmem:[%s235 + $0xab8] sm:$0xff]
        %v1141 = vld [vmem:[%s235 + $0xac0] sm:$0xff]
        %v1142 = vld [vmem:[%s235 + $0xac8] sm:$0xff]
        %v1143 = vld [vmem:[%s235 + $0xad0] sm:$0xff]
        %v1144 = vld [vmem:[%s235 + $0xad8] sm:$0xff]
        %v1145 = vld [vmem:[%s235 + $0xae0] sm:$0xff]
        %v1146 = vld [vmem:[%s235 + $0xae8] sm:$0xff]
        %v1147 = vld [vmem:[%s235 + $0xaf0] sm:$0xff]
        %v1148 = vld [vmem:[%s235 + $0xaf8] sm:$0xff]
        %v1149 = vld [vmem:[%s235 + $0xb00] sm:$0xff]
        %v1150 = vld [vmem:[%s235 + $0xb08] sm:$0xff]
        %v1151 = vld [vmem:[%s235 + $0xb10] sm:$0xff]
        %v1152 = vld [vmem:[%s235 + $0xb18] sm:$0xff]
        %v1153 = vld [vmem:[%s235 + $0xb20] sm:$0xff]
        %v1154 = vld [vmem:[%s235 + $0xb28] sm:$0xff]
        %v1155 = vld [vmem:[%s235 + $0xb30] sm:$0xff]
        %v1156 = vld [vmem:[%s235 + $0xb38] sm:$0xff]
        %v1157 = vld [vmem:[%s235 + $0xb40] sm:$0xff]
        %v1158 = vld [vmem:[%s235 + $0xb48] sm:$0xff]
        %v1159 = vld [vmem:[%s235 + $0xb50] sm:$0xff]
        %v1160 = vld [vmem:[%s235 + $0xb58] sm:$0xff]
        %v1161 = vld [vmem:[%s235 + $0xb60] sm:$0xff]
        %v1162 = vld [vmem:[%s235 + $0xb68] sm:$0xff]
        %v1163 = vld [vmem:[%s235 + $0xb70] sm:$0xff]
        %v1164 = vld [vmem:[%s235 + $0xb78] sm:$0xff]
        %v1165 = vld [vmem:[%s235 + $0xb80] sm:$0xff]
        %v1166 = vld [vmem:[%s235 + $0xb88] sm:$0xff]
        %v1167 = vld [vmem:[%s235 + $0xb90] sm:$0xff]
        %v1168 = vld [vmem:[%s235 + $0xb98] sm:$0xff]
        %v1169 = vld [vmem:[%s235 + $0xba0] sm:$0xff]
        %v1170 = vld [vmem:[%s235 + $0xba8] sm:$0xff]
        %v1171 = vld [vmem:[%s235 + $0xbb0] sm:$0xff]
        %v1172 = vld [vmem:[%s235 + $0xbb8] sm:$0xff]
        %v1173 = vld [vmem:[%s235 + $0xbc0] sm:$0xff]
        %v1174 = vld [vmem:[%s235 + $0xbc8] sm:$0xff]
        %v1175 = vld [vmem:[%s235 + $0xbd0] sm:$0xff]
        %v1176 = vld [vmem:[%s235 + $0xbd8] sm:$0xff]
        %v1177 = vld [vmem:[%s235 + $0xbe0] sm:$0xff]
        %v1178 = vld [vmem:[%s235 + $0xbe8] sm:$0xff]
        %v1179 = vld [vmem:[%s235 + $0xbf0] sm:$0xff]
        %v1180 = vld [vmem:[%s235 + $0xbf8] sm:$0xff]
        %v1181 = vld [vmem:[%s235 + $0xc00] sm:$0xff]
        %v1182 = vld [vmem:[%s235 + $0xc08] sm:$0xff]
        %v1183 = vld [vmem:[%s235 + $0xc10] sm:$0xff]
        %v1184 = vld [vmem:[%s235 + $0xc18] sm:$0xff]
        %v1185 = vld [vmem:[%s235 + $0xc20] sm:$0xff]
        %v1186 = vld [vmem:[%s235 + $0xc28] sm:$0xff]
        %v1187 = vld [vmem:[%s235 + $0xc30] sm:$0xff]
        %v1188 = vld [vmem:[%s235 + $0xc38] sm:$0xff]
        %v1189 = vld [vmem:[%s235 + $0xc40] sm:$0xff]
        %v1190 = vld [vmem:[%s235 + $0xc48] sm:$0xff]
        %v1191 = vld [vmem:[%s235 + $0xc50] sm:$0xff]
        %v1192 = vld [vmem:[%s235 + $0xc58] sm:$0xff]
        %v1193 = vld [vmem:[%s235 + $0xc60] sm:$0xff]
        %v1194 = vld [vmem:[%s235 + $0xc68] sm:$0xff]
        %v1195 = vld [vmem:[%s235 + $0xc70] sm:$0xff]
        %v1196 = vld [vmem:[%s235 + $0xc78] sm:$0xff]
        %v1197 = vld [vmem:[%s235 + $0xc80] sm:$0xff]
        %v1198 = vld [vmem:[%s235 + $0xc88] sm:$0xff]
        %v1199 = vld [vmem:[%s235 + $0xc90] sm:$0xff]
        %v1200 = vld [vmem:[%s235 + $0xc98] sm:$0xff]
        %v1201 = vld [vmem:[%s235 + $0xca0] sm:$0xff]
        %v1202 = vld [vmem:[%s235 + $0xca8] sm:$0xff]
        %v1203 = vld [vmem:[%s235 + $0xcb0] sm:$0xff]
        %v1204 = vld [vmem:[%s235 + $0xcb8] sm:$0xff]
        %v1205 = vld [vmem:[%s235 + $0xcc0] sm:$0xff]
        %v1206 = vld [vmem:[%s235 + $0xcc8] sm:$0xff]
        %v1207 = vld [vmem:[%s235 + $0xcd0] sm:$0xff]
        %v1208 = vld [vmem:[%s235 + $0xcd8] sm:$0xff]
        %v1209 = vld [vmem:[%s235 + $0xce0] sm:$0xff]
        %v1210 = vld [vmem:[%s235 + $0xce8] sm:$0xff]
        %v1211 = vld [vmem:[%s235 + $0xcf0] sm:$0xff]
        %v1212 = vld [vmem:[%s235 + $0xcf8] sm:$0xff]
        %v1213 = vld [vmem:[%s235 + $0xd00] sm:$0xff]
        %v1214 = vld [vmem:[%s235 + $0xd08] sm:$0xff]
        %v1215 = vld [vmem:[%s235 + $0xd10] sm:$0xff]
        %v1216 = vld [vmem:[%s235 + $0xd18] sm:$0xff]
        %v1217 = vld [vmem:[%s235 + $0xd20] sm:$0xff]
        %v1218 = vld [vmem:[%s235 + $0xd28] sm:$0xff]
        %v1219 = vld [vmem:[%s235 + $0xd30] sm:$0xff]
        %v1220 = vld [vmem:[%s235 + $0xd38] sm:$0xff]
        %v1221 = vld [vmem:[%s235 + $0xd40] sm:$0xff]
        %v1222 = vld [vmem:[%s235 + $0xd48] sm:$0xff]
        %v1223 = vld [vmem:[%s235 + $0xd50] sm:$0xff]
        %v1224 = vld [vmem:[%s235 + $0xd58] sm:$0xff]
        %v1225 = vld [vmem:[%s235 + $0xd60] sm:$0xff]
        %v1226 = vld [vmem:[%s235 + $0xd68] sm:$0xff]
        %v1227 = vld [vmem:[%s235 + $0xd70] sm:$0xff]
        %v1228 = vld [vmem:[%s235 + $0xd78] sm:$0xff]
        %v1229 = vld [vmem:[%s235 + $0xd80] sm:$0xff]
        %v1230 = vld [vmem:[%s235 + $0xd88] sm:$0xff]
        %v1231 = vld [vmem:[%s235 + $0xd90] sm:$0xff]
        %v1232 = vld [vmem:[%s235 + $0xd98] sm:$0xff]
        %v1233 = vld [vmem:[%s235 + $0xda0] sm:$0xff]
        %v1234 = vld [vmem:[%s235 + $0xda8] sm:$0xff]
        %v1235 = vld [vmem:[%s235 + $0xdb0] sm:$0xff]
        %v1236 = vld [vmem:[%s235 + $0xdb8] sm:$0xff]
        %v1237 = vld [vmem:[%s235 + $0xdc0] sm:$0xff]
        %v1238 = vld [vmem:[%s235 + $0xdc8] sm:$0xff]
        %v1239 = vld [vmem:[%s235 + $0xdd0] sm:$0xff]
        %v1240 = vld [vmem:[%s235 + $0xdd8] sm:$0xff]
        %v1241 = vld [vmem:[%s235 + $0xde0] sm:$0xff]
        %v1242 = vld [vmem:[%s235 + $0xde8] sm:$0xff]
        %v1243 = vld [vmem:[%s235 + $0xdf0] sm:$0xff]
        %v1244 = vld [vmem:[%s235 + $0xdf8] sm:$0xff]
        %v1245 = vld [vmem:[%s235 + $0xe00] sm:$0xff]
        %v1246 = vld [vmem:[%s235 + $0xe08] sm:$0xff]
        %v1247 = vld [vmem:[%s235 + $0xe10] sm:$0xff]
        %v1248 = vld [vmem:[%s235 + $0xe18] sm:$0xff]
        %v1249 = vld [vmem:[%s235 + $0xe20] sm:$0xff]
        %v1250 = vld [vmem:[%s235 + $0xe28] sm:$0xff]
        %v1251 = vld [vmem:[%s235 + $0xe30] sm:$0xff]
        %v1252 = vld [vmem:[%s235 + $0xe38] sm:$0xff]
        %v1253 = vld [vmem:[%s235 + $0xe40] sm:$0xff]
        %v1254 = vld [vmem:[%s235 + $0xe48] sm:$0xff]
        %v1255 = vld [vmem:[%s235 + $0xe50] sm:$0xff]
        %v1256 = vld [vmem:[%s235 + $0xe58] sm:$0xff]
        %v1257 = vld [vmem:[%s235 + $0xe60] sm:$0xff]
        %v1258 = vld [vmem:[%s235 + $0xe68] sm:$0xff]
        %v1259 = vld [vmem:[%s235 + $0xe70] sm:$0xff]
        %v1260 = vld [vmem:[%s235 + $0xe78] sm:$0xff]
        %v1261 = vld [vmem:[%s235 + $0xe80] sm:$0xff]
        %v1262 = vld [vmem:[%s235 + $0xe88] sm:$0xff]
        %v1263 = vld [vmem:[%s235 + $0xe90] sm:$0xff]
        %v1264 = vld [vmem:[%s235 + $0xe98] sm:$0xff]
        %v1265 = vld [vmem:[%s235 + $0xea0] sm:$0xff]
        %v1266 = vld [vmem:[%s235 + $0xea8] sm:$0xff]
        %v1267 = vld [vmem:[%s235 + $0xeb0] sm:$0xff]
        %v1268 = vld [vmem:[%s235 + $0xeb8] sm:$0xff]
        %v1269 = vld [vmem:[%s235 + $0xec0] sm:$0xff]
        %v1270 = vld [vmem:[%s235 + $0xec8] sm:$0xff]
        %v1271 = vld [vmem:[%s235 + $0xed0] sm:$0xff]
        %v1272 = vld [vmem:[%s235 + $0xed8] sm:$0xff]
        %v1273 = vld [vmem:[%s235 + $0xee0] sm:$0xff]
        %v1274 = vld [vmem:[%s235 + $0xee8] sm:$0xff]
        %v1275 = vld [vmem:[%s235 + $0xef0] sm:$0xff]
        %v1276 = vld [vmem:[%s235 + $0xef8] sm:$0xff]
        %v1277 = vld [vmem:[%s235 + $0xf00] sm:$0xff]
        %v1278 = vld [vmem:[%s235 + $0xf08] sm:$0xff]
        %v1279 = vld [vmem:[%s235 + $0xf10] sm:$0xff]
        %v1280 = vld [vmem:[%s235 + $0xf18] sm:$0xff]
        %v1281 = vld [vmem:[%s235 + $0xf20] sm:$0xff]
        %v1282 = vld [vmem:[%s235 + $0xf28] sm:$0xff]
        %v1283 = vld [vmem:[%s235 + $0xf30] sm:$0xff]
        %v1284 = vld [vmem:[%s235 + $0xf38] sm:$0xff]
        %v1285 = vld [vmem:[%s235 + $0xf40] sm:$0xff]
        %v1286 = vld [vmem:[%s235 + $0xf48] sm:$0xff]
        %v1287 = vld [vmem:[%s235 + $0xf50] sm:$0xff]
        %v1288 = vld [vmem:[%s235 + $0xf58] sm:$0xff]
        %v1289 = vld [vmem:[%s235 + $0xf60] sm:$0xff]
        %v1290 = vld [vmem:[%s235 + $0xf68] sm:$0xff]
        %v1291 = vld [vmem:[%s235 + $0xf70] sm:$0xff]
        %v1292 = vld [vmem:[%s235 + $0xf78] sm:$0xff]
        %v1293 = vld [vmem:[%s235 + $0xf80] sm:$0xff]
        %v1294 = vld [vmem:[%s235 + $0xf88] sm:$0xff]
        %v1295 = vld [vmem:[%s235 + $0xf90] sm:$0xff]
        %v1296 = vld [vmem:[%s235 + $0xf98] sm:$0xff]
        %v1297 = vld [vmem:[%s235 + $0xfa0] sm:$0xff]
        %v1298 = vld [vmem:[%s235 + $0xfa8] sm:$0xff]
        %v1299 = vld [vmem:[%s235 + $0xfb0] sm:$0xff]
        %v1300 = vld [vmem:[%s235 + $0xfb8] sm:$0xff]
        %v1301 = vld [vmem:[%s235 + $0xfc0] sm:$0xff]
        %v1302 = vld [vmem:[%s235 + $0xfc8] sm:$0xff]
        %v1303 = vld [vmem:[%s235 + $0xfd0] sm:$0xff]
        %v1304 = vld [vmem:[%s235 + $0xfd8] sm:$0xff]
        %v1305 = vld [vmem:[%s235 + $0xfe0] sm:$0xff]
        %v1306 = vld [vmem:[%s235 + $0xfe8] sm:$0xff]
        %v1307 = vld [vmem:[%s235 + $0xff0] sm:$0xff]
        %v1308 = vld [vmem:[%s235 + $0xff8] sm:$0xff]
        %v1309 = vstv %s284
        %v1310 = vmul.f32 %v1309, %v797
        %v1311 = vmul.f32 %v1309, %v798
        %v1312 = vmul.f32 %v1309, %v799
        %v1313 = vmul.f32 %v1309, %v800
        %v1314 = vmul.f32 %v1309, %v801
        %v1315 = vmul.f32 %v1309, %v802
        %v1316 = vmul.f32 %v1309, %v803
        %v1317 = vmul.f32 %v1309, %v804
        %v1318 = vmul.f32 %v1309, %v805
        %v1319 = vmul.f32 %v1309, %v806
        %v1320 = vmul.f32 %v1309, %v807
        %v1321 = vmul.f32 %v1309, %v808
        %v1322 = vmul.f32 %v1309, %v809
        %v1323 = vmul.f32 %v1309, %v810
        %v1324 = vmul.f32 %v1309, %v811
        %v1325 = vmul.f32 %v1309, %v812
        %v1326 = vmul.f32 %v1309, %v813
        %v1327 = vmul.f32 %v1309, %v814
        %v1328 = vmul.f32 %v1309, %v815
        %v1329 = vmul.f32 %v1309, %v816
        %v1330 = vmul.f32 %v1309, %v817
        %v1331 = vmul.f32 %v1309, %v818
        %v1332 = vmul.f32 %v1309, %v819
        %v1333 = vmul.f32 %v1309, %v820
        %v1334 = vmul.f32 %v1309, %v821
        %v1335 = vmul.f32 %v1309, %v822
        %v1336 = vmul.f32 %v1309, %v823
        %v1337 = vmul.f32 %v1309, %v824
        %v1338 = vmul.f32 %v1309, %v825
        %v1339 = vmul.f32 %v1309, %v826
        %v1340 = vmul.f32 %v1309, %v827
        %v1341 = vmul.f32 %v1309, %v828
        %v1342 = vmul.f32 %v1309, %v829
        %v1343 = vmul.f32 %v1309, %v830
        %v1344 = vmul.f32 %v1309, %v831
        %v1345 = vmul.f32 %v1309, %v832
        %v1346 = vmul.f32 %v1309, %v833
        %v1347 = vmul.f32 %v1309, %v834
        %v1348 = vmul.f32 %v1309, %v835
        %v1349 = vmul.f32 %v1309, %v836
        %v1350 = vmul.f32 %v1309, %v837
        %v1351 = vmul.f32 %v1309, %v838
        %v1352 = vmul.f32 %v1309, %v839
        %v1353 = vmul.f32 %v1309, %v840
        %v1354 = vmul.f32 %v1309, %v841
        %v1355 = vmul.f32 %v1309, %v842
        %v1356 = vmul.f32 %v1309, %v843
        %v1357 = vmul.f32 %v1309, %v844
        %v1358 = vmul.f32 %v1309, %v845
        %v1359 = vmul.f32 %v1309, %v846
        %v1360 = vmul.f32 %v1309, %v847
        %v1361 = vmul.f32 %v1309, %v848
        %v1362 = vmul.f32 %v1309, %v849
        %v1363 = vmul.f32 %v1309, %v850
        %v1364 = vmul.f32 %v1309, %v851
        %v1365 = vmul.f32 %v1309, %v852
        %v1366 = vmul.f32 %v1309, %v853
        %v1367 = vmul.f32 %v1309, %v854
        %v1368 = vmul.f32 %v1309, %v855
        %v1369 = vmul.f32 %v1309, %v856
        %v1370 = vmul.f32 %v1309, %v857
        %v1371 = vmul.f32 %v1309, %v858
        %v1372 = vmul.f32 %v1309, %v859
        %v1373 = vmul.f32 %v1309, %v860
        %v1374 = vmul.f32 %v1309, %v861
        %v1375 = vmul.f32 %v1309, %v862
        %v1376 = vmul.f32 %v1309, %v863
        %v1377 = vmul.f32 %v1309, %v864
        %v1378 = vmul.f32 %v1309, %v865
        %v1379 = vmul.f32 %v1309, %v866
        %v1380 = vmul.f32 %v1309, %v867
        %v1381 = vmul.f32 %v1309, %v868
        %v1382 = vmul.f32 %v1309, %v869
        %v1383 = vmul.f32 %v1309, %v870
        %v1384 = vmul.f32 %v1309, %v871
        %v1385 = vmul.f32 %v1309, %v872
        %v1386 = vmul.f32 %v1309, %v873
        %v1387 = vmul.f32 %v1309, %v874
        %v1388 = vmul.f32 %v1309, %v875
        %v1389 = vmul.f32 %v1309, %v876
        %v1390 = vmul.f32 %v1309, %v877
        %v1391 = vmul.f32 %v1309, %v878
        %v1392 = vmul.f32 %v1309, %v879
        %v1393 = vmul.f32 %v1309, %v880
        %v1394 = vmul.f32 %v1309, %v881
        %v1395 = vmul.f32 %v1309, %v882
        %v1396 = vmul.f32 %v1309, %v883
        %v1397 = vmul.f32 %v1309, %v884
        %v1398 = vmul.f32 %v1309, %v885
        %v1399 = vmul.f32 %v1309, %v886
        %v1400 = vmul.f32 %v1309, %v887
        %v1401 = vmul.f32 %v1309, %v888
        %v1402 = vmul.f32 %v1309, %v889
        %v1403 = vmul.f32 %v1309, %v890
        %v1404 = vmul.f32 %v1309, %v891
        %v1405 = vmul.f32 %v1309, %v892
        %v1406 = vmul.f32 %v1309, %v893
        %v1407 = vmul.f32 %v1309, %v894
        %v1408 = vmul.f32 %v1309, %v895
        %v1409 = vmul.f32 %v1309, %v896
        %v1410 = vmul.f32 %v1309, %v897
        %v1411 = vmul.f32 %v1309, %v898
        %v1412 = vmul.f32 %v1309, %v899
        %v1413 = vmul.f32 %v1309, %v900
        %v1414 = vmul.f32 %v1309, %v901
        %v1415 = vmul.f32 %v1309, %v902
        %v1416 = vmul.f32 %v1309, %v903
        %v1417 = vmul.f32 %v1309, %v904
        %v1418 = vmul.f32 %v1309, %v905
        %v1419 = vmul.f32 %v1309, %v906
        %v1420 = vmul.f32 %v1309, %v907
        %v1421 = vmul.f32 %v1309, %v908
        %v1422 = vmul.f32 %v1309, %v909
        %v1423 = vmul.f32 %v1309, %v910
        %v1424 = vmul.f32 %v1309, %v911
        %v1425 = vmul.f32 %v1309, %v912
        %v1426 = vmul.f32 %v1309, %v913
        %v1427 = vmul.f32 %v1309, %v914
        %v1428 = vmul.f32 %v1309, %v915
        %v1429 = vmul.f32 %v1309, %v916
        %v1430 = vmul.f32 %v1309, %v917
        %v1431 = vmul.f32 %v1309, %v918
        %v1432 = vmul.f32 %v1309, %v919
        %v1433 = vmul.f32 %v1309, %v920
        %v1434 = vmul.f32 %v1309, %v921
        %v1435 = vmul.f32 %v1309, %v922
        %v1436 = vmul.f32 %v1309, %v923
        %v1437 = vmul.f32 %v1309, %v924
        %v1438 = vmul.f32 %v1309, %v925
        %v1439 = vmul.f32 %v1309, %v926
        %v1440 = vmul.f32 %v1309, %v927
        %v1441 = vmul.f32 %v1309, %v928
        %v1442 = vmul.f32 %v1309, %v929
        %v1443 = vmul.f32 %v1309, %v930
        %v1444 = vmul.f32 %v1309, %v931
        %v1445 = vmul.f32 %v1309, %v932
        %v1446 = vmul.f32 %v1309, %v933
        %v1447 = vmul.f32 %v1309, %v934
        %v1448 = vmul.f32 %v1309, %v935
        %v1449 = vmul.f32 %v1309, %v936
        %v1450 = vmul.f32 %v1309, %v937
        %v1451 = vmul.f32 %v1309, %v938
        %v1452 = vmul.f32 %v1309, %v939
        %v1453 = vmul.f32 %v1309, %v940
        %v1454 = vmul.f32 %v1309, %v941
        %v1455 = vmul.f32 %v1309, %v942
        %v1456 = vmul.f32 %v1309, %v943
        %v1457 = vmul.f32 %v1309, %v944
        %v1458 = vmul.f32 %v1309, %v945
        %v1459 = vmul.f32 %v1309, %v946
        %v1460 = vmul.f32 %v1309, %v947
        %v1461 = vmul.f32 %v1309, %v948
        %v1462 = vmul.f32 %v1309, %v949
        %v1463 = vmul.f32 %v1309, %v950
        %v1464 = vmul.f32 %v1309, %v951
        %v1465 = vmul.f32 %v1309, %v952
        %v1466 = vmul.f32 %v1309, %v953
        %v1467 = vmul.f32 %v1309, %v954
        %v1468 = vmul.f32 %v1309, %v955
        %v1469 = vmul.f32 %v1309, %v956
        %v1470 = vmul.f32 %v1309, %v957
        %v1471 = vmul.f32 %v1309, %v958
        %v1472 = vmul.f32 %v1309, %v959
        %v1473 = vmul.f32 %v1309, %v960
        %v1474 = vmul.f32 %v1309, %v961
        %v1475 = vmul.f32 %v1309, %v962
        %v1476 = vmul.f32 %v1309, %v963
        %v1477 = vmul.f32 %v1309, %v964
        %v1478 = vmul.f32 %v1309, %v965
        %v1479 = vmul.f32 %v1309, %v966
        %v1480 = vmul.f32 %v1309, %v967
        %v1481 = vmul.f32 %v1309, %v968
        %v1482 = vmul.f32 %v1309, %v969
        %v1483 = vmul.f32 %v1309, %v970
        %v1484 = vmul.f32 %v1309, %v971
        %v1485 = vmul.f32 %v1309, %v972
        %v1486 = vmul.f32 %v1309, %v973
        %v1487 = vmul.f32 %v1309, %v974
        %v1488 = vmul.f32 %v1309, %v975
        %v1489 = vmul.f32 %v1309, %v976
        %v1490 = vmul.f32 %v1309, %v977
        %v1491 = vmul.f32 %v1309, %v978
        %v1492 = vmul.f32 %v1309, %v979
        %v1493 = vmul.f32 %v1309, %v980
        %v1494 = vmul.f32 %v1309, %v981
        %v1495 = vmul.f32 %v1309, %v982
        %v1496 = vmul.f32 %v1309, %v983
        %v1497 = vmul.f32 %v1309, %v984
        %v1498 = vmul.f32 %v1309, %v985
        %v1499 = vmul.f32 %v1309, %v986
        %v1500 = vmul.f32 %v1309, %v987
        %v1501 = vmul.f32 %v1309, %v988
        %v1502 = vmul.f32 %v1309, %v989
        %v1503 = vmul.f32 %v1309, %v990
        %v1504 = vmul.f32 %v1309, %v991
        %v1505 = vmul.f32 %v1309, %v992
        %v1506 = vmul.f32 %v1309, %v993
        %v1507 = vmul.f32 %v1309, %v994
        %v1508 = vmul.f32 %v1309, %v995
        %v1509 = vmul.f32 %v1309, %v996
        %v1510 = vmul.f32 %v1309, %v997
        %v1511 = vmul.f32 %v1309, %v998
        %v1512 = vmul.f32 %v1309, %v999
        %v1513 = vmul.f32 %v1309, %v1000
        %v1514 = vmul.f32 %v1309, %v1001
        %v1515 = vmul.f32 %v1309, %v1002
        %v1516 = vmul.f32 %v1309, %v1003
        %v1517 = vmul.f32 %v1309, %v1004
        %v1518 = vmul.f32 %v1309, %v1005
        %v1519 = vmul.f32 %v1309, %v1006
        %v1520 = vmul.f32 %v1309, %v1007
        %v1521 = vmul.f32 %v1309, %v1008
        %v1522 = vmul.f32 %v1309, %v1009
        %v1523 = vmul.f32 %v1309, %v1010
        %v1524 = vmul.f32 %v1309, %v1011
        %v1525 = vmul.f32 %v1309, %v1012
        %v1526 = vmul.f32 %v1309, %v1013
        %v1527 = vmul.f32 %v1309, %v1014
        %v1528 = vmul.f32 %v1309, %v1015
        %v1529 = vmul.f32 %v1309, %v1016
        %v1530 = vmul.f32 %v1309, %v1017
        %v1531 = vmul.f32 %v1309, %v1018
        %v1532 = vmul.f32 %v1309, %v1019
        %v1533 = vmul.f32 %v1309, %v1020
        %v1534 = vmul.f32 %v1309, %v1021
        %v1535 = vmul.f32 %v1309, %v1022
        %v1536 = vmul.f32 %v1309, %v1023
        %v1537 = vmul.f32 %v1309, %v1024
        %v1538 = vmul.f32 %v1309, %v1025
        %v1539 = vmul.f32 %v1309, %v1026
        %v1540 = vmul.f32 %v1309, %v1027
        %v1541 = vmul.f32 %v1309, %v1028
        %v1542 = vmul.f32 %v1309, %v1029
        %v1543 = vmul.f32 %v1309, %v1030
        %v1544 = vmul.f32 %v1309, %v1031
        %v1545 = vmul.f32 %v1309, %v1032
        %v1546 = vmul.f32 %v1309, %v1033
        %v1547 = vmul.f32 %v1309, %v1034
        %v1548 = vmul.f32 %v1309, %v1035
        %v1549 = vmul.f32 %v1309, %v1036
        %v1550 = vmul.f32 %v1309, %v1037
        %v1551 = vmul.f32 %v1309, %v1038
        %v1552 = vmul.f32 %v1309, %v1039
        %v1553 = vmul.f32 %v1309, %v1040
        %v1554 = vmul.f32 %v1309, %v1041
        %v1555 = vmul.f32 %v1309, %v1042
        %v1556 = vmul.f32 %v1309, %v1043
        %v1557 = vmul.f32 %v1309, %v1044
        %v1558 = vmul.f32 %v1309, %v1045
        %v1559 = vmul.f32 %v1309, %v1046
        %v1560 = vmul.f32 %v1309, %v1047
        %v1561 = vmul.f32 %v1309, %v1048
        %v1562 = vmul.f32 %v1309, %v1049
        %v1563 = vmul.f32 %v1309, %v1050
        %v1564 = vmul.f32 %v1309, %v1051
        %v1565 = vmul.f32 %v1309, %v1052
        %v1566 = vmul.f32 %v1309, %v1053
        %v1567 = vmul.f32 %v1309, %v1054
        %v1568 = vmul.f32 %v1309, %v1055
        %v1569 = vmul.f32 %v1309, %v1056
        %v1570 = vmul.f32 %v1309, %v1057
        %v1571 = vmul.f32 %v1309, %v1058
        %v1572 = vmul.f32 %v1309, %v1059
        %v1573 = vmul.f32 %v1309, %v1060
        %v1574 = vmul.f32 %v1309, %v1061
        %v1575 = vmul.f32 %v1309, %v1062
        %v1576 = vmul.f32 %v1309, %v1063
        %v1577 = vmul.f32 %v1309, %v1064
        %v1578 = vmul.f32 %v1309, %v1065
        %v1579 = vmul.f32 %v1309, %v1066
        %v1580 = vmul.f32 %v1309, %v1067
        %v1581 = vmul.f32 %v1309, %v1068
        %v1582 = vmul.f32 %v1309, %v1069
        %v1583 = vmul.f32 %v1309, %v1070
        %v1584 = vmul.f32 %v1309, %v1071
        %v1585 = vmul.f32 %v1309, %v1072
        %v1586 = vmul.f32 %v1309, %v1073
        %v1587 = vmul.f32 %v1309, %v1074
        %v1588 = vmul.f32 %v1309, %v1075
        %v1589 = vmul.f32 %v1309, %v1076
        %v1590 = vmul.f32 %v1309, %v1077
        %v1591 = vmul.f32 %v1309, %v1078
        %v1592 = vmul.f32 %v1309, %v1079
        %v1593 = vmul.f32 %v1309, %v1080
        %v1594 = vmul.f32 %v1309, %v1081
        %v1595 = vmul.f32 %v1309, %v1082
        %v1596 = vmul.f32 %v1309, %v1083
        %v1597 = vmul.f32 %v1309, %v1084
        %v1598 = vmul.f32 %v1309, %v1085
        %v1599 = vmul.f32 %v1309, %v1086
        %v1600 = vmul.f32 %v1309, %v1087
        %v1601 = vmul.f32 %v1309, %v1088
        %v1602 = vmul.f32 %v1309, %v1089
        %v1603 = vmul.f32 %v1309, %v1090
        %v1604 = vmul.f32 %v1309, %v1091
        %v1605 = vmul.f32 %v1309, %v1092
        %v1606 = vmul.f32 %v1309, %v1093
        %v1607 = vmul.f32 %v1309, %v1094
        %v1608 = vmul.f32 %v1309, %v1095
        %v1609 = vmul.f32 %v1309, %v1096
        %v1610 = vmul.f32 %v1309, %v1097
        %v1611 = vmul.f32 %v1309, %v1098
        %v1612 = vmul.f32 %v1309, %v1099
        %v1613 = vmul.f32 %v1309, %v1100
        %v1614 = vmul.f32 %v1309, %v1101
        %v1615 = vmul.f32 %v1309, %v1102
        %v1616 = vmul.f32 %v1309, %v1103
        %v1617 = vmul.f32 %v1309, %v1104
        %v1618 = vmul.f32 %v1309, %v1105
        %v1619 = vmul.f32 %v1309, %v1106
        %v1620 = vmul.f32 %v1309, %v1107
        %v1621 = vmul.f32 %v1309, %v1108
        %v1622 = vmul.f32 %v1309, %v1109
        %v1623 = vmul.f32 %v1309, %v1110
        %v1624 = vmul.f32 %v1309, %v1111
        %v1625 = vmul.f32 %v1309, %v1112
        %v1626 = vmul.f32 %v1309, %v1113
        %v1627 = vmul.f32 %v1309, %v1114
        %v1628 = vmul.f32 %v1309, %v1115
        %v1629 = vmul.f32 %v1309, %v1116
        %v1630 = vmul.f32 %v1309, %v1117
        %v1631 = vmul.f32 %v1309, %v1118
        %v1632 = vmul.f32 %v1309, %v1119
        %v1633 = vmul.f32 %v1309, %v1120
        %v1634 = vmul.f32 %v1309, %v1121
        %v1635 = vmul.f32 %v1309, %v1122
        %v1636 = vmul.f32 %v1309, %v1123
        %v1637 = vmul.f32 %v1309, %v1124
        %v1638 = vmul.f32 %v1309, %v1125
        %v1639 = vmul.f32 %v1309, %v1126
        %v1640 = vmul.f32 %v1309, %v1127
        %v1641 = vmul.f32 %v1309, %v1128
        %v1642 = vmul.f32 %v1309, %v1129
        %v1643 = vmul.f32 %v1309, %v1130
        %v1644 = vmul.f32 %v1309, %v1131
        %v1645 = vmul.f32 %v1309, %v1132
        %v1646 = vmul.f32 %v1309, %v1133
        %v1647 = vmul.f32 %v1309, %v1134
        %v1648 = vmul.f32 %v1309, %v1135
        %v1649 = vmul.f32 %v1309, %v1136
        %v1650 = vmul.f32 %v1309, %v1137
        %v1651 = vmul.f32 %v1309, %v1138
        %v1652 = vmul.f32 %v1309, %v1139
        %v1653 = vmul.f32 %v1309, %v1140
        %v1654 = vmul.f32 %v1309, %v1141
        %v1655 = vmul.f32 %v1309, %v1142
        %v1656 = vmul.f32 %v1309, %v1143
        %v1657 = vmul.f32 %v1309, %v1144
        %v1658 = vmul.f32 %v1309, %v1145
        %v1659 = vmul.f32 %v1309, %v1146
        %v1660 = vmul.f32 %v1309, %v1147
        %v1661 = vmul.f32 %v1309, %v1148
        %v1662 = vmul.f32 %v1309, %v1149
        %v1663 = vmul.f32 %v1309, %v1150
        %v1664 = vmul.f32 %v1309, %v1151
        %v1665 = vmul.f32 %v1309, %v1152
        %v1666 = vmul.f32 %v1309, %v1153
        %v1667 = vmul.f32 %v1309, %v1154
        %v1668 = vmul.f32 %v1309, %v1155
        %v1669 = vmul.f32 %v1309, %v1156
        %v1670 = vmul.f32 %v1309, %v1157
        %v1671 = vmul.f32 %v1309, %v1158
        %v1672 = vmul.f32 %v1309, %v1159
        %v1673 = vmul.f32 %v1309, %v1160
        %v1674 = vmul.f32 %v1309, %v1161
        %v1675 = vmul.f32 %v1309, %v1162
        %v1676 = vmul.f32 %v1309, %v1163
        %v1677 = vmul.f32 %v1309, %v1164
        %v1678 = vmul.f32 %v1309, %v1165
        %v1679 = vmul.f32 %v1309, %v1166
        %v1680 = vmul.f32 %v1309, %v1167
        %v1681 = vmul.f32 %v1309, %v1168
        %v1682 = vmul.f32 %v1309, %v1169
        %v1683 = vmul.f32 %v1309, %v1170
        %v1684 = vmul.f32 %v1309, %v1171
        %v1685 = vmul.f32 %v1309, %v1172
        %v1686 = vmul.f32 %v1309, %v1173
        %v1687 = vmul.f32 %v1309, %v1174
        %v1688 = vmul.f32 %v1309, %v1175
        %v1689 = vmul.f32 %v1309, %v1176
        %v1690 = vmul.f32 %v1309, %v1177
        %v1691 = vmul.f32 %v1309, %v1178
        %v1692 = vmul.f32 %v1309, %v1179
        %v1693 = vmul.f32 %v1309, %v1180
        %v1694 = vmul.f32 %v1309, %v1181
        %v1695 = vmul.f32 %v1309, %v1182
        %v1696 = vmul.f32 %v1309, %v1183
        %v1697 = vmul.f32 %v1309, %v1184
        %v1698 = vmul.f32 %v1309, %v1185
        %v1699 = vmul.f32 %v1309, %v1186
        %v1700 = vmul.f32 %v1309, %v1187
        %v1701 = vmul.f32 %v1309, %v1188
        %v1702 = vmul.f32 %v1309, %v1189
        %v1703 = vmul.f32 %v1309, %v1190
        %v1704 = vmul.f32 %v1309, %v1191
        %v1705 = vmul.f32 %v1309, %v1192
        %v1706 = vmul.f32 %v1309, %v1193
        %v1707 = vmul.f32 %v1309, %v1194
        %v1708 = vmul.f32 %v1309, %v1195
        %v1709 = vmul.f32 %v1309, %v1196
        %v1710 = vmul.f32 %v1309, %v1197
        %v1711 = vmul.f32 %v1309, %v1198
        %v1712 = vmul.f32 %v1309, %v1199
        %v1713 = vmul.f32 %v1309, %v1200
        %v1714 = vmul.f32 %v1309, %v1201
        %v1715 = vmul.f32 %v1309, %v1202
        %v1716 = vmul.f32 %v1309, %v1203
        %v1717 = vmul.f32 %v1309, %v1204
        %v1718 = vmul.f32 %v1309, %v1205
        %v1719 = vmul.f32 %v1309, %v1206
        %v1720 = vmul.f32 %v1309, %v1207
        %v1721 = vmul.f32 %v1309, %v1208
        %v1722 = vmul.f32 %v1309, %v1209
        %v1723 = vmul.f32 %v1309, %v1210
        %v1724 = vmul.f32 %v1309, %v1211
        %v1725 = vmul.f32 %v1309, %v1212
        %v1726 = vmul.f32 %v1309, %v1213
        %v1727 = vmul.f32 %v1309, %v1214
        %v1728 = vmul.f32 %v1309, %v1215
        %v1729 = vmul.f32 %v1309, %v1216
        %v1730 = vmul.f32 %v1309, %v1217
        %v1731 = vmul.f32 %v1309, %v1218
        %v1732 = vmul.f32 %v1309, %v1219
        %v1733 = vmul.f32 %v1309, %v1220
        %v1734 = vmul.f32 %v1309, %v1221
        %v1735 = vmul.f32 %v1309, %v1222
        %v1736 = vmul.f32 %v1309, %v1223
        %v1737 = vmul.f32 %v1309, %v1224
        %v1738 = vmul.f32 %v1309, %v1225
        %v1739 = vmul.f32 %v1309, %v1226
        %v1740 = vmul.f32 %v1309, %v1227
        %v1741 = vmul.f32 %v1309, %v1228
        %v1742 = vmul.f32 %v1309, %v1229
        %v1743 = vmul.f32 %v1309, %v1230
        %v1744 = vmul.f32 %v1309, %v1231
        %v1745 = vmul.f32 %v1309, %v1232
        %v1746 = vmul.f32 %v1309, %v1233
        %v1747 = vmul.f32 %v1309, %v1234
        %v1748 = vmul.f32 %v1309, %v1235
        %v1749 = vmul.f32 %v1309, %v1236
        %v1750 = vmul.f32 %v1309, %v1237
        %v1751 = vmul.f32 %v1309, %v1238
        %v1752 = vmul.f32 %v1309, %v1239
        %v1753 = vmul.f32 %v1309, %v1240
        %v1754 = vmul.f32 %v1309, %v1241
        %v1755 = vmul.f32 %v1309, %v1242
        %v1756 = vmul.f32 %v1309, %v1243
        %v1757 = vmul.f32 %v1309, %v1244
        %v1758 = vmul.f32 %v1309, %v1245
        %v1759 = vmul.f32 %v1309, %v1246
        %v1760 = vmul.f32 %v1309, %v1247
        %v1761 = vmul.f32 %v1309, %v1248
        %v1762 = vmul.f32 %v1309, %v1249
        %v1763 = vmul.f32 %v1309, %v1250
        %v1764 = vmul.f32 %v1309, %v1251
        %v1765 = vmul.f32 %v1309, %v1252
        %v1766 = vmul.f32 %v1309, %v1253
        %v1767 = vmul.f32 %v1309, %v1254
        %v1768 = vmul.f32 %v1309, %v1255
        %v1769 = vmul.f32 %v1309, %v1256
        %v1770 = vmul.f32 %v1309, %v1257
        %v1771 = vmul.f32 %v1309, %v1258
        %v1772 = vmul.f32 %v1309, %v1259
        %v1773 = vmul.f32 %v1309, %v1260
        %v1774 = vmul.f32 %v1309, %v1261
        %v1775 = vmul.f32 %v1309, %v1262
        %v1776 = vmul.f32 %v1309, %v1263
        %v1777 = vmul.f32 %v1309, %v1264
        %v1778 = vmul.f32 %v1309, %v1265
        %v1779 = vmul.f32 %v1309, %v1266
        %v1780 = vmul.f32 %v1309, %v1267
        %v1781 = vmul.f32 %v1309, %v1268
        %v1782 = vmul.f32 %v1309, %v1269
        %v1783 = vmul.f32 %v1309, %v1270
        %v1784 = vmul.f32 %v1309, %v1271
        %v1785 = vmul.f32 %v1309, %v1272
        %v1786 = vmul.f32 %v1309, %v1273
        %v1787 = vmul.f32 %v1309, %v1274
        %v1788 = vmul.f32 %v1309, %v1275
        %v1789 = vmul.f32 %v1309, %v1276
        %v1790 = vmul.f32 %v1309, %v1277
        %v1791 = vmul.f32 %v1309, %v1278
        %v1792 = vmul.f32 %v1309, %v1279
        %v1793 = vmul.f32 %v1309, %v1280
        %v1794 = vmul.f32 %v1309, %v1281
        %v1795 = vmul.f32 %v1309, %v1282
        %v1796 = vmul.f32 %v1309, %v1283
        %v1797 = vmul.f32 %v1309, %v1284
        %v1798 = vmul.f32 %v1309, %v1285
        %v1799 = vmul.f32 %v1309, %v1286
        %v1800 = vmul.f32 %v1309, %v1287
        %v1801 = vmul.f32 %v1309, %v1288
        %v1802 = vmul.f32 %v1309, %v1289
        %v1803 = vmul.f32 %v1309, %v1290
        %v1804 = vmul.f32 %v1309, %v1291
        %v1805 = vmul.f32 %v1309, %v1292
        %v1806 = vmul.f32 %v1309, %v1293
        %v1807 = vmul.f32 %v1309, %v1294
        %v1808 = vmul.f32 %v1309, %v1295
        %v1809 = vmul.f32 %v1309, %v1296
        %v1810 = vmul.f32 %v1309, %v1297
        %v1811 = vmul.f32 %v1309, %v1298
        %v1812 = vmul.f32 %v1309, %v1299
        %v1813 = vmul.f32 %v1309, %v1300
        %v1814 = vmul.f32 %v1309, %v1301
        %v1815 = vmul.f32 %v1309, %v1302
        %v1816 = vmul.f32 %v1309, %v1303
        %v1817 = vmul.f32 %v1309, %v1304
        %v1818 = vmul.f32 %v1309, %v1305
        %v1819 = vmul.f32 %v1309, %v1306
        %v1820 = vmul.f32 %v1309, %v1307
        %v1821 = vmul.f32 %v1309, %v1308
        %v1822 = vstv %s283
        %v1823 = vadd.f32 %v1822, %v1310
        %v1824 = vadd.f32 %v1822, %v1311
        %v1825 = vadd.f32 %v1822, %v1312
        %v1826 = vadd.f32 %v1822, %v1313
        %v1827 = vadd.f32 %v1822, %v1314
        %v1828 = vadd.f32 %v1822, %v1315
        %v1829 = vadd.f32 %v1822, %v1316
        %v1830 = vadd.f32 %v1822, %v1317
        %v1831 = vadd.f32 %v1822, %v1318
        %v1832 = vadd.f32 %v1822, %v1319
        %v1833 = vadd.f32 %v1822, %v1320
        %v1834 = vadd.f32 %v1822, %v1321
        %v1835 = vadd.f32 %v1822, %v1322
        %v1836 = vadd.f32 %v1822, %v1323
        %v1837 = vadd.f32 %v1822, %v1324
        %v1838 = vadd.f32 %v1822, %v1325
        %v1839 = vadd.f32 %v1822, %v1326
        %v1840 = vadd.f32 %v1822, %v1327
        %v1841 = vadd.f32 %v1822, %v1328
        %v1842 = vadd.f32 %v1822, %v1329
        %v1843 = vadd.f32 %v1822, %v1330
        %v1844 = vadd.f32 %v1822, %v1331
        %v1845 = vadd.f32 %v1822, %v1332
        %v1846 = vadd.f32 %v1822, %v1333
        %v1847 = vadd.f32 %v1822, %v1334
        %v1848 = vadd.f32 %v1822, %v1335
        %v1849 = vadd.f32 %v1822, %v1336
        %v1850 = vadd.f32 %v1822, %v1337
        %v1851 = vadd.f32 %v1822, %v1338
        %v1852 = vadd.f32 %v1822, %v1339
        %v1853 = vadd.f32 %v1822, %v1340
        %v1854 = vadd.f32 %v1822, %v1341
        %v1855 = vadd.f32 %v1822, %v1342
        %v1856 = vadd.f32 %v1822, %v1343
        %v1857 = vadd.f32 %v1822, %v1344
        %v1858 = vadd.f32 %v1822, %v1345
        %v1859 = vadd.f32 %v1822, %v1346
        %v1860 = vadd.f32 %v1822, %v1347
        %v1861 = vadd.f32 %v1822, %v1348
        %v1862 = vadd.f32 %v1822, %v1349
        %v1863 = vadd.f32 %v1822, %v1350
        %v1864 = vadd.f32 %v1822, %v1351
        %v1865 = vadd.f32 %v1822, %v1352
        %v1866 = vadd.f32 %v1822, %v1353
        %v1867 = vadd.f32 %v1822, %v1354
        %v1868 = vadd.f32 %v1822, %v1355
        %v1869 = vadd.f32 %v1822, %v1356
        %v1870 = vadd.f32 %v1822, %v1357
        %v1871 = vadd.f32 %v1822, %v1358
        %v1872 = vadd.f32 %v1822, %v1359
        %v1873 = vadd.f32 %v1822, %v1360
        %v1874 = vadd.f32 %v1822, %v1361
        %v1875 = vadd.f32 %v1822, %v1362
        %v1876 = vadd.f32 %v1822, %v1363
        %v1877 = vadd.f32 %v1822, %v1364
        %v1878 = vadd.f32 %v1822, %v1365
        %v1879 = vadd.f32 %v1822, %v1366
        %v1880 = vadd.f32 %v1822, %v1367
        %v1881 = vadd.f32 %v1822, %v1368
        %v1882 = vadd.f32 %v1822, %v1369
        %v1883 = vadd.f32 %v1822, %v1370
        %v1884 = vadd.f32 %v1822, %v1371
        %v1885 = vadd.f32 %v1822, %v1372
        %v1886 = vadd.f32 %v1822, %v1373
        %v1887 = vadd.f32 %v1822, %v1374
        %v1888 = vadd.f32 %v1822, %v1375
        %v1889 = vadd.f32 %v1822, %v1376
        %v1890 = vadd.f32 %v1822, %v1377
        %v1891 = vadd.f32 %v1822, %v1378
        %v1892 = vadd.f32 %v1822, %v1379
        %v1893 = vadd.f32 %v1822, %v1380
        %v1894 = vadd.f32 %v1822, %v1381
        %v1895 = vadd.f32 %v1822, %v1382
        %v1896 = vadd.f32 %v1822, %v1383
        %v1897 = vadd.f32 %v1822, %v1384
        %v1898 = vadd.f32 %v1822, %v1385
        %v1899 = vadd.f32 %v1822, %v1386
        %v1900 = vadd.f32 %v1822, %v1387
        %v1901 = vadd.f32 %v1822, %v1388
        %v1902 = vadd.f32 %v1822, %v1389
        %v1903 = vadd.f32 %v1822, %v1390
        %v1904 = vadd.f32 %v1822, %v1391
        %v1905 = vadd.f32 %v1822, %v1392
        %v1906 = vadd.f32 %v1822, %v1393
        %v1907 = vadd.f32 %v1822, %v1394
        %v1908 = vadd.f32 %v1822, %v1395
        %v1909 = vadd.f32 %v1822, %v1396
        %v1910 = vadd.f32 %v1822, %v1397
        %v1911 = vadd.f32 %v1822, %v1398
        %v1912 = vadd.f32 %v1822, %v1399
        %v1913 = vadd.f32 %v1822, %v1400
        %v1914 = vadd.f32 %v1822, %v1401
        %v1915 = vadd.f32 %v1822, %v1402
        %v1916 = vadd.f32 %v1822, %v1403
        %v1917 = vadd.f32 %v1822, %v1404
        %v1918 = vadd.f32 %v1822, %v1405
        %v1919 = vadd.f32 %v1822, %v1406
        %v1920 = vadd.f32 %v1822, %v1407
        %v1921 = vadd.f32 %v1822, %v1408
        %v1922 = vadd.f32 %v1822, %v1409
        %v1923 = vadd.f32 %v1822, %v1410
        %v1924 = vadd.f32 %v1822, %v1411
        %v1925 = vadd.f32 %v1822, %v1412
        %v1926 = vadd.f32 %v1822, %v1413
        %v1927 = vadd.f32 %v1822, %v1414
        %v1928 = vadd.f32 %v1822, %v1415
        %v1929 = vadd.f32 %v1822, %v1416
        %v1930 = vadd.f32 %v1822, %v1417
        %v1931 = vadd.f32 %v1822, %v1418
        %v1932 = vadd.f32 %v1822, %v1419
        %v1933 = vadd.f32 %v1822, %v1420
        %v1934 = vadd.f32 %v1822, %v1421
        %v1935 = vadd.f32 %v1822, %v1422
        %v1936 = vadd.f32 %v1822, %v1423
        %v1937 = vadd.f32 %v1822, %v1424
        %v1938 = vadd.f32 %v1822, %v1425
        %v1939 = vadd.f32 %v1822, %v1426
        %v1940 = vadd.f32 %v1822, %v1427
        %v1941 = vadd.f32 %v1822, %v1428
        %v1942 = vadd.f32 %v1822, %v1429
        %v1943 = vadd.f32 %v1822, %v1430
        %v1944 = vadd.f32 %v1822, %v1431
        %v1945 = vadd.f32 %v1822, %v1432
        %v1946 = vadd.f32 %v1822, %v1433
        %v1947 = vadd.f32 %v1822, %v1434
        %v1948 = vadd.f32 %v1822, %v1435
        %v1949 = vadd.f32 %v1822, %v1436
        %v1950 = vadd.f32 %v1822, %v1437
        %v1951 = vadd.f32 %v1822, %v1438
        %v1952 = vadd.f32 %v1822, %v1439
        %v1953 = vadd.f32 %v1822, %v1440
        %v1954 = vadd.f32 %v1822, %v1441
        %v1955 = vadd.f32 %v1822, %v1442
        %v1956 = vadd.f32 %v1822, %v1443
        %v1957 = vadd.f32 %v1822, %v1444
        %v1958 = vadd.f32 %v1822, %v1445
        %v1959 = vadd.f32 %v1822, %v1446
        %v1960 = vadd.f32 %v1822, %v1447
        %v1961 = vadd.f32 %v1822, %v1448
        %v1962 = vadd.f32 %v1822, %v1449
        %v1963 = vadd.f32 %v1822, %v1450
        %v1964 = vadd.f32 %v1822, %v1451
        %v1965 = vadd.f32 %v1822, %v1452
        %v1966 = vadd.f32 %v1822, %v1453
        %v1967 = vadd.f32 %v1822, %v1454
        %v1968 = vadd.f32 %v1822, %v1455
        %v1969 = vadd.f32 %v1822, %v1456
        %v1970 = vadd.f32 %v1822, %v1457
        %v1971 = vadd.f32 %v1822, %v1458
        %v1972 = vadd.f32 %v1822, %v1459
        %v1973 = vadd.f32 %v1822, %v1460
        %v1974 = vadd.f32 %v1822, %v1461
        %v1975 = vadd.f32 %v1822, %v1462
        %v1976 = vadd.f32 %v1822, %v1463
        %v1977 = vadd.f32 %v1822, %v1464
        %v1978 = vadd.f32 %v1822, %v1465
        %v1979 = vadd.f32 %v1822, %v1466
        %v1980 = vadd.f32 %v1822, %v1467
        %v1981 = vadd.f32 %v1822, %v1468
        %v1982 = vadd.f32 %v1822, %v1469
        %v1983 = vadd.f32 %v1822, %v1470
        %v1984 = vadd.f32 %v1822, %v1471
        %v1985 = vadd.f32 %v1822, %v1472
        %v1986 = vadd.f32 %v1822, %v1473
        %v1987 = vadd.f32 %v1822, %v1474
        %v1988 = vadd.f32 %v1822, %v1475
        %v1989 = vadd.f32 %v1822, %v1476
        %v1990 = vadd.f32 %v1822, %v1477
        %v1991 = vadd.f32 %v1822, %v1478
        %v1992 = vadd.f32 %v1822, %v1479
        %v1993 = vadd.f32 %v1822, %v1480
        %v1994 = vadd.f32 %v1822, %v1481
        %v1995 = vadd.f32 %v1822, %v1482
        %v1996 = vadd.f32 %v1822, %v1483
        %v1997 = vadd.f32 %v1822, %v1484
        %v1998 = vadd.f32 %v1822, %v1485
        %v1999 = vadd.f32 %v1822, %v1486
        %v2000 = vadd.f32 %v1822, %v1487
        %v2001 = vadd.f32 %v1822, %v1488
        %v2002 = vadd.f32 %v1822, %v1489
        %v2003 = vadd.f32 %v1822, %v1490
        %v2004 = vadd.f32 %v1822, %v1491
        %v2005 = vadd.f32 %v1822, %v1492
        %v2006 = vadd.f32 %v1822, %v1493
        %v2007 = vadd.f32 %v1822, %v1494
        %v2008 = vadd.f32 %v1822, %v1495
        %v2009 = vadd.f32 %v1822, %v1496
        %v2010 = vadd.f32 %v1822, %v1497
        %v2011 = vadd.f32 %v1822, %v1498
        %v2012 = vadd.f32 %v1822, %v1499
        %v2013 = vadd.f32 %v1822, %v1500
        %v2014 = vadd.f32 %v1822, %v1501
        %v2015 = vadd.f32 %v1822, %v1502
        %v2016 = vadd.f32 %v1822, %v1503
        %v2017 = vadd.f32 %v1822, %v1504
        %v2018 = vadd.f32 %v1822, %v1505
        %v2019 = vadd.f32 %v1822, %v1506
        %v2020 = vadd.f32 %v1822, %v1507
        %v2021 = vadd.f32 %v1822, %v1508
        %v2022 = vadd.f32 %v1822, %v1509
        %v2023 = vadd.f32 %v1822, %v1510
        %v2024 = vadd.f32 %v1822, %v1511
        %v2025 = vadd.f32 %v1822, %v1512
        %v2026 = vadd.f32 %v1822, %v1513
        %v2027 = vadd.f32 %v1822, %v1514
        %v2028 = vadd.f32 %v1822, %v1515
        %v2029 = vadd.f32 %v1822, %v1516
        %v2030 = vadd.f32 %v1822, %v1517
        %v2031 = vadd.f32 %v1822, %v1518
        %v2032 = vadd.f32 %v1822, %v1519
        %v2033 = vadd.f32 %v1822, %v1520
        %v2034 = vadd.f32 %v1822, %v1521
        %v2035 = vadd.f32 %v1822, %v1522
        %v2036 = vadd.f32 %v1822, %v1523
        %v2037 = vadd.f32 %v1822, %v1524
        %v2038 = vadd.f32 %v1822, %v1525
        %v2039 = vadd.f32 %v1822, %v1526
        %v2040 = vadd.f32 %v1822, %v1527
        %v2041 = vadd.f32 %v1822, %v1528
        %v2042 = vadd.f32 %v1822, %v1529
        %v2043 = vadd.f32 %v1822, %v1530
        %v2044 = vadd.f32 %v1822, %v1531
        %v2045 = vadd.f32 %v1822, %v1532
        %v2046 = vadd.f32 %v1822, %v1533
        %v2047 = vadd.f32 %v1822, %v1534
        %v2048 = vadd.f32 %v1822, %v1535
        %v2049 = vadd.f32 %v1822, %v1536
        %v2050 = vadd.f32 %v1822, %v1537
        %v2051 = vadd.f32 %v1822, %v1538
        %v2052 = vadd.f32 %v1822, %v1539
        %v2053 = vadd.f32 %v1822, %v1540
        %v2054 = vadd.f32 %v1822, %v1541
        %v2055 = vadd.f32 %v1822, %v1542
        %v2056 = vadd.f32 %v1822, %v1543
        %v2057 = vadd.f32 %v1822, %v1544
        %v2058 = vadd.f32 %v1822, %v1545
        %v2059 = vadd.f32 %v1822, %v1546
        %v2060 = vadd.f32 %v1822, %v1547
        %v2061 = vadd.f32 %v1822, %v1548
        %v2062 = vadd.f32 %v1822, %v1549
        %v2063 = vadd.f32 %v1822, %v1550
        %v2064 = vadd.f32 %v1822, %v1551
        %v2065 = vadd.f32 %v1822, %v1552
        %v2066 = vadd.f32 %v1822, %v1553
        %v2067 = vadd.f32 %v1822, %v1554
        %v2068 = vadd.f32 %v1822, %v1555
        %v2069 = vadd.f32 %v1822, %v1556
        %v2070 = vadd.f32 %v1822, %v1557
        %v2071 = vadd.f32 %v1822, %v1558
        %v2072 = vadd.f32 %v1822, %v1559
        %v2073 = vadd.f32 %v1822, %v1560
        %v2074 = vadd.f32 %v1822, %v1561
        %v2075 = vadd.f32 %v1822, %v1562
        %v2076 = vadd.f32 %v1822, %v1563
        %v2077 = vadd.f32 %v1822, %v1564
        %v2078 = vadd.f32 %v1822, %v1565
        %v2079 = vadd.f32 %v1822, %v1566
        %v2080 = vadd.f32 %v1822, %v1567
        %v2081 = vadd.f32 %v1822, %v1568
        %v2082 = vadd.f32 %v1822, %v1569
        %v2083 = vadd.f32 %v1822, %v1570
        %v2084 = vadd.f32 %v1822, %v1571
        %v2085 = vadd.f32 %v1822, %v1572
        %v2086 = vadd.f32 %v1822, %v1573
        %v2087 = vadd.f32 %v1822, %v1574
        %v2088 = vadd.f32 %v1822, %v1575
        %v2089 = vadd.f32 %v1822, %v1576
        %v2090 = vadd.f32 %v1822, %v1577
        %v2091 = vadd.f32 %v1822, %v1578
        %v2092 = vadd.f32 %v1822, %v1579
        %v2093 = vadd.f32 %v1822, %v1580
        %v2094 = vadd.f32 %v1822, %v1581
        %v2095 = vadd.f32 %v1822, %v1582
        %v2096 = vadd.f32 %v1822, %v1583
        %v2097 = vadd.f32 %v1822, %v1584
        %v2098 = vadd.f32 %v1822, %v1585
        %v2099 = vadd.f32 %v1822, %v1586
        %v2100 = vadd.f32 %v1822, %v1587
        %v2101 = vadd.f32 %v1822, %v1588
        %v2102 = vadd.f32 %v1822, %v1589
        %v2103 = vadd.f32 %v1822, %v1590
        %v2104 = vadd.f32 %v1822, %v1591
        %v2105 = vadd.f32 %v1822, %v1592
        %v2106 = vadd.f32 %v1822, %v1593
        %v2107 = vadd.f32 %v1822, %v1594
        %v2108 = vadd.f32 %v1822, %v1595
        %v2109 = vadd.f32 %v1822, %v1596
        %v2110 = vadd.f32 %v1822, %v1597
        %v2111 = vadd.f32 %v1822, %v1598
        %v2112 = vadd.f32 %v1822, %v1599
        %v2113 = vadd.f32 %v1822, %v1600
        %v2114 = vadd.f32 %v1822, %v1601
        %v2115 = vadd.f32 %v1822, %v1602
        %v2116 = vadd.f32 %v1822, %v1603
        %v2117 = vadd.f32 %v1822, %v1604
        %v2118 = vadd.f32 %v1822, %v1605
        %v2119 = vadd.f32 %v1822, %v1606
        %v2120 = vadd.f32 %v1822, %v1607
        %v2121 = vadd.f32 %v1822, %v1608
        %v2122 = vadd.f32 %v1822, %v1609
        %v2123 = vadd.f32 %v1822, %v1610
        %v2124 = vadd.f32 %v1822, %v1611
        %v2125 = vadd.f32 %v1822, %v1612
        %v2126 = vadd.f32 %v1822, %v1613
        %v2127 = vadd.f32 %v1822, %v1614
        %v2128 = vadd.f32 %v1822, %v1615
        %v2129 = vadd.f32 %v1822, %v1616
        %v2130 = vadd.f32 %v1822, %v1617
        %v2131 = vadd.f32 %v1822, %v1618
        %v2132 = vadd.f32 %v1822, %v1619
        %v2133 = vadd.f32 %v1822, %v1620
        %v2134 = vadd.f32 %v1822, %v1621
        %v2135 = vadd.f32 %v1822, %v1622
        %v2136 = vadd.f32 %v1822, %v1623
        %v2137 = vadd.f32 %v1822, %v1624
        %v2138 = vadd.f32 %v1822, %v1625
        %v2139 = vadd.f32 %v1822, %v1626
        %v2140 = vadd.f32 %v1822, %v1627
        %v2141 = vadd.f32 %v1822, %v1628
        %v2142 = vadd.f32 %v1822, %v1629
        %v2143 = vadd.f32 %v1822, %v1630
        %v2144 = vadd.f32 %v1822, %v1631
        %v2145 = vadd.f32 %v1822, %v1632
        %v2146 = vadd.f32 %v1822, %v1633
        %v2147 = vadd.f32 %v1822, %v1634
        %v2148 = vadd.f32 %v1822, %v1635
        %v2149 = vadd.f32 %v1822, %v1636
        %v2150 = vadd.f32 %v1822, %v1637
        %v2151 = vadd.f32 %v1822, %v1638
        %v2152 = vadd.f32 %v1822, %v1639
        %v2153 = vadd.f32 %v1822, %v1640
        %v2154 = vadd.f32 %v1822, %v1641
        %v2155 = vadd.f32 %v1822, %v1642
        %v2156 = vadd.f32 %v1822, %v1643
        %v2157 = vadd.f32 %v1822, %v1644
        %v2158 = vadd.f32 %v1822, %v1645
        %v2159 = vadd.f32 %v1822, %v1646
        %v2160 = vadd.f32 %v1822, %v1647
        %v2161 = vadd.f32 %v1822, %v1648
        %v2162 = vadd.f32 %v1822, %v1649
        %v2163 = vadd.f32 %v1822, %v1650
        %v2164 = vadd.f32 %v1822, %v1651
        %v2165 = vadd.f32 %v1822, %v1652
        %v2166 = vadd.f32 %v1822, %v1653
        %v2167 = vadd.f32 %v1822, %v1654
        %v2168 = vadd.f32 %v1822, %v1655
        %v2169 = vadd.f32 %v1822, %v1656
        %v2170 = vadd.f32 %v1822, %v1657
        %v2171 = vadd.f32 %v1822, %v1658
        %v2172 = vadd.f32 %v1822, %v1659
        %v2173 = vadd.f32 %v1822, %v1660
        %v2174 = vadd.f32 %v1822, %v1661
        %v2175 = vadd.f32 %v1822, %v1662
        %v2176 = vadd.f32 %v1822, %v1663
        %v2177 = vadd.f32 %v1822, %v1664
        %v2178 = vadd.f32 %v1822, %v1665
        %v2179 = vadd.f32 %v1822, %v1666
        %v2180 = vadd.f32 %v1822, %v1667
        %v2181 = vadd.f32 %v1822, %v1668
        %v2182 = vadd.f32 %v1822, %v1669
        %v2183 = vadd.f32 %v1822, %v1670
        %v2184 = vadd.f32 %v1822, %v1671
        %v2185 = vadd.f32 %v1822, %v1672
        %v2186 = vadd.f32 %v1822, %v1673
        %v2187 = vadd.f32 %v1822, %v1674
        %v2188 = vadd.f32 %v1822, %v1675
        %v2189 = vadd.f32 %v1822, %v1676
        %v2190 = vadd.f32 %v1822, %v1677
        %v2191 = vadd.f32 %v1822, %v1678
        %v2192 = vadd.f32 %v1822, %v1679
        %v2193 = vadd.f32 %v1822, %v1680
        %v2194 = vadd.f32 %v1822, %v1681
        %v2195 = vadd.f32 %v1822, %v1682
        %v2196 = vadd.f32 %v1822, %v1683
        %v2197 = vadd.f32 %v1822, %v1684
        %v2198 = vadd.f32 %v1822, %v1685
        %v2199 = vadd.f32 %v1822, %v1686
        %v2200 = vadd.f32 %v1822, %v1687
        %v2201 = vadd.f32 %v1822, %v1688
        %v2202 = vadd.f32 %v1822, %v1689
        %v2203 = vadd.f32 %v1822, %v1690
        %v2204 = vadd.f32 %v1822, %v1691
        %v2205 = vadd.f32 %v1822, %v1692
        %v2206 = vadd.f32 %v1822, %v1693
        %v2207 = vadd.f32 %v1822, %v1694
        %v2208 = vadd.f32 %v1822, %v1695
        %v2209 = vadd.f32 %v1822, %v1696
        %v2210 = vadd.f32 %v1822, %v1697
        %v2211 = vadd.f32 %v1822, %v1698
        %v2212 = vadd.f32 %v1822, %v1699
        %v2213 = vadd.f32 %v1822, %v1700
        %v2214 = vadd.f32 %v1822, %v1701
        %v2215 = vadd.f32 %v1822, %v1702
        %v2216 = vadd.f32 %v1822, %v1703
        %v2217 = vadd.f32 %v1822, %v1704
        %v2218 = vadd.f32 %v1822, %v1705
        %v2219 = vadd.f32 %v1822, %v1706
        %v2220 = vadd.f32 %v1822, %v1707
        %v2221 = vadd.f32 %v1822, %v1708
        %v2222 = vadd.f32 %v1822, %v1709
        %v2223 = vadd.f32 %v1822, %v1710
        %v2224 = vadd.f32 %v1822, %v1711
        %v2225 = vadd.f32 %v1822, %v1712
        %v2226 = vadd.f32 %v1822, %v1713
        %v2227 = vadd.f32 %v1822, %v1714
        %v2228 = vadd.f32 %v1822, %v1715
        %v2229 = vadd.f32 %v1822, %v1716
        %v2230 = vadd.f32 %v1822, %v1717
        %v2231 = vadd.f32 %v1822, %v1718
        %v2232 = vadd.f32 %v1822, %v1719
        %v2233 = vadd.f32 %v1822, %v1720
        %v2234 = vadd.f32 %v1822, %v1721
        %v2235 = vadd.f32 %v1822, %v1722
        %v2236 = vadd.f32 %v1822, %v1723
        %v2237 = vadd.f32 %v1822, %v1724
        %v2238 = vadd.f32 %v1822, %v1725
        %v2239 = vadd.f32 %v1822, %v1726
        %v2240 = vadd.f32 %v1822, %v1727
        %v2241 = vadd.f32 %v1822, %v1728
        %v2242 = vadd.f32 %v1822, %v1729
        %v2243 = vadd.f32 %v1822, %v1730
        %v2244 = vadd.f32 %v1822, %v1731
        %v2245 = vadd.f32 %v1822, %v1732
        %v2246 = vadd.f32 %v1822, %v1733
        %v2247 = vadd.f32 %v1822, %v1734
        %v2248 = vadd.f32 %v1822, %v1735
        %v2249 = vadd.f32 %v1822, %v1736
        %v2250 = vadd.f32 %v1822, %v1737
        %v2251 = vadd.f32 %v1822, %v1738
        %v2252 = vadd.f32 %v1822, %v1739
        %v2253 = vadd.f32 %v1822, %v1740
        %v2254 = vadd.f32 %v1822, %v1741
        %v2255 = vadd.f32 %v1822, %v1742
        %v2256 = vadd.f32 %v1822, %v1743
        %v2257 = vadd.f32 %v1822, %v1744
        %v2258 = vadd.f32 %v1822, %v1745
        %v2259 = vadd.f32 %v1822, %v1746
        %v2260 = vadd.f32 %v1822, %v1747
        %v2261 = vadd.f32 %v1822, %v1748
        %v2262 = vadd.f32 %v1822, %v1749
        %v2263 = vadd.f32 %v1822, %v1750
        %v2264 = vadd.f32 %v1822, %v1751
        %v2265 = vadd.f32 %v1822, %v1752
        %v2266 = vadd.f32 %v1822, %v1753
        %v2267 = vadd.f32 %v1822, %v1754
        %v2268 = vadd.f32 %v1822, %v1755
        %v2269 = vadd.f32 %v1822, %v1756
        %v2270 = vadd.f32 %v1822, %v1757
        %v2271 = vadd.f32 %v1822, %v1758
        %v2272 = vadd.f32 %v1822, %v1759
        %v2273 = vadd.f32 %v1822, %v1760
        %v2274 = vadd.f32 %v1822, %v1761
        %v2275 = vadd.f32 %v1822, %v1762
        %v2276 = vadd.f32 %v1822, %v1763
        %v2277 = vadd.f32 %v1822, %v1764
        %v2278 = vadd.f32 %v1822, %v1765
        %v2279 = vadd.f32 %v1822, %v1766
        %v2280 = vadd.f32 %v1822, %v1767
        %v2281 = vadd.f32 %v1822, %v1768
        %v2282 = vadd.f32 %v1822, %v1769
        %v2283 = vadd.f32 %v1822, %v1770
        %v2284 = vadd.f32 %v1822, %v1771
        %v2285 = vadd.f32 %v1822, %v1772
        %v2286 = vadd.f32 %v1822, %v1773
        %v2287 = vadd.f32 %v1822, %v1774
        %v2288 = vadd.f32 %v1822, %v1775
        %v2289 = vadd.f32 %v1822, %v1776
        %v2290 = vadd.f32 %v1822, %v1777
        %v2291 = vadd.f32 %v1822, %v1778
        %v2292 = vadd.f32 %v1822, %v1779
        %v2293 = vadd.f32 %v1822, %v1780
        %v2294 = vadd.f32 %v1822, %v1781
        %v2295 = vadd.f32 %v1822, %v1782
        %v2296 = vadd.f32 %v1822, %v1783
        %v2297 = vadd.f32 %v1822, %v1784
        %v2298 = vadd.f32 %v1822, %v1785
        %v2299 = vadd.f32 %v1822, %v1786
        %v2300 = vadd.f32 %v1822, %v1787
        %v2301 = vadd.f32 %v1822, %v1788
        %v2302 = vadd.f32 %v1822, %v1789
        %v2303 = vadd.f32 %v1822, %v1790
        %v2304 = vadd.f32 %v1822, %v1791
        %v2305 = vadd.f32 %v1822, %v1792
        %v2306 = vadd.f32 %v1822, %v1793
        %v2307 = vadd.f32 %v1822, %v1794
        %v2308 = vadd.f32 %v1822, %v1795
        %v2309 = vadd.f32 %v1822, %v1796
        %v2310 = vadd.f32 %v1822, %v1797
        %v2311 = vadd.f32 %v1822, %v1798
        %v2312 = vadd.f32 %v1822, %v1799
        %v2313 = vadd.f32 %v1822, %v1800
        %v2314 = vadd.f32 %v1822, %v1801
        %v2315 = vadd.f32 %v1822, %v1802
        %v2316 = vadd.f32 %v1822, %v1803
        %v2317 = vadd.f32 %v1822, %v1804
        %v2318 = vadd.f32 %v1822, %v1805
        %v2319 = vadd.f32 %v1822, %v1806
        %v2320 = vadd.f32 %v1822, %v1807
        %v2321 = vadd.f32 %v1822, %v1808
        %v2322 = vadd.f32 %v1822, %v1809
        %v2323 = vadd.f32 %v1822, %v1810
        %v2324 = vadd.f32 %v1822, %v1811
        %v2325 = vadd.f32 %v1822, %v1812
        %v2326 = vadd.f32 %v1822, %v1813
        %v2327 = vadd.f32 %v1822, %v1814
        %v2328 = vadd.f32 %v1822, %v1815
        %v2329 = vadd.f32 %v1822, %v1816
        %v2330 = vadd.f32 %v1822, %v1817
        %v2331 = vadd.f32 %v1822, %v1818
        %v2332 = vadd.f32 %v1822, %v1819
        %v2333 = vadd.f32 %v1822, %v1820
        %v2334 = vadd.f32 %v1822, %v1821
        %v2335 = vmul.f32 %v797, %v1823
        %v2336 = vmul.f32 %v798, %v1824
        %v2337 = vmul.f32 %v799, %v1825
        %v2338 = vmul.f32 %v800, %v1826
        %v2339 = vmul.f32 %v801, %v1827
        %v2340 = vmul.f32 %v802, %v1828
        %v2341 = vmul.f32 %v803, %v1829
        %v2342 = vmul.f32 %v804, %v1830
        %v2343 = vmul.f32 %v805, %v1831
        %v2344 = vmul.f32 %v806, %v1832
        %v2345 = vmul.f32 %v807, %v1833
        %v2346 = vmul.f32 %v808, %v1834
        %v2347 = vmul.f32 %v809, %v1835
        %v2348 = vmul.f32 %v810, %v1836
        %v2349 = vmul.f32 %v811, %v1837
        %v2350 = vmul.f32 %v812, %v1838
        %v2351 = vmul.f32 %v813, %v1839
        %v2352 = vmul.f32 %v814, %v1840
        %v2353 = vmul.f32 %v815, %v1841
        %v2354 = vmul.f32 %v816, %v1842
        %v2355 = vmul.f32 %v817, %v1843
        %v2356 = vmul.f32 %v818, %v1844
        %v2357 = vmul.f32 %v819, %v1845
        %v2358 = vmul.f32 %v820, %v1846
        %v2359 = vmul.f32 %v821, %v1847
        %v2360 = vmul.f32 %v822, %v1848
        %v2361 = vmul.f32 %v823, %v1849
        %v2362 = vmul.f32 %v824, %v1850
        %v2363 = vmul.f32 %v825, %v1851
        %v2364 = vmul.f32 %v826, %v1852
        %v2365 = vmul.f32 %v827, %v1853
        %v2366 = vmul.f32 %v828, %v1854
        %v2367 = vmul.f32 %v829, %v1855
        %v2368 = vmul.f32 %v830, %v1856
        %v2369 = vmul.f32 %v831, %v1857
        %v2370 = vmul.f32 %v832, %v1858
        %v2371 = vmul.f32 %v833, %v1859
        %v2372 = vmul.f32 %v834, %v1860
        %v2373 = vmul.f32 %v835, %v1861
        %v2374 = vmul.f32 %v836, %v1862
        %v2375 = vmul.f32 %v837, %v1863
        %v2376 = vmul.f32 %v838, %v1864
        %v2377 = vmul.f32 %v839, %v1865
        %v2378 = vmul.f32 %v840, %v1866
        %v2379 = vmul.f32 %v841, %v1867
        %v2380 = vmul.f32 %v842, %v1868
        %v2381 = vmul.f32 %v843, %v1869
        %v2382 = vmul.f32 %v844, %v1870
        %v2383 = vmul.f32 %v845, %v1871
        %v2384 = vmul.f32 %v846, %v1872
        %v2385 = vmul.f32 %v847, %v1873
        %v2386 = vmul.f32 %v848, %v1874
        %v2387 = vmul.f32 %v849, %v1875
        %v2388 = vmul.f32 %v850, %v1876
        %v2389 = vmul.f32 %v851, %v1877
        %v2390 = vmul.f32 %v852, %v1878
        %v2391 = vmul.f32 %v853, %v1879
        %v2392 = vmul.f32 %v854, %v1880
        %v2393 = vmul.f32 %v855, %v1881
        %v2394 = vmul.f32 %v856, %v1882
        %v2395 = vmul.f32 %v857, %v1883
        %v2396 = vmul.f32 %v858, %v1884
        %v2397 = vmul.f32 %v859, %v1885
        %v2398 = vmul.f32 %v860, %v1886
        %v2399 = vmul.f32 %v861, %v1887
        %v2400 = vmul.f32 %v862, %v1888
        %v2401 = vmul.f32 %v863, %v1889
        %v2402 = vmul.f32 %v864, %v1890
        %v2403 = vmul.f32 %v865, %v1891
        %v2404 = vmul.f32 %v866, %v1892
        %v2405 = vmul.f32 %v867, %v1893
        %v2406 = vmul.f32 %v868, %v1894
        %v2407 = vmul.f32 %v869, %v1895
        %v2408 = vmul.f32 %v870, %v1896
        %v2409 = vmul.f32 %v871, %v1897
        %v2410 = vmul.f32 %v872, %v1898
        %v2411 = vmul.f32 %v873, %v1899
        %v2412 = vmul.f32 %v874, %v1900
        %v2413 = vmul.f32 %v875, %v1901
        %v2414 = vmul.f32 %v876, %v1902
        %v2415 = vmul.f32 %v877, %v1903
        %v2416 = vmul.f32 %v878, %v1904
        %v2417 = vmul.f32 %v879, %v1905
        %v2418 = vmul.f32 %v880, %v1906
        %v2419 = vmul.f32 %v881, %v1907
        %v2420 = vmul.f32 %v882, %v1908
        %v2421 = vmul.f32 %v883, %v1909
        %v2422 = vmul.f32 %v884, %v1910
        %v2423 = vmul.f32 %v885, %v1911
        %v2424 = vmul.f32 %v886, %v1912
        %v2425 = vmul.f32 %v887, %v1913
        %v2426 = vmul.f32 %v888, %v1914
        %v2427 = vmul.f32 %v889, %v1915
        %v2428 = vmul.f32 %v890, %v1916
        %v2429 = vmul.f32 %v891, %v1917
        %v2430 = vmul.f32 %v892, %v1918
        %v2431 = vmul.f32 %v893, %v1919
        %v2432 = vmul.f32 %v894, %v1920
        %v2433 = vmul.f32 %v895, %v1921
        %v2434 = vmul.f32 %v896, %v1922
        %v2435 = vmul.f32 %v897, %v1923
        %v2436 = vmul.f32 %v898, %v1924
        %v2437 = vmul.f32 %v899, %v1925
        %v2438 = vmul.f32 %v900, %v1926
        %v2439 = vmul.f32 %v901, %v1927
        %v2440 = vmul.f32 %v902, %v1928
        %v2441 = vmul.f32 %v903, %v1929
        %v2442 = vmul.f32 %v904, %v1930
        %v2443 = vmul.f32 %v905, %v1931
        %v2444 = vmul.f32 %v906, %v1932
        %v2445 = vmul.f32 %v907, %v1933
        %v2446 = vmul.f32 %v908, %v1934
        %v2447 = vmul.f32 %v909, %v1935
        %v2448 = vmul.f32 %v910, %v1936
        %v2449 = vmul.f32 %v911, %v1937
        %v2450 = vmul.f32 %v912, %v1938
        %v2451 = vmul.f32 %v913, %v1939
        %v2452 = vmul.f32 %v914, %v1940
        %v2453 = vmul.f32 %v915, %v1941
        %v2454 = vmul.f32 %v916, %v1942
        %v2455 = vmul.f32 %v917, %v1943
        %v2456 = vmul.f32 %v918, %v1944
        %v2457 = vmul.f32 %v919, %v1945
        %v2458 = vmul.f32 %v920, %v1946
        %v2459 = vmul.f32 %v921, %v1947
        %v2460 = vmul.f32 %v922, %v1948
        %v2461 = vmul.f32 %v923, %v1949
        %v2462 = vmul.f32 %v924, %v1950
        %v2463 = vmul.f32 %v925, %v1951
        %v2464 = vmul.f32 %v926, %v1952
        %v2465 = vmul.f32 %v927, %v1953
        %v2466 = vmul.f32 %v928, %v1954
        %v2467 = vmul.f32 %v929, %v1955
        %v2468 = vmul.f32 %v930, %v1956
        %v2469 = vmul.f32 %v931, %v1957
        %v2470 = vmul.f32 %v932, %v1958
        %v2471 = vmul.f32 %v933, %v1959
        %v2472 = vmul.f32 %v934, %v1960
        %v2473 = vmul.f32 %v935, %v1961
        %v2474 = vmul.f32 %v936, %v1962
        %v2475 = vmul.f32 %v937, %v1963
        %v2476 = vmul.f32 %v938, %v1964
        %v2477 = vmul.f32 %v939, %v1965
        %v2478 = vmul.f32 %v940, %v1966
        %v2479 = vmul.f32 %v941, %v1967
        %v2480 = vmul.f32 %v942, %v1968
        %v2481 = vmul.f32 %v943, %v1969
        %v2482 = vmul.f32 %v944, %v1970
        %v2483 = vmul.f32 %v945, %v1971
        %v2484 = vmul.f32 %v946, %v1972
        %v2485 = vmul.f32 %v947, %v1973
        %v2486 = vmul.f32 %v948, %v1974
        %v2487 = vmul.f32 %v949, %v1975
        %v2488 = vmul.f32 %v950, %v1976
        %v2489 = vmul.f32 %v951, %v1977
        %v2490 = vmul.f32 %v952, %v1978
        %v2491 = vmul.f32 %v953, %v1979
        %v2492 = vmul.f32 %v954, %v1980
        %v2493 = vmul.f32 %v955, %v1981
        %v2494 = vmul.f32 %v956, %v1982
        %v2495 = vmul.f32 %v957, %v1983
        %v2496 = vmul.f32 %v958, %v1984
        %v2497 = vmul.f32 %v959, %v1985
        %v2498 = vmul.f32 %v960, %v1986
        %v2499 = vmul.f32 %v961, %v1987
        %v2500 = vmul.f32 %v962, %v1988
        %v2501 = vmul.f32 %v963, %v1989
        %v2502 = vmul.f32 %v964, %v1990
        %v2503 = vmul.f32 %v965, %v1991
        %v2504 = vmul.f32 %v966, %v1992
        %v2505 = vmul.f32 %v967, %v1993
        %v2506 = vmul.f32 %v968, %v1994
        %v2507 = vmul.f32 %v969, %v1995
        %v2508 = vmul.f32 %v970, %v1996
        %v2509 = vmul.f32 %v971, %v1997
        %v2510 = vmul.f32 %v972, %v1998
        %v2511 = vmul.f32 %v973, %v1999
        %v2512 = vmul.f32 %v974, %v2000
        %v2513 = vmul.f32 %v975, %v2001
        %v2514 = vmul.f32 %v976, %v2002
        %v2515 = vmul.f32 %v977, %v2003
        %v2516 = vmul.f32 %v978, %v2004
        %v2517 = vmul.f32 %v979, %v2005
        %v2518 = vmul.f32 %v980, %v2006
        %v2519 = vmul.f32 %v981, %v2007
        %v2520 = vmul.f32 %v982, %v2008
        %v2521 = vmul.f32 %v983, %v2009
        %v2522 = vmul.f32 %v984, %v2010
        %v2523 = vmul.f32 %v985, %v2011
        %v2524 = vmul.f32 %v986, %v2012
        %v2525 = vmul.f32 %v987, %v2013
        %v2526 = vmul.f32 %v988, %v2014
        %v2527 = vmul.f32 %v989, %v2015
        %v2528 = vmul.f32 %v990, %v2016
        %v2529 = vmul.f32 %v991, %v2017
        %v2530 = vmul.f32 %v992, %v2018
        %v2531 = vmul.f32 %v993, %v2019
        %v2532 = vmul.f32 %v994, %v2020
        %v2533 = vmul.f32 %v995, %v2021
        %v2534 = vmul.f32 %v996, %v2022
        %v2535 = vmul.f32 %v997, %v2023
        %v2536 = vmul.f32 %v998, %v2024
        %v2537 = vmul.f32 %v999, %v2025
        %v2538 = vmul.f32 %v1000, %v2026
        %v2539 = vmul.f32 %v1001, %v2027
        %v2540 = vmul.f32 %v1002, %v2028
        %v2541 = vmul.f32 %v1003, %v2029
        %v2542 = vmul.f32 %v1004, %v2030
        %v2543 = vmul.f32 %v1005, %v2031
        %v2544 = vmul.f32 %v1006, %v2032
        %v2545 = vmul.f32 %v1007, %v2033
        %v2546 = vmul.f32 %v1008, %v2034
        %v2547 = vmul.f32 %v1009, %v2035
        %v2548 = vmul.f32 %v1010, %v2036
        %v2549 = vmul.f32 %v1011, %v2037
        %v2550 = vmul.f32 %v1012, %v2038
        %v2551 = vmul.f32 %v1013, %v2039
        %v2552 = vmul.f32 %v1014, %v2040
        %v2553 = vmul.f32 %v1015, %v2041
        %v2554 = vmul.f32 %v1016, %v2042
        %v2555 = vmul.f32 %v1017, %v2043
        %v2556 = vmul.f32 %v1018, %v2044
        %v2557 = vmul.f32 %v1019, %v2045
        %v2558 = vmul.f32 %v1020, %v2046
        %v2559 = vmul.f32 %v1021, %v2047
        %v2560 = vmul.f32 %v1022, %v2048
        %v2561 = vmul.f32 %v1023, %v2049
        %v2562 = vmul.f32 %v1024, %v2050
        %v2563 = vmul.f32 %v1025, %v2051
        %v2564 = vmul.f32 %v1026, %v2052
        %v2565 = vmul.f32 %v1027, %v2053
        %v2566 = vmul.f32 %v1028, %v2054
        %v2567 = vmul.f32 %v1029, %v2055
        %v2568 = vmul.f32 %v1030, %v2056
        %v2569 = vmul.f32 %v1031, %v2057
        %v2570 = vmul.f32 %v1032, %v2058
        %v2571 = vmul.f32 %v1033, %v2059
        %v2572 = vmul.f32 %v1034, %v2060
        %v2573 = vmul.f32 %v1035, %v2061
        %v2574 = vmul.f32 %v1036, %v2062
        %v2575 = vmul.f32 %v1037, %v2063
        %v2576 = vmul.f32 %v1038, %v2064
        %v2577 = vmul.f32 %v1039, %v2065
        %v2578 = vmul.f32 %v1040, %v2066
        %v2579 = vmul.f32 %v1041, %v2067
        %v2580 = vmul.f32 %v1042, %v2068
        %v2581 = vmul.f32 %v1043, %v2069
        %v2582 = vmul.f32 %v1044, %v2070
        %v2583 = vmul.f32 %v1045, %v2071
        %v2584 = vmul.f32 %v1046, %v2072
        %v2585 = vmul.f32 %v1047, %v2073
        %v2586 = vmul.f32 %v1048, %v2074
        %v2587 = vmul.f32 %v1049, %v2075
        %v2588 = vmul.f32 %v1050, %v2076
        %v2589 = vmul.f32 %v1051, %v2077
        %v2590 = vmul.f32 %v1052, %v2078
        %v2591 = vmul.f32 %v1053, %v2079
        %v2592 = vmul.f32 %v1054, %v2080
        %v2593 = vmul.f32 %v1055, %v2081
        %v2594 = vmul.f32 %v1056, %v2082
        %v2595 = vmul.f32 %v1057, %v2083
        %v2596 = vmul.f32 %v1058, %v2084
        %v2597 = vmul.f32 %v1059, %v2085
        %v2598 = vmul.f32 %v1060, %v2086
        %v2599 = vmul.f32 %v1061, %v2087
        %v2600 = vmul.f32 %v1062, %v2088
        %v2601 = vmul.f32 %v1063, %v2089
        %v2602 = vmul.f32 %v1064, %v2090
        %v2603 = vmul.f32 %v1065, %v2091
        %v2604 = vmul.f32 %v1066, %v2092
        %v2605 = vmul.f32 %v1067, %v2093
        %v2606 = vmul.f32 %v1068, %v2094
        %v2607 = vmul.f32 %v1069, %v2095
        %v2608 = vmul.f32 %v1070, %v2096
        %v2609 = vmul.f32 %v1071, %v2097
        %v2610 = vmul.f32 %v1072, %v2098
        %v2611 = vmul.f32 %v1073, %v2099
        %v2612 = vmul.f32 %v1074, %v2100
        %v2613 = vmul.f32 %v1075, %v2101
        %v2614 = vmul.f32 %v1076, %v2102
        %v2615 = vmul.f32 %v1077, %v2103
        %v2616 = vmul.f32 %v1078, %v2104
        %v2617 = vmul.f32 %v1079, %v2105
        %v2618 = vmul.f32 %v1080, %v2106
        %v2619 = vmul.f32 %v1081, %v2107
        %v2620 = vmul.f32 %v1082, %v2108
        %v2621 = vmul.f32 %v1083, %v2109
        %v2622 = vmul.f32 %v1084, %v2110
        %v2623 = vmul.f32 %v1085, %v2111
        %v2624 = vmul.f32 %v1086, %v2112
        %v2625 = vmul.f32 %v1087, %v2113
        %v2626 = vmul.f32 %v1088, %v2114
        %v2627 = vmul.f32 %v1089, %v2115
        %v2628 = vmul.f32 %v1090, %v2116
        %v2629 = vmul.f32 %v1091, %v2117
        %v2630 = vmul.f32 %v1092, %v2118
        %v2631 = vmul.f32 %v1093, %v2119
        %v2632 = vmul.f32 %v1094, %v2120
        %v2633 = vmul.f32 %v1095, %v2121
        %v2634 = vmul.f32 %v1096, %v2122
        %v2635 = vmul.f32 %v1097, %v2123
        %v2636 = vmul.f32 %v1098, %v2124
        %v2637 = vmul.f32 %v1099, %v2125
        %v2638 = vmul.f32 %v1100, %v2126
        %v2639 = vmul.f32 %v1101, %v2127
        %v2640 = vmul.f32 %v1102, %v2128
        %v2641 = vmul.f32 %v1103, %v2129
        %v2642 = vmul.f32 %v1104, %v2130
        %v2643 = vmul.f32 %v1105, %v2131
        %v2644 = vmul.f32 %v1106, %v2132
        %v2645 = vmul.f32 %v1107, %v2133
        %v2646 = vmul.f32 %v1108, %v2134
        %v2647 = vmul.f32 %v1109, %v2135
        %v2648 = vmul.f32 %v1110, %v2136
        %v2649 = vmul.f32 %v1111, %v2137
        %v2650 = vmul.f32 %v1112, %v2138
        %v2651 = vmul.f32 %v1113, %v2139
        %v2652 = vmul.f32 %v1114, %v2140
        %v2653 = vmul.f32 %v1115, %v2141
        %v2654 = vmul.f32 %v1116, %v2142
        %v2655 = vmul.f32 %v1117, %v2143
        %v2656 = vmul.f32 %v1118, %v2144
        %v2657 = vmul.f32 %v1119, %v2145
        %v2658 = vmul.f32 %v1120, %v2146
        %v2659 = vmul.f32 %v1121, %v2147
        %v2660 = vmul.f32 %v1122, %v2148
        %v2661 = vmul.f32 %v1123, %v2149
        %v2662 = vmul.f32 %v1124, %v2150
        %v2663 = vmul.f32 %v1125, %v2151
        %v2664 = vmul.f32 %v1126, %v2152
        %v2665 = vmul.f32 %v1127, %v2153
        %v2666 = vmul.f32 %v1128, %v2154
        %v2667 = vmul.f32 %v1129, %v2155
        %v2668 = vmul.f32 %v1130, %v2156
        %v2669 = vmul.f32 %v1131, %v2157
        %v2670 = vmul.f32 %v1132, %v2158
        %v2671 = vmul.f32 %v1133, %v2159
        %v2672 = vmul.f32 %v1134, %v2160
        %v2673 = vmul.f32 %v1135, %v2161
        %v2674 = vmul.f32 %v1136, %v2162
        %v2675 = vmul.f32 %v1137, %v2163
        %v2676 = vmul.f32 %v1138, %v2164
        %v2677 = vmul.f32 %v1139, %v2165
        %v2678 = vmul.f32 %v1140, %v2166
        %v2679 = vmul.f32 %v1141, %v2167
        %v2680 = vmul.f32 %v1142, %v2168
        %v2681 = vmul.f32 %v1143, %v2169
        %v2682 = vmul.f32 %v1144, %v2170
        %v2683 = vmul.f32 %v1145, %v2171
        %v2684 = vmul.f32 %v1146, %v2172
        %v2685 = vmul.f32 %v1147, %v2173
        %v2686 = vmul.f32 %v1148, %v2174
        %v2687 = vmul.f32 %v1149, %v2175
        %v2688 = vmul.f32 %v1150, %v2176
        %v2689 = vmul.f32 %v1151, %v2177
        %v2690 = vmul.f32 %v1152, %v2178
        %v2691 = vmul.f32 %v1153, %v2179
        %v2692 = vmul.f32 %v1154, %v2180
        %v2693 = vmul.f32 %v1155, %v2181
        %v2694 = vmul.f32 %v1156, %v2182
        %v2695 = vmul.f32 %v1157, %v2183
        %v2696 = vmul.f32 %v1158, %v2184
        %v2697 = vmul.f32 %v1159, %v2185
        %v2698 = vmul.f32 %v1160, %v2186
        %v2699 = vmul.f32 %v1161, %v2187
        %v2700 = vmul.f32 %v1162, %v2188
        %v2701 = vmul.f32 %v1163, %v2189
        %v2702 = vmul.f32 %v1164, %v2190
        %v2703 = vmul.f32 %v1165, %v2191
        %v2704 = vmul.f32 %v1166, %v2192
        %v2705 = vmul.f32 %v1167, %v2193
        %v2706 = vmul.f32 %v1168, %v2194
        %v2707 = vmul.f32 %v1169, %v2195
        %v2708 = vmul.f32 %v1170, %v2196
        %v2709 = vmul.f32 %v1171, %v2197
        %v2710 = vmul.f32 %v1172, %v2198
        %v2711 = vmul.f32 %v1173, %v2199
        %v2712 = vmul.f32 %v1174, %v2200
        %v2713 = vmul.f32 %v1175, %v2201
        %v2714 = vmul.f32 %v1176, %v2202
        %v2715 = vmul.f32 %v1177, %v2203
        %v2716 = vmul.f32 %v1178, %v2204
        %v2717 = vmul.f32 %v1179, %v2205
        %v2718 = vmul.f32 %v1180, %v2206
        %v2719 = vmul.f32 %v1181, %v2207
        %v2720 = vmul.f32 %v1182, %v2208
        %v2721 = vmul.f32 %v1183, %v2209
        %v2722 = vmul.f32 %v1184, %v2210
        %v2723 = vmul.f32 %v1185, %v2211
        %v2724 = vmul.f32 %v1186, %v2212
        %v2725 = vmul.f32 %v1187, %v2213
        %v2726 = vmul.f32 %v1188, %v2214
        %v2727 = vmul.f32 %v1189, %v2215
        %v2728 = vmul.f32 %v1190, %v2216
        %v2729 = vmul.f32 %v1191, %v2217
        %v2730 = vmul.f32 %v1192, %v2218
        %v2731 = vmul.f32 %v1193, %v2219
        %v2732 = vmul.f32 %v1194, %v2220
        %v2733 = vmul.f32 %v1195, %v2221
        %v2734 = vmul.f32 %v1196, %v2222
        %v2735 = vmul.f32 %v1197, %v2223
        %v2736 = vmul.f32 %v1198, %v2224
        %v2737 = vmul.f32 %v1199, %v2225
        %v2738 = vmul.f32 %v1200, %v2226
        %v2739 = vmul.f32 %v1201, %v2227
        %v2740 = vmul.f32 %v1202, %v2228
        %v2741 = vmul.f32 %v1203, %v2229
        %v2742 = vmul.f32 %v1204, %v2230
        %v2743 = vmul.f32 %v1205, %v2231
        %v2744 = vmul.f32 %v1206, %v2232
        %v2745 = vmul.f32 %v1207, %v2233
        %v2746 = vmul.f32 %v1208, %v2234
        %v2747 = vmul.f32 %v1209, %v2235
        %v2748 = vmul.f32 %v1210, %v2236
        %v2749 = vmul.f32 %v1211, %v2237
        %v2750 = vmul.f32 %v1212, %v2238
        %v2751 = vmul.f32 %v1213, %v2239
        %v2752 = vmul.f32 %v1214, %v2240
        %v2753 = vmul.f32 %v1215, %v2241
        %v2754 = vmul.f32 %v1216, %v2242
        %v2755 = vmul.f32 %v1217, %v2243
        %v2756 = vmul.f32 %v1218, %v2244
        %v2757 = vmul.f32 %v1219, %v2245
        %v2758 = vmul.f32 %v1220, %v2246
        %v2759 = vmul.f32 %v1221, %v2247
        %v2760 = vmul.f32 %v1222, %v2248
        %v2761 = vmul.f32 %v1223, %v2249
        %v2762 = vmul.f32 %v1224, %v2250
        %v2763 = vmul.f32 %v1225, %v2251
        %v2764 = vmul.f32 %v1226, %v2252
        %v2765 = vmul.f32 %v1227, %v2253
        %v2766 = vmul.f32 %v1228, %v2254
        %v2767 = vmul.f32 %v1229, %v2255
        %v2768 = vmul.f32 %v1230, %v2256
        %v2769 = vmul.f32 %v1231, %v2257
        %v2770 = vmul.f32 %v1232, %v2258
        %v2771 = vmul.f32 %v1233, %v2259
        %v2772 = vmul.f32 %v1234, %v2260
        %v2773 = vmul.f32 %v1235, %v2261
        %v2774 = vmul.f32 %v1236, %v2262
        %v2775 = vmul.f32 %v1237, %v2263
        %v2776 = vmul.f32 %v1238, %v2264
        %v2777 = vmul.f32 %v1239, %v2265
        %v2778 = vmul.f32 %v1240, %v2266
        %v2779 = vmul.f32 %v1241, %v2267
        %v2780 = vmul.f32 %v1242, %v2268
        %v2781 = vmul.f32 %v1243, %v2269
        %v2782 = vmul.f32 %v1244, %v2270
        %v2783 = vmul.f32 %v1245, %v2271
        %v2784 = vmul.f32 %v1246, %v2272
        %v2785 = vmul.f32 %v1247, %v2273
        %v2786 = vmul.f32 %v1248, %v2274
        %v2787 = vmul.f32 %v1249, %v2275
        %v2788 = vmul.f32 %v1250, %v2276
        %v2789 = vmul.f32 %v1251, %v2277
        %v2790 = vmul.f32 %v1252, %v2278
        %v2791 = vmul.f32 %v1253, %v2279
        %v2792 = vmul.f32 %v1254, %v2280
        %v2793 = vmul.f32 %v1255, %v2281
        %v2794 = vmul.f32 %v1256, %v2282
        %v2795 = vmul.f32 %v1257, %v2283
        %v2796 = vmul.f32 %v1258, %v2284
        %v2797 = vmul.f32 %v1259, %v2285
        %v2798 = vmul.f32 %v1260, %v2286
        %v2799 = vmul.f32 %v1261, %v2287
        %v2800 = vmul.f32 %v1262, %v2288
        %v2801 = vmul.f32 %v1263, %v2289
        %v2802 = vmul.f32 %v1264, %v2290
        %v2803 = vmul.f32 %v1265, %v2291
        %v2804 = vmul.f32 %v1266, %v2292
        %v2805 = vmul.f32 %v1267, %v2293
        %v2806 = vmul.f32 %v1268, %v2294
        %v2807 = vmul.f32 %v1269, %v2295
        %v2808 = vmul.f32 %v1270, %v2296
        %v2809 = vmul.f32 %v1271, %v2297
        %v2810 = vmul.f32 %v1272, %v2298
        %v2811 = vmul.f32 %v1273, %v2299
        %v2812 = vmul.f32 %v1274, %v2300
        %v2813 = vmul.f32 %v1275, %v2301
        %v2814 = vmul.f32 %v1276, %v2302
        %v2815 = vmul.f32 %v1277, %v2303
        %v2816 = vmul.f32 %v1278, %v2304
        %v2817 = vmul.f32 %v1279, %v2305
        %v2818 = vmul.f32 %v1280, %v2306
        %v2819 = vmul.f32 %v1281, %v2307
        %v2820 = vmul.f32 %v1282, %v2308
        %v2821 = vmul.f32 %v1283, %v2309
        %v2822 = vmul.f32 %v1284, %v2310
        %v2823 = vmul.f32 %v1285, %v2311
        %v2824 = vmul.f32 %v1286, %v2312
        %v2825 = vmul.f32 %v1287, %v2313
        %v2826 = vmul.f32 %v1288, %v2314
        %v2827 = vmul.f32 %v1289, %v2315
        %v2828 = vmul.f32 %v1290, %v2316
        %v2829 = vmul.f32 %v1291, %v2317
        %v2830 = vmul.f32 %v1292, %v2318
        %v2831 = vmul.f32 %v1293, %v2319
        %v2832 = vmul.f32 %v1294, %v2320
        %v2833 = vmul.f32 %v1295, %v2321
        %v2834 = vmul.f32 %v1296, %v2322
        %v2835 = vmul.f32 %v1297, %v2323
        %v2836 = vmul.f32 %v1298, %v2324
        %v2837 = vmul.f32 %v1299, %v2325
        %v2838 = vmul.f32 %v1300, %v2326
        %v2839 = vmul.f32 %v1301, %v2327
        %v2840 = vmul.f32 %v1302, %v2328
        %v2841 = vmul.f32 %v1303, %v2329
        %v2842 = vmul.f32 %v1304, %v2330
        %v2843 = vmul.f32 %v1305, %v2331
        %v2844 = vmul.f32 %v1306, %v2332
        %v2845 = vmul.f32 %v1307, %v2333
        %v2846 = vmul.f32 %v1308, %v2334
        %v2847 = vadd.f32 %v285, %v2335
        %v2848 = vadd.f32 %v286, %v2336
        %v2849 = vadd.f32 %v287, %v2337
        %v2850 = vadd.f32 %v288, %v2338
        %v2851 = vadd.f32 %v289, %v2339
        %v2852 = vadd.f32 %v290, %v2340
        %v2853 = vadd.f32 %v291, %v2341
        %v2854 = vadd.f32 %v292, %v2342
        %v2855 = vadd.f32 %v293, %v2343
        %v2856 = vadd.f32 %v294, %v2344
        %v2857 = vadd.f32 %v295, %v2345
        %v2858 = vadd.f32 %v296, %v2346
        %v2859 = vadd.f32 %v297, %v2347
        %v2860 = vadd.f32 %v298, %v2348
        %v2861 = vadd.f32 %v299, %v2349
        %v2862 = vadd.f32 %v300, %v2350
        %v2863 = vadd.f32 %v301, %v2351
        %v2864 = vadd.f32 %v302, %v2352
        %v2865 = vadd.f32 %v303, %v2353
        %v2866 = vadd.f32 %v304, %v2354
        %v2867 = vadd.f32 %v305, %v2355
        %v2868 = vadd.f32 %v306, %v2356
        %v2869 = vadd.f32 %v307, %v2357
        %v2870 = vadd.f32 %v308, %v2358
        %v2871 = vadd.f32 %v309, %v2359
        %v2872 = vadd.f32 %v310, %v2360
        %v2873 = vadd.f32 %v311, %v2361
        %v2874 = vadd.f32 %v312, %v2362
        %v2875 = vadd.f32 %v313, %v2363
        %v2876 = vadd.f32 %v314, %v2364
        %v2877 = vadd.f32 %v315, %v2365
        %v2878 = vadd.f32 %v316, %v2366
        %v2879 = vadd.f32 %v317, %v2367
        %v2880 = vadd.f32 %v318, %v2368
        %v2881 = vadd.f32 %v319, %v2369
        %v2882 = vadd.f32 %v320, %v2370
        %v2883 = vadd.f32 %v321, %v2371
        %v2884 = vadd.f32 %v322, %v2372
        %v2885 = vadd.f32 %v323, %v2373
        %v2886 = vadd.f32 %v324, %v2374
        %v2887 = vadd.f32 %v325, %v2375
        %v2888 = vadd.f32 %v326, %v2376
        %v2889 = vadd.f32 %v327, %v2377
        %v2890 = vadd.f32 %v328, %v2378
        %v2891 = vadd.f32 %v329, %v2379
        %v2892 = vadd.f32 %v330, %v2380
        %v2893 = vadd.f32 %v331, %v2381
        %v2894 = vadd.f32 %v332, %v2382
        %v2895 = vadd.f32 %v333, %v2383
        %v2896 = vadd.f32 %v334, %v2384
        %v2897 = vadd.f32 %v335, %v2385
        %v2898 = vadd.f32 %v336, %v2386
        %v2899 = vadd.f32 %v337, %v2387
        %v2900 = vadd.f32 %v338, %v2388
        %v2901 = vadd.f32 %v339, %v2389
        %v2902 = vadd.f32 %v340, %v2390
        %v2903 = vadd.f32 %v341, %v2391
        %v2904 = vadd.f32 %v342, %v2392
        %v2905 = vadd.f32 %v343, %v2393
        %v2906 = vadd.f32 %v344, %v2394
        %v2907 = vadd.f32 %v345, %v2395
        %v2908 = vadd.f32 %v346, %v2396
        %v2909 = vadd.f32 %v347, %v2397
        %v2910 = vadd.f32 %v348, %v2398
        %v2911 = vadd.f32 %v349, %v2399
        %v2912 = vadd.f32 %v350, %v2400
        %v2913 = vadd.f32 %v351, %v2401
        %v2914 = vadd.f32 %v352, %v2402
        %v2915 = vadd.f32 %v353, %v2403
        %v2916 = vadd.f32 %v354, %v2404
        %v2917 = vadd.f32 %v355, %v2405
        %v2918 = vadd.f32 %v356, %v2406
        %v2919 = vadd.f32 %v357, %v2407
        %v2920 = vadd.f32 %v358, %v2408
        %v2921 = vadd.f32 %v359, %v2409
        %v2922 = vadd.f32 %v360, %v2410
        %v2923 = vadd.f32 %v361, %v2411
        %v2924 = vadd.f32 %v362, %v2412
        %v2925 = vadd.f32 %v363, %v2413
        %v2926 = vadd.f32 %v364, %v2414
        %v2927 = vadd.f32 %v365, %v2415
        %v2928 = vadd.f32 %v366, %v2416
        %v2929 = vadd.f32 %v367, %v2417
        %v2930 = vadd.f32 %v368, %v2418
        %v2931 = vadd.f32 %v369, %v2419
        %v2932 = vadd.f32 %v370, %v2420
        %v2933 = vadd.f32 %v371, %v2421
        %v2934 = vadd.f32 %v372, %v2422
        %v2935 = vadd.f32 %v373, %v2423
        %v2936 = vadd.f32 %v374, %v2424
        %v2937 = vadd.f32 %v375, %v2425
        %v2938 = vadd.f32 %v376, %v2426
        %v2939 = vadd.f32 %v377, %v2427
        %v2940 = vadd.f32 %v378, %v2428
        %v2941 = vadd.f32 %v379, %v2429
        %v2942 = vadd.f32 %v380, %v2430
        %v2943 = vadd.f32 %v381, %v2431
        %v2944 = vadd.f32 %v382, %v2432
        %v2945 = vadd.f32 %v383, %v2433
        %v2946 = vadd.f32 %v384, %v2434
        %v2947 = vadd.f32 %v385, %v2435
        %v2948 = vadd.f32 %v386, %v2436
        %v2949 = vadd.f32 %v387, %v2437
        %v2950 = vadd.f32 %v388, %v2438
        %v2951 = vadd.f32 %v389, %v2439
        %v2952 = vadd.f32 %v390, %v2440
        %v2953 = vadd.f32 %v391, %v2441
        %v2954 = vadd.f32 %v392, %v2442
        %v2955 = vadd.f32 %v393, %v2443
        %v2956 = vadd.f32 %v394, %v2444
        %v2957 = vadd.f32 %v395, %v2445
        %v2958 = vadd.f32 %v396, %v2446
        %v2959 = vadd.f32 %v397, %v2447
        %v2960 = vadd.f32 %v398, %v2448
        %v2961 = vadd.f32 %v399, %v2449
        %v2962 = vadd.f32 %v400, %v2450
        %v2963 = vadd.f32 %v401, %v2451
        %v2964 = vadd.f32 %v402, %v2452
        %v2965 = vadd.f32 %v403, %v2453
        %v2966 = vadd.f32 %v404, %v2454
        %v2967 = vadd.f32 %v405, %v2455
        %v2968 = vadd.f32 %v406, %v2456
        %v2969 = vadd.f32 %v407, %v2457
        %v2970 = vadd.f32 %v408, %v2458
        %v2971 = vadd.f32 %v409, %v2459
        %v2972 = vadd.f32 %v410, %v2460
        %v2973 = vadd.f32 %v411, %v2461
        %v2974 = vadd.f32 %v412, %v2462
        %v2975 = vadd.f32 %v413, %v2463
        %v2976 = vadd.f32 %v414, %v2464
        %v2977 = vadd.f32 %v415, %v2465
        %v2978 = vadd.f32 %v416, %v2466
        %v2979 = vadd.f32 %v417, %v2467
        %v2980 = vadd.f32 %v418, %v2468
        %v2981 = vadd.f32 %v419, %v2469
        %v2982 = vadd.f32 %v420, %v2470
        %v2983 = vadd.f32 %v421, %v2471
        %v2984 = vadd.f32 %v422, %v2472
        %v2985 = vadd.f32 %v423, %v2473
        %v2986 = vadd.f32 %v424, %v2474
        %v2987 = vadd.f32 %v425, %v2475
        %v2988 = vadd.f32 %v426, %v2476
        %v2989 = vadd.f32 %v427, %v2477
        %v2990 = vadd.f32 %v428, %v2478
        %v2991 = vadd.f32 %v429, %v2479
        %v2992 = vadd.f32 %v430, %v2480
        %v2993 = vadd.f32 %v431, %v2481
        %v2994 = vadd.f32 %v432, %v2482
        %v2995 = vadd.f32 %v433, %v2483
        %v2996 = vadd.f32 %v434, %v2484
        %v2997 = vadd.f32 %v435, %v2485
        %v2998 = vadd.f32 %v436, %v2486
        %v2999 = vadd.f32 %v437, %v2487
        %v3000 = vadd.f32 %v438, %v2488
        %v3001 = vadd.f32 %v439, %v2489
        %v3002 = vadd.f32 %v440, %v2490
        %v3003 = vadd.f32 %v441, %v2491
        %v3004 = vadd.f32 %v442, %v2492
        %v3005 = vadd.f32 %v443, %v2493
        %v3006 = vadd.f32 %v444, %v2494
        %v3007 = vadd.f32 %v445, %v2495
        %v3008 = vadd.f32 %v446, %v2496
        %v3009 = vadd.f32 %v447, %v2497
        %v3010 = vadd.f32 %v448, %v2498
        %v3011 = vadd.f32 %v449, %v2499
        %v3012 = vadd.f32 %v450, %v2500
        %v3013 = vadd.f32 %v451, %v2501
        %v3014 = vadd.f32 %v452, %v2502
        %v3015 = vadd.f32 %v453, %v2503
        %v3016 = vadd.f32 %v454, %v2504
        %v3017 = vadd.f32 %v455, %v2505
        %v3018 = vadd.f32 %v456, %v2506
        %v3019 = vadd.f32 %v457, %v2507
        %v3020 = vadd.f32 %v458, %v2508
        %v3021 = vadd.f32 %v459, %v2509
        %v3022 = vadd.f32 %v460, %v2510
        %v3023 = vadd.f32 %v461, %v2511
        %v3024 = vadd.f32 %v462, %v2512
        %v3025 = vadd.f32 %v463, %v2513
        %v3026 = vadd.f32 %v464, %v2514
        %v3027 = vadd.f32 %v465, %v2515
        %v3028 = vadd.f32 %v466, %v2516
        %v3029 = vadd.f32 %v467, %v2517
        %v3030 = vadd.f32 %v468, %v2518
        %v3031 = vadd.f32 %v469, %v2519
        %v3032 = vadd.f32 %v470, %v2520
        %v3033 = vadd.f32 %v471, %v2521
        %v3034 = vadd.f32 %v472, %v2522
        %v3035 = vadd.f32 %v473, %v2523
        %v3036 = vadd.f32 %v474, %v2524
        %v3037 = vadd.f32 %v475, %v2525
        %v3038 = vadd.f32 %v476, %v2526
        %v3039 = vadd.f32 %v477, %v2527
        %v3040 = vadd.f32 %v478, %v2528
        %v3041 = vadd.f32 %v479, %v2529
        %v3042 = vadd.f32 %v480, %v2530
        %v3043 = vadd.f32 %v481, %v2531
        %v3044 = vadd.f32 %v482, %v2532
        %v3045 = vadd.f32 %v483, %v2533
        %v3046 = vadd.f32 %v484, %v2534
        %v3047 = vadd.f32 %v485, %v2535
        %v3048 = vadd.f32 %v486, %v2536
        %v3049 = vadd.f32 %v487, %v2537
        %v3050 = vadd.f32 %v488, %v2538
        %v3051 = vadd.f32 %v489, %v2539
        %v3052 = vadd.f32 %v490, %v2540
        %v3053 = vadd.f32 %v491, %v2541
        %v3054 = vadd.f32 %v492, %v2542
        %v3055 = vadd.f32 %v493, %v2543
        %v3056 = vadd.f32 %v494, %v2544
        %v3057 = vadd.f32 %v495, %v2545
        %v3058 = vadd.f32 %v496, %v2546
        %v3059 = vadd.f32 %v497, %v2547
        %v3060 = vadd.f32 %v498, %v2548
        %v3061 = vadd.f32 %v499, %v2549
        %v3062 = vadd.f32 %v500, %v2550
        %v3063 = vadd.f32 %v501, %v2551
        %v3064 = vadd.f32 %v502, %v2552
        %v3065 = vadd.f32 %v503, %v2553
        %v3066 = vadd.f32 %v504, %v2554
        %v3067 = vadd.f32 %v505, %v2555
        %v3068 = vadd.f32 %v506, %v2556
        %v3069 = vadd.f32 %v507, %v2557
        %v3070 = vadd.f32 %v508, %v2558
        %v3071 = vadd.f32 %v509, %v2559
        %v3072 = vadd.f32 %v510, %v2560
        %v3073 = vadd.f32 %v511, %v2561
        %v3074 = vadd.f32 %v512, %v2562
        %v3075 = vadd.f32 %v513, %v2563
        %v3076 = vadd.f32 %v514, %v2564
        %v3077 = vadd.f32 %v515, %v2565
        %v3078 = vadd.f32 %v516, %v2566
        %v3079 = vadd.f32 %v517, %v2567
        %v3080 = vadd.f32 %v518, %v2568
        %v3081 = vadd.f32 %v519, %v2569
        %v3082 = vadd.f32 %v520, %v2570
        %v3083 = vadd.f32 %v521, %v2571
        %v3084 = vadd.f32 %v522, %v2572
        %v3085 = vadd.f32 %v523, %v2573
        %v3086 = vadd.f32 %v524, %v2574
        %v3087 = vadd.f32 %v525, %v2575
        %v3088 = vadd.f32 %v526, %v2576
        %v3089 = vadd.f32 %v527, %v2577
        %v3090 = vadd.f32 %v528, %v2578
        %v3091 = vadd.f32 %v529, %v2579
        %v3092 = vadd.f32 %v530, %v2580
        %v3093 = vadd.f32 %v531, %v2581
        %v3094 = vadd.f32 %v532, %v2582
        %v3095 = vadd.f32 %v533, %v2583
        %v3096 = vadd.f32 %v534, %v2584
        %v3097 = vadd.f32 %v535, %v2585
        %v3098 = vadd.f32 %v536, %v2586
        %v3099 = vadd.f32 %v537, %v2587
        %v3100 = vadd.f32 %v538, %v2588
        %v3101 = vadd.f32 %v539, %v2589
        %v3102 = vadd.f32 %v540, %v2590
        %v3103 = vadd.f32 %v541, %v2591
        %v3104 = vadd.f32 %v542, %v2592
        %v3105 = vadd.f32 %v543, %v2593
        %v3106 = vadd.f32 %v544, %v2594
        %v3107 = vadd.f32 %v545, %v2595
        %v3108 = vadd.f32 %v546, %v2596
        %v3109 = vadd.f32 %v547, %v2597
        %v3110 = vadd.f32 %v548, %v2598
        %v3111 = vadd.f32 %v549, %v2599
        %v3112 = vadd.f32 %v550, %v2600
        %v3113 = vadd.f32 %v551, %v2601
        %v3114 = vadd.f32 %v552, %v2602
        %v3115 = vadd.f32 %v553, %v2603
        %v3116 = vadd.f32 %v554, %v2604
        %v3117 = vadd.f32 %v555, %v2605
        %v3118 = vadd.f32 %v556, %v2606
        %v3119 = vadd.f32 %v557, %v2607
        %v3120 = vadd.f32 %v558, %v2608
        %v3121 = vadd.f32 %v559, %v2609
        %v3122 = vadd.f32 %v560, %v2610
        %v3123 = vadd.f32 %v561, %v2611
        %v3124 = vadd.f32 %v562, %v2612
        %v3125 = vadd.f32 %v563, %v2613
        %v3126 = vadd.f32 %v564, %v2614
        %v3127 = vadd.f32 %v565, %v2615
        %v3128 = vadd.f32 %v566, %v2616
        %v3129 = vadd.f32 %v567, %v2617
        %v3130 = vadd.f32 %v568, %v2618
        %v3131 = vadd.f32 %v569, %v2619
        %v3132 = vadd.f32 %v570, %v2620
        %v3133 = vadd.f32 %v571, %v2621
        %v3134 = vadd.f32 %v572, %v2622
        %v3135 = vadd.f32 %v573, %v2623
        %v3136 = vadd.f32 %v574, %v2624
        %v3137 = vadd.f32 %v575, %v2625
        %v3138 = vadd.f32 %v576, %v2626
        %v3139 = vadd.f32 %v577, %v2627
        %v3140 = vadd.f32 %v578, %v2628
        %v3141 = vadd.f32 %v579, %v2629
        %v3142 = vadd.f32 %v580, %v2630
        %v3143 = vadd.f32 %v581, %v2631
        %v3144 = vadd.f32 %v582, %v2632
        %v3145 = vadd.f32 %v583, %v2633
        %v3146 = vadd.f32 %v584, %v2634
        %v3147 = vadd.f32 %v585, %v2635
        %v3148 = vadd.f32 %v586, %v2636
        %v3149 = vadd.f32 %v587, %v2637
        %v3150 = vadd.f32 %v588, %v2638
        %v3151 = vadd.f32 %v589, %v2639
        %v3152 = vadd.f32 %v590, %v2640
        %v3153 = vadd.f32 %v591, %v2641
        %v3154 = vadd.f32 %v592, %v2642
        %v3155 = vadd.f32 %v593, %v2643
        %v3156 = vadd.f32 %v594, %v2644
        %v3157 = vadd.f32 %v595, %v2645
        %v3158 = vadd.f32 %v596, %v2646
        %v3159 = vadd.f32 %v597, %v2647
        %v3160 = vadd.f32 %v598, %v2648
        %v3161 = vadd.f32 %v599, %v2649
        %v3162 = vadd.f32 %v600, %v2650
        %v3163 = vadd.f32 %v601, %v2651
        %v3164 = vadd.f32 %v602, %v2652
        %v3165 = vadd.f32 %v603, %v2653
        %v3166 = vadd.f32 %v604, %v2654
        %v3167 = vadd.f32 %v605, %v2655
        %v3168 = vadd.f32 %v606, %v2656
        %v3169 = vadd.f32 %v607, %v2657
        %v3170 = vadd.f32 %v608, %v2658
        %v3171 = vadd.f32 %v609, %v2659
        %v3172 = vadd.f32 %v610, %v2660
        %v3173 = vadd.f32 %v611, %v2661
        %v3174 = vadd.f32 %v612, %v2662
        %v3175 = vadd.f32 %v613, %v2663
        %v3176 = vadd.f32 %v614, %v2664
        %v3177 = vadd.f32 %v615, %v2665
        %v3178 = vadd.f32 %v616, %v2666
        %v3179 = vadd.f32 %v617, %v2667
        %v3180 = vadd.f32 %v618, %v2668
        %v3181 = vadd.f32 %v619, %v2669
        %v3182 = vadd.f32 %v620, %v2670
        %v3183 = vadd.f32 %v621, %v2671
        %v3184 = vadd.f32 %v622, %v2672
        %v3185 = vadd.f32 %v623, %v2673
        %v3186 = vadd.f32 %v624, %v2674
        %v3187 = vadd.f32 %v625, %v2675
        %v3188 = vadd.f32 %v626, %v2676
        %v3189 = vadd.f32 %v627, %v2677
        %v3190 = vadd.f32 %v628, %v2678
        %v3191 = vadd.f32 %v629, %v2679
        %v3192 = vadd.f32 %v630, %v2680
        %v3193 = vadd.f32 %v631, %v2681
        %v3194 = vadd.f32 %v632, %v2682
        %v3195 = vadd.f32 %v633, %v2683
        %v3196 = vadd.f32 %v634, %v2684
        %v3197 = vadd.f32 %v635, %v2685
        %v3198 = vadd.f32 %v636, %v2686
        %v3199 = vadd.f32 %v637, %v2687
        %v3200 = vadd.f32 %v638, %v2688
        %v3201 = vadd.f32 %v639, %v2689
        %v3202 = vadd.f32 %v640, %v2690
        %v3203 = vadd.f32 %v641, %v2691
        %v3204 = vadd.f32 %v642, %v2692
        %v3205 = vadd.f32 %v643, %v2693
        %v3206 = vadd.f32 %v644, %v2694
        %v3207 = vadd.f32 %v645, %v2695
        %v3208 = vadd.f32 %v646, %v2696
        %v3209 = vadd.f32 %v647, %v2697
        %v3210 = vadd.f32 %v648, %v2698
        %v3211 = vadd.f32 %v649, %v2699
        %v3212 = vadd.f32 %v650, %v2700
        %v3213 = vadd.f32 %v651, %v2701
        %v3214 = vadd.f32 %v652, %v2702
        %v3215 = vadd.f32 %v653, %v2703
        %v3216 = vadd.f32 %v654, %v2704
        %v3217 = vadd.f32 %v655, %v2705
        %v3218 = vadd.f32 %v656, %v2706
        %v3219 = vadd.f32 %v657, %v2707
        %v3220 = vadd.f32 %v658, %v2708
        %v3221 = vadd.f32 %v659, %v2709
        %v3222 = vadd.f32 %v660, %v2710
        %v3223 = vadd.f32 %v661, %v2711
        %v3224 = vadd.f32 %v662, %v2712
        %v3225 = vadd.f32 %v663, %v2713
        %v3226 = vadd.f32 %v664, %v2714
        %v3227 = vadd.f32 %v665, %v2715
        %v3228 = vadd.f32 %v666, %v2716
        %v3229 = vadd.f32 %v667, %v2717
        %v3230 = vadd.f32 %v668, %v2718
        %v3231 = vadd.f32 %v669, %v2719
        %v3232 = vadd.f32 %v670, %v2720
        %v3233 = vadd.f32 %v671, %v2721
        %v3234 = vadd.f32 %v672, %v2722
        %v3235 = vadd.f32 %v673, %v2723
        %v3236 = vadd.f32 %v674, %v2724
        %v3237 = vadd.f32 %v675, %v2725
        %v3238 = vadd.f32 %v676, %v2726
        %v3239 = vadd.f32 %v677, %v2727
        %v3240 = vadd.f32 %v678, %v2728
        %v3241 = vadd.f32 %v679, %v2729
        %v3242 = vadd.f32 %v680, %v2730
        %v3243 = vadd.f32 %v681, %v2731
        %v3244 = vadd.f32 %v682, %v2732
        %v3245 = vadd.f32 %v683, %v2733
        %v3246 = vadd.f32 %v684, %v2734
        %v3247 = vadd.f32 %v685, %v2735
        %v3248 = vadd.f32 %v686, %v2736
        %v3249 = vadd.f32 %v687, %v2737
        %v3250 = vadd.f32 %v688, %v2738
        %v3251 = vadd.f32 %v689, %v2739
        %v3252 = vadd.f32 %v690, %v2740
        %v3253 = vadd.f32 %v691, %v2741
        %v3254 = vadd.f32 %v692, %v2742
        %v3255 = vadd.f32 %v693, %v2743
        %v3256 = vadd.f32 %v694, %v2744
        %v3257 = vadd.f32 %v695, %v2745
        %v3258 = vadd.f32 %v696, %v2746
        %v3259 = vadd.f32 %v697, %v2747
        %v3260 = vadd.f32 %v698, %v2748
        %v3261 = vadd.f32 %v699, %v2749
        %v3262 = vadd.f32 %v700, %v2750
        %v3263 = vadd.f32 %v701, %v2751
        %v3264 = vadd.f32 %v702, %v2752
        %v3265 = vadd.f32 %v703, %v2753
        %v3266 = vadd.f32 %v704, %v2754
        %v3267 = vadd.f32 %v705, %v2755
        %v3268 = vadd.f32 %v706, %v2756
        %v3269 = vadd.f32 %v707, %v2757
        %v3270 = vadd.f32 %v708, %v2758
        %v3271 = vadd.f32 %v709, %v2759
        %v3272 = vadd.f32 %v710, %v2760
        %v3273 = vadd.f32 %v711, %v2761
        %v3274 = vadd.f32 %v712, %v2762
        %v3275 = vadd.f32 %v713, %v2763
        %v3276 = vadd.f32 %v714, %v2764
        %v3277 = vadd.f32 %v715, %v2765
        %v3278 = vadd.f32 %v716, %v2766
        %v3279 = vadd.f32 %v717, %v2767
        %v3280 = vadd.f32 %v718, %v2768
        %v3281 = vadd.f32 %v719, %v2769
        %v3282 = vadd.f32 %v720, %v2770
        %v3283 = vadd.f32 %v721, %v2771
        %v3284 = vadd.f32 %v722, %v2772
        %v3285 = vadd.f32 %v723, %v2773
        %v3286 = vadd.f32 %v724, %v2774
        %v3287 = vadd.f32 %v725, %v2775
        %v3288 = vadd.f32 %v726, %v2776
        %v3289 = vadd.f32 %v727, %v2777
        %v3290 = vadd.f32 %v728, %v2778
        %v3291 = vadd.f32 %v729, %v2779
        %v3292 = vadd.f32 %v730, %v2780
        %v3293 = vadd.f32 %v731, %v2781
        %v3294 = vadd.f32 %v732, %v2782
        %v3295 = vadd.f32 %v733, %v2783
        %v3296 = vadd.f32 %v734, %v2784
        %v3297 = vadd.f32 %v735, %v2785
        %v3298 = vadd.f32 %v736, %v2786
        %v3299 = vadd.f32 %v737, %v2787
        %v3300 = vadd.f32 %v738, %v2788
        %v3301 = vadd.f32 %v739, %v2789
        %v3302 = vadd.f32 %v740, %v2790
        %v3303 = vadd.f32 %v741, %v2791
        %v3304 = vadd.f32 %v742, %v2792
        %v3305 = vadd.f32 %v743, %v2793
        %v3306 = vadd.f32 %v744, %v2794
        %v3307 = vadd.f32 %v745, %v2795
        %v3308 = vadd.f32 %v746, %v2796
        %v3309 = vadd.f32 %v747, %v2797
        %v3310 = vadd.f32 %v748, %v2798
        %v3311 = vadd.f32 %v749, %v2799
        %v3312 = vadd.f32 %v750, %v2800
        %v3313 = vadd.f32 %v751, %v2801
        %v3314 = vadd.f32 %v752, %v2802
        %v3315 = vadd.f32 %v753, %v2803
        %v3316 = vadd.f32 %v754, %v2804
        %v3317 = vadd.f32 %v755, %v2805
        %v3318 = vadd.f32 %v756, %v2806
        %v3319 = vadd.f32 %v757, %v2807
        %v3320 = vadd.f32 %v758, %v2808
        %v3321 = vadd.f32 %v759, %v2809
        %v3322 = vadd.f32 %v760, %v2810
        %v3323 = vadd.f32 %v761, %v2811
        %v3324 = vadd.f32 %v762, %v2812
        %v3325 = vadd.f32 %v763, %v2813
        %v3326 = vadd.f32 %v764, %v2814
        %v3327 = vadd.f32 %v765, %v2815
        %v3328 = vadd.f32 %v766, %v2816
        %v3329 = vadd.f32 %v767, %v2817
        %v3330 = vadd.f32 %v768, %v2818
        %v3331 = vadd.f32 %v769, %v2819
        %v3332 = vadd.f32 %v770, %v2820
        %v3333 = vadd.f32 %v771, %v2821
        %v3334 = vadd.f32 %v772, %v2822
        %v3335 = vadd.f32 %v773, %v2823
        %v3336 = vadd.f32 %v774, %v2824
        %v3337 = vadd.f32 %v775, %v2825
        %v3338 = vadd.f32 %v776, %v2826
        %v3339 = vadd.f32 %v777, %v2827
        %v3340 = vadd.f32 %v778, %v2828
        %v3341 = vadd.f32 %v779, %v2829
        %v3342 = vadd.f32 %v780, %v2830
        %v3343 = vadd.f32 %v781, %v2831
        %v3344 = vadd.f32 %v782, %v2832
        %v3345 = vadd.f32 %v783, %v2833
        %v3346 = vadd.f32 %v784, %v2834
        %v3347 = vadd.f32 %v785, %v2835
        %v3348 = vadd.f32 %v786, %v2836
        %v3349 = vadd.f32 %v787, %v2837
        %v3350 = vadd.f32 %v788, %v2838
        %v3351 = vadd.f32 %v789, %v2839
        %v3352 = vadd.f32 %v790, %v2840
        %v3353 = vadd.f32 %v791, %v2841
        %v3354 = vadd.f32 %v792, %v2842
        %v3355 = vadd.f32 %v793, %v2843
        %v3356 = vadd.f32 %v794, %v2844
        %v3357 = vadd.f32 %v795, %v2845
        %v3358 = vadd.f32 %v796, %v2846
        %3359 = vst [vmem:[%s264] sm:$0xff] %v2847
        %3360 = vst [vmem:[%s264 + $0x8] sm:$0xff] %v2848
        %3361 = vst [vmem:[%s264 + $0x10] sm:$0xff] %v2849
        %3362 = vst [vmem:[%s264 + $0x18] sm:$0xff] %v2850
        %3363 = vst [vmem:[%s264 + $0x20] sm:$0xff] %v2851
        %3364 = vst [vmem:[%s264 + $0x28] sm:$0xff] %v2852
        %3365 = vst [vmem:[%s264 + $0x30] sm:$0xff] %v2853
        %3366 = vst [vmem:[%s264 + $0x38] sm:$0xff] %v2854
        %3367 = vst [vmem:[%s264 + $0x40] sm:$0xff] %v2855
        %3368 = vst [vmem:[%s264 + $0x48] sm:$0xff] %v2856
        %3369 = vst [vmem:[%s264 + $0x50] sm:$0xff] %v2857
        %3370 = vst [vmem:[%s264 + $0x58] sm:$0xff] %v2858
        %3371 = vst [vmem:[%s264 + $0x60] sm:$0xff] %v2859
        %3372 = vst [vmem:[%s264 + $0x68] sm:$0xff] %v2860
        %3373 = vst [vmem:[%s264 + $0x70] sm:$0xff] %v2861
        %3374 = vst [vmem:[%s264 + $0x78] sm:$0xff] %v2862
        %3375 = vst [vmem:[%s264 + $0x80] sm:$0xff] %v2863
        %3376 = vst [vmem:[%s264 + $0x88] sm:$0xff] %v2864
        %3377 = vst [vmem:[%s264 + $0x90] sm:$0xff] %v2865
        %3378 = vst [vmem:[%s264 + $0x98] sm:$0xff] %v2866
        %3379 = vst [vmem:[%s264 + $0xa0] sm:$0xff] %v2867
        %3380 = vst [vmem:[%s264 + $0xa8] sm:$0xff] %v2868
        %3381 = vst [vmem:[%s264 + $0xb0] sm:$0xff] %v2869
        %3382 = vst [vmem:[%s264 + $0xb8] sm:$0xff] %v2870
        %3383 = vst [vmem:[%s264 + $0xc0] sm:$0xff] %v2871
        %3384 = vst [vmem:[%s264 + $0xc8] sm:$0xff] %v2872
        %3385 = vst [vmem:[%s264 + $0xd0] sm:$0xff] %v2873
        %3386 = vst [vmem:[%s264 + $0xd8] sm:$0xff] %v2874
        %3387 = vst [vmem:[%s264 + $0xe0] sm:$0xff] %v2875
        %3388 = vst [vmem:[%s264 + $0xe8] sm:$0xff] %v2876
        %3389 = vst [vmem:[%s264 + $0xf0] sm:$0xff] %v2877
        %3390 = vst [vmem:[%s264 + $0xf8] sm:$0xff] %v2878
        %3391 = vst [vmem:[%s264 + $0x100] sm:$0xff] %v2879
        %3392 = vst [vmem:[%s264 + $0x108] sm:$0xff] %v2880
        %3393 = vst [vmem:[%s264 + $0x110] sm:$0xff] %v2881
        %3394 = vst [vmem:[%s264 + $0x118] sm:$0xff] %v2882
        %3395 = vst [vmem:[%s264 + $0x120] sm:$0xff] %v2883
        %3396 = vst [vmem:[%s264 + $0x128] sm:$0xff] %v2884
        %3397 = vst [vmem:[%s264 + $0x130] sm:$0xff] %v2885
        %3398 = vst [vmem:[%s264 + $0x138] sm:$0xff] %v2886
        %3399 = vst [vmem:[%s264 + $0x140] sm:$0xff] %v2887
        %3400 = vst [vmem:[%s264 + $0x148] sm:$0xff] %v2888
        %3401 = vst [vmem:[%s264 + $0x150] sm:$0xff] %v2889
        %3402 = vst [vmem:[%s264 + $0x158] sm:$0xff] %v2890
        %3403 = vst [vmem:[%s264 + $0x160] sm:$0xff] %v2891
        %3404 = vst [vmem:[%s264 + $0x168] sm:$0xff] %v2892
        %3405 = vst [vmem:[%s264 + $0x170] sm:$0xff] %v2893
        %3406 = vst [vmem:[%s264 + $0x178] sm:$0xff] %v2894
        %3407 = vst [vmem:[%s264 + $0x180] sm:$0xff] %v2895
        %3408 = vst [vmem:[%s264 + $0x188] sm:$0xff] %v2896
        %3409 = vst [vmem:[%s264 + $0x190] sm:$0xff] %v2897
        %3410 = vst [vmem:[%s264 + $0x198] sm:$0xff] %v2898
        %3411 = vst [vmem:[%s264 + $0x1a0] sm:$0xff] %v2899
        %3412 = vst [vmem:[%s264 + $0x1a8] sm:$0xff] %v2900
        %3413 = vst [vmem:[%s264 + $0x1b0] sm:$0xff] %v2901
        %3414 = vst [vmem:[%s264 + $0x1b8] sm:$0xff] %v2902
        %3415 = vst [vmem:[%s264 + $0x1c0] sm:$0xff] %v2903
        %3416 = vst [vmem:[%s264 + $0x1c8] sm:$0xff] %v2904
        %3417 = vst [vmem:[%s264 + $0x1d0] sm:$0xff] %v2905
        %3418 = vst [vmem:[%s264 + $0x1d8] sm:$0xff] %v2906
        %3419 = vst [vmem:[%s264 + $0x1e0] sm:$0xff] %v2907
        %3420 = vst [vmem:[%s264 + $0x1e8] sm:$0xff] %v2908
        %3421 = vst [vmem:[%s264 + $0x1f0] sm:$0xff] %v2909
        %3422 = vst [vmem:[%s264 + $0x1f8] sm:$0xff] %v2910
        %3423 = vst [vmem:[%s264 + $0x200] sm:$0xff] %v2911
        %3424 = vst [vmem:[%s264 + $0x208] sm:$0xff] %v2912
        %3425 = vst [vmem:[%s264 + $0x210] sm:$0xff] %v2913
        %3426 = vst [vmem:[%s264 + $0x218] sm:$0xff] %v2914
        %3427 = vst [vmem:[%s264 + $0x220] sm:$0xff] %v2915
        %3428 = vst [vmem:[%s264 + $0x228] sm:$0xff] %v2916
        %3429 = vst [vmem:[%s264 + $0x230] sm:$0xff] %v2917
        %3430 = vst [vmem:[%s264 + $0x238] sm:$0xff] %v2918
        %3431 = vst [vmem:[%s264 + $0x240] sm:$0xff] %v2919
        %3432 = vst [vmem:[%s264 + $0x248] sm:$0xff] %v2920
        %3433 = vst [vmem:[%s264 + $0x250] sm:$0xff] %v2921
        %3434 = vst [vmem:[%s264 + $0x258] sm:$0xff] %v2922
        %3435 = vst [vmem:[%s264 + $0x260] sm:$0xff] %v2923
        %3436 = vst [vmem:[%s264 + $0x268] sm:$0xff] %v2924
        %3437 = vst [vmem:[%s264 + $0x270] sm:$0xff] %v2925
        %3438 = vst [vmem:[%s264 + $0x278] sm:$0xff] %v2926
        %3439 = vst [vmem:[%s264 + $0x280] sm:$0xff] %v2927
        %3440 = vst [vmem:[%s264 + $0x288] sm:$0xff] %v2928
        %3441 = vst [vmem:[%s264 + $0x290] sm:$0xff] %v2929
        %3442 = vst [vmem:[%s264 + $0x298] sm:$0xff] %v2930
        %3443 = vst [vmem:[%s264 + $0x2a0] sm:$0xff] %v2931
        %3444 = vst [vmem:[%s264 + $0x2a8] sm:$0xff] %v2932
        %3445 = vst [vmem:[%s264 + $0x2b0] sm:$0xff] %v2933
        %3446 = vst [vmem:[%s264 + $0x2b8] sm:$0xff] %v2934
        %3447 = vst [vmem:[%s264 + $0x2c0] sm:$0xff] %v2935
        %3448 = vst [vmem:[%s264 + $0x2c8] sm:$0xff] %v2936
        %3449 = vst [vmem:[%s264 + $0x2d0] sm:$0xff] %v2937
        %3450 = vst [vmem:[%s264 + $0x2d8] sm:$0xff] %v2938
        %3451 = vst [vmem:[%s264 + $0x2e0] sm:$0xff] %v2939
        %3452 = vst [vmem:[%s264 + $0x2e8] sm:$0xff] %v2940
        %3453 = vst [vmem:[%s264 + $0x2f0] sm:$0xff] %v2941
        %3454 = vst [vmem:[%s264 + $0x2f8] sm:$0xff] %v2942
        %3455 = vst [vmem:[%s264 + $0x300] sm:$0xff] %v2943
        %3456 = vst [vmem:[%s264 + $0x308] sm:$0xff] %v2944
        %3457 = vst [vmem:[%s264 + $0x310] sm:$0xff] %v2945
        %3458 = vst [vmem:[%s264 + $0x318] sm:$0xff] %v2946
        %3459 = vst [vmem:[%s264 + $0x320] sm:$0xff] %v2947
        %3460 = vst [vmem:[%s264 + $0x328] sm:$0xff] %v2948
        %3461 = vst [vmem:[%s264 + $0x330] sm:$0xff] %v2949
        %3462 = vst [vmem:[%s264 + $0x338] sm:$0xff] %v2950
        %3463 = vst [vmem:[%s264 + $0x340] sm:$0xff] %v2951
        %3464 = vst [vmem:[%s264 + $0x348] sm:$0xff] %v2952
        %3465 = vst [vmem:[%s264 + $0x350] sm:$0xff] %v2953
        %3466 = vst [vmem:[%s264 + $0x358] sm:$0xff] %v2954
        %3467 = vst [vmem:[%s264 + $0x360] sm:$0xff] %v2955
        %3468 = vst [vmem:[%s264 + $0x368] sm:$0xff] %v2956
        %3469 = vst [vmem:[%s264 + $0x370] sm:$0xff] %v2957
        %3470 = vst [vmem:[%s264 + $0x378] sm:$0xff] %v2958
        %3471 = vst [vmem:[%s264 + $0x380] sm:$0xff] %v2959
        %3472 = vst [vmem:[%s264 + $0x388] sm:$0xff] %v2960
        %3473 = vst [vmem:[%s264 + $0x390] sm:$0xff] %v2961
        %3474 = vst [vmem:[%s264 + $0x398] sm:$0xff] %v2962
        %3475 = vst [vmem:[%s264 + $0x3a0] sm:$0xff] %v2963
        %3476 = vst [vmem:[%s264 + $0x3a8] sm:$0xff] %v2964
        %3477 = vst [vmem:[%s264 + $0x3b0] sm:$0xff] %v2965
        %3478 = vst [vmem:[%s264 + $0x3b8] sm:$0xff] %v2966
        %3479 = vst [vmem:[%s264 + $0x3c0] sm:$0xff] %v2967
        %3480 = vst [vmem:[%s264 + $0x3c8] sm:$0xff] %v2968
        %3481 = vst [vmem:[%s264 + $0x3d0] sm:$0xff] %v2969
        %3482 = vst [vmem:[%s264 + $0x3d8] sm:$0xff] %v2970
        %3483 = vst [vmem:[%s264 + $0x3e0] sm:$0xff] %v2971
        %3484 = vst [vmem:[%s264 + $0x3e8] sm:$0xff] %v2972
        %3485 = vst [vmem:[%s264 + $0x3f0] sm:$0xff] %v2973
        %3486 = vst [vmem:[%s264 + $0x3f8] sm:$0xff] %v2974
        %3487 = vst [vmem:[%s264 + $0x400] sm:$0xff] %v2975
        %3488 = vst [vmem:[%s264 + $0x408] sm:$0xff] %v2976
        %3489 = vst [vmem:[%s264 + $0x410] sm:$0xff] %v2977
        %3490 = vst [vmem:[%s264 + $0x418] sm:$0xff] %v2978
        %3491 = vst [vmem:[%s264 + $0x420] sm:$0xff] %v2979
        %3492 = vst [vmem:[%s264 + $0x428] sm:$0xff] %v2980
        %3493 = vst [vmem:[%s264 + $0x430] sm:$0xff] %v2981
        %3494 = vst [vmem:[%s264 + $0x438] sm:$0xff] %v2982
        %3495 = vst [vmem:[%s264 + $0x440] sm:$0xff] %v2983
        %3496 = vst [vmem:[%s264 + $0x448] sm:$0xff] %v2984
        %3497 = vst [vmem:[%s264 + $0x450] sm:$0xff] %v2985
        %3498 = vst [vmem:[%s264 + $0x458] sm:$0xff] %v2986
        %3499 = vst [vmem:[%s264 + $0x460] sm:$0xff] %v2987
        %3500 = vst [vmem:[%s264 + $0x468] sm:$0xff] %v2988
        %3501 = vst [vmem:[%s264 + $0x470] sm:$0xff] %v2989
        %3502 = vst [vmem:[%s264 + $0x478] sm:$0xff] %v2990
        %3503 = vst [vmem:[%s264 + $0x480] sm:$0xff] %v2991
        %3504 = vst [vmem:[%s264 + $0x488] sm:$0xff] %v2992
        %3505 = vst [vmem:[%s264 + $0x490] sm:$0xff] %v2993
        %3506 = vst [vmem:[%s264 + $0x498] sm:$0xff] %v2994
        %3507 = vst [vmem:[%s264 + $0x4a0] sm:$0xff] %v2995
        %3508 = vst [vmem:[%s264 + $0x4a8] sm:$0xff] %v2996
        %3509 = vst [vmem:[%s264 + $0x4b0] sm:$0xff] %v2997
        %3510 = vst [vmem:[%s264 + $0x4b8] sm:$0xff] %v2998
        %3511 = vst [vmem:[%s264 + $0x4c0] sm:$0xff] %v2999
        %3512 = vst [vmem:[%s264 + $0x4c8] sm:$0xff] %v3000
        %3513 = vst [vmem:[%s264 + $0x4d0] sm:$0xff] %v3001
        %3514 = vst [vmem:[%s264 + $0x4d8] sm:$0xff] %v3002
        %3515 = vst [vmem:[%s264 + $0x4e0] sm:$0xff] %v3003
        %3516 = vst [vmem:[%s264 + $0x4e8] sm:$0xff] %v3004
        %3517 = vst [vmem:[%s264 + $0x4f0] sm:$0xff] %v3005
        %3518 = vst [vmem:[%s264 + $0x4f8] sm:$0xff] %v3006
        %3519 = vst [vmem:[%s264 + $0x500] sm:$0xff] %v3007
        %3520 = vst [vmem:[%s264 + $0x508] sm:$0xff] %v3008
        %3521 = vst [vmem:[%s264 + $0x510] sm:$0xff] %v3009
        %3522 = vst [vmem:[%s264 + $0x518] sm:$0xff] %v3010
        %3523 = vst [vmem:[%s264 + $0x520] sm:$0xff] %v3011
        %3524 = vst [vmem:[%s264 + $0x528] sm:$0xff] %v3012
        %3525 = vst [vmem:[%s264 + $0x530] sm:$0xff] %v3013
        %3526 = vst [vmem:[%s264 + $0x538] sm:$0xff] %v3014
        %3527 = vst [vmem:[%s264 + $0x540] sm:$0xff] %v3015
        %3528 = vst [vmem:[%s264 + $0x548] sm:$0xff] %v3016
        %3529 = vst [vmem:[%s264 + $0x550] sm:$0xff] %v3017
        %3530 = vst [vmem:[%s264 + $0x558] sm:$0xff] %v3018
        %3531 = vst [vmem:[%s264 + $0x560] sm:$0xff] %v3019
        %3532 = vst [vmem:[%s264 + $0x568] sm:$0xff] %v3020
        %3533 = vst [vmem:[%s264 + $0x570] sm:$0xff] %v3021
        %3534 = vst [vmem:[%s264 + $0x578] sm:$0xff] %v3022
        %3535 = vst [vmem:[%s264 + $0x580] sm:$0xff] %v3023
        %3536 = vst [vmem:[%s264 + $0x588] sm:$0xff] %v3024
        %3537 = vst [vmem:[%s264 + $0x590] sm:$0xff] %v3025
        %3538 = vst [vmem:[%s264 + $0x598] sm:$0xff] %v3026
        %3539 = vst [vmem:[%s264 + $0x5a0] sm:$0xff] %v3027
        %3540 = vst [vmem:[%s264 + $0x5a8] sm:$0xff] %v3028
        %3541 = vst [vmem:[%s264 + $0x5b0] sm:$0xff] %v3029
        %3542 = vst [vmem:[%s264 + $0x5b8] sm:$0xff] %v3030
        %3543 = vst [vmem:[%s264 + $0x5c0] sm:$0xff] %v3031
        %3544 = vst [vmem:[%s264 + $0x5c8] sm:$0xff] %v3032
        %3545 = vst [vmem:[%s264 + $0x5d0] sm:$0xff] %v3033
        %3546 = vst [vmem:[%s264 + $0x5d8] sm:$0xff] %v3034
        %3547 = vst [vmem:[%s264 + $0x5e0] sm:$0xff] %v3035
        %3548 = vst [vmem:[%s264 + $0x5e8] sm:$0xff] %v3036
        %3549 = vst [vmem:[%s264 + $0x5f0] sm:$0xff] %v3037
        %3550 = vst [vmem:[%s264 + $0x5f8] sm:$0xff] %v3038
        %3551 = vst [vmem:[%s264 + $0x600] sm:$0xff] %v3039
        %3552 = vst [vmem:[%s264 + $0x608] sm:$0xff] %v3040
        %3553 = vst [vmem:[%s264 + $0x610] sm:$0xff] %v3041
        %3554 = vst [vmem:[%s264 + $0x618] sm:$0xff] %v3042
        %3555 = vst [vmem:[%s264 + $0x620] sm:$0xff] %v3043
        %3556 = vst [vmem:[%s264 + $0x628] sm:$0xff] %v3044
        %3557 = vst [vmem:[%s264 + $0x630] sm:$0xff] %v3045
        %3558 = vst [vmem:[%s264 + $0x638] sm:$0xff] %v3046
        %3559 = vst [vmem:[%s264 + $0x640] sm:$0xff] %v3047
        %3560 = vst [vmem:[%s264 + $0x648] sm:$0xff] %v3048
        %3561 = vst [vmem:[%s264 + $0x650] sm:$0xff] %v3049
        %3562 = vst [vmem:[%s264 + $0x658] sm:$0xff] %v3050
        %3563 = vst [vmem:[%s264 + $0x660] sm:$0xff] %v3051
        %3564 = vst [vmem:[%s264 + $0x668] sm:$0xff] %v3052
        %3565 = vst [vmem:[%s264 + $0x670] sm:$0xff] %v3053
        %3566 = vst [vmem:[%s264 + $0x678] sm:$0xff] %v3054
        %3567 = vst [vmem:[%s264 + $0x680] sm:$0xff] %v3055
        %3568 = vst [vmem:[%s264 + $0x688] sm:$0xff] %v3056
        %3569 = vst [vmem:[%s264 + $0x690] sm:$0xff] %v3057
        %3570 = vst [vmem:[%s264 + $0x698] sm:$0xff] %v3058
        %3571 = vst [vmem:[%s264 + $0x6a0] sm:$0xff] %v3059
        %3572 = vst [vmem:[%s264 + $0x6a8] sm:$0xff] %v3060
        %3573 = vst [vmem:[%s264 + $0x6b0] sm:$0xff] %v3061
        %3574 = vst [vmem:[%s264 + $0x6b8] sm:$0xff] %v3062
        %3575 = vst [vmem:[%s264 + $0x6c0] sm:$0xff] %v3063
        %3576 = vst [vmem:[%s264 + $0x6c8] sm:$0xff] %v3064
        %3577 = vst [vmem:[%s264 + $0x6d0] sm:$0xff] %v3065
        %3578 = vst [vmem:[%s264 + $0x6d8] sm:$0xff] %v3066
        %3579 = vst [vmem:[%s264 + $0x6e0] sm:$0xff] %v3067
        %3580 = vst [vmem:[%s264 + $0x6e8] sm:$0xff] %v3068
        %3581 = vst [vmem:[%s264 + $0x6f0] sm:$0xff] %v3069
        %3582 = vst [vmem:[%s264 + $0x6f8] sm:$0xff] %v3070
        %3583 = vst [vmem:[%s264 + $0x700] sm:$0xff] %v3071
        %3584 = vst [vmem:[%s264 + $0x708] sm:$0xff] %v3072
        %3585 = vst [vmem:[%s264 + $0x710] sm:$0xff] %v3073
        %3586 = vst [vmem:[%s264 + $0x718] sm:$0xff] %v3074
        %3587 = vst [vmem:[%s264 + $0x720] sm:$0xff] %v3075
        %3588 = vst [vmem:[%s264 + $0x728] sm:$0xff] %v3076
        %3589 = vst [vmem:[%s264 + $0x730] sm:$0xff] %v3077
        %3590 = vst [vmem:[%s264 + $0x738] sm:$0xff] %v3078
        %3591 = vst [vmem:[%s264 + $0x740] sm:$0xff] %v3079
        %3592 = vst [vmem:[%s264 + $0x748] sm:$0xff] %v3080
        %3593 = vst [vmem:[%s264 + $0x750] sm:$0xff] %v3081
        %3594 = vst [vmem:[%s264 + $0x758] sm:$0xff] %v3082
        %3595 = vst [vmem:[%s264 + $0x760] sm:$0xff] %v3083
        %3596 = vst [vmem:[%s264 + $0x768] sm:$0xff] %v3084
        %3597 = vst [vmem:[%s264 + $0x770] sm:$0xff] %v3085
        %3598 = vst [vmem:[%s264 + $0x778] sm:$0xff] %v3086
        %3599 = vst [vmem:[%s264 + $0x780] sm:$0xff] %v3087
        %3600 = vst [vmem:[%s264 + $0x788] sm:$0xff] %v3088
        %3601 = vst [vmem:[%s264 + $0x790] sm:$0xff] %v3089
        %3602 = vst [vmem:[%s264 + $0x798] sm:$0xff] %v3090
        %3603 = vst [vmem:[%s264 + $0x7a0] sm:$0xff] %v3091
        %3604 = vst [vmem:[%s264 + $0x7a8] sm:$0xff] %v3092
        %3605 = vst [vmem:[%s264 + $0x7b0] sm:$0xff] %v3093
        %3606 = vst [vmem:[%s264 + $0x7b8] sm:$0xff] %v3094
        %3607 = vst [vmem:[%s264 + $0x7c0] sm:$0xff] %v3095
        %3608 = vst [vmem:[%s264 + $0x7c8] sm:$0xff] %v3096
        %3609 = vst [vmem:[%s264 + $0x7d0] sm:$0xff] %v3097
        %3610 = vst [vmem:[%s264 + $0x7d8] sm:$0xff] %v3098
        %3611 = vst [vmem:[%s264 + $0x7e0] sm:$0xff] %v3099
        %3612 = vst [vmem:[%s264 + $0x7e8] sm:$0xff] %v3100
        %3613 = vst [vmem:[%s264 + $0x7f0] sm:$0xff] %v3101
        %3614 = vst [vmem:[%s264 + $0x7f8] sm:$0xff] %v3102
        %3615 = vst [vmem:[%s264 + $0x800] sm:$0xff] %v3103
        %3616 = vst [vmem:[%s264 + $0x808] sm:$0xff] %v3104
        %3617 = vst [vmem:[%s264 + $0x810] sm:$0xff] %v3105
        %3618 = vst [vmem:[%s264 + $0x818] sm:$0xff] %v3106
        %3619 = vst [vmem:[%s264 + $0x820] sm:$0xff] %v3107
        %3620 = vst [vmem:[%s264 + $0x828] sm:$0xff] %v3108
        %3621 = vst [vmem:[%s264 + $0x830] sm:$0xff] %v3109
        %3622 = vst [vmem:[%s264 + $0x838] sm:$0xff] %v3110
        %3623 = vst [vmem:[%s264 + $0x840] sm:$0xff] %v3111
        %3624 = vst [vmem:[%s264 + $0x848] sm:$0xff] %v3112
        %3625 = vst [vmem:[%s264 + $0x850] sm:$0xff] %v3113
        %3626 = vst [vmem:[%s264 + $0x858] sm:$0xff] %v3114
        %3627 = vst [vmem:[%s264 + $0x860] sm:$0xff] %v3115
        %3628 = vst [vmem:[%s264 + $0x868] sm:$0xff] %v3116
        %3629 = vst [vmem:[%s264 + $0x870] sm:$0xff] %v3117
        %3630 = vst [vmem:[%s264 + $0x878] sm:$0xff] %v3118
        %3631 = vst [vmem:[%s264 + $0x880] sm:$0xff] %v3119
        %3632 = vst [vmem:[%s264 + $0x888] sm:$0xff] %v3120
        %3633 = vst [vmem:[%s264 + $0x890] sm:$0xff] %v3121
        %3634 = vst [vmem:[%s264 + $0x898] sm:$0xff] %v3122
        %3635 = vst [vmem:[%s264 + $0x8a0] sm:$0xff] %v3123
        %3636 = vst [vmem:[%s264 + $0x8a8] sm:$0xff] %v3124
        %3637 = vst [vmem:[%s264 + $0x8b0] sm:$0xff] %v3125
        %3638 = vst [vmem:[%s264 + $0x8b8] sm:$0xff] %v3126
        %3639 = vst [vmem:[%s264 + $0x8c0] sm:$0xff] %v3127
        %3640 = vst [vmem:[%s264 + $0x8c8] sm:$0xff] %v3128
        %3641 = vst [vmem:[%s264 + $0x8d0] sm:$0xff] %v3129
        %3642 = vst [vmem:[%s264 + $0x8d8] sm:$0xff] %v3130
        %3643 = vst [vmem:[%s264 + $0x8e0] sm:$0xff] %v3131
        %3644 = vst [vmem:[%s264 + $0x8e8] sm:$0xff] %v3132
        %3645 = vst [vmem:[%s264 + $0x8f0] sm:$0xff] %v3133
        %3646 = vst [vmem:[%s264 + $0x8f8] sm:$0xff] %v3134
        %3647 = vst [vmem:[%s264 + $0x900] sm:$0xff] %v3135
        %3648 = vst [vmem:[%s264 + $0x908] sm:$0xff] %v3136
        %3649 = vst [vmem:[%s264 + $0x910] sm:$0xff] %v3137
        %3650 = vst [vmem:[%s264 + $0x918] sm:$0xff] %v3138
        %3651 = vst [vmem:[%s264 + $0x920] sm:$0xff] %v3139
        %3652 = vst [vmem:[%s264 + $0x928] sm:$0xff] %v3140
        %3653 = vst [vmem:[%s264 + $0x930] sm:$0xff] %v3141
        %3654 = vst [vmem:[%s264 + $0x938] sm:$0xff] %v3142
        %3655 = vst [vmem:[%s264 + $0x940] sm:$0xff] %v3143
        %3656 = vst [vmem:[%s264 + $0x948] sm:$0xff] %v3144
        %3657 = vst [vmem:[%s264 + $0x950] sm:$0xff] %v3145
        %3658 = vst [vmem:[%s264 + $0x958] sm:$0xff] %v3146
        %3659 = vst [vmem:[%s264 + $0x960] sm:$0xff] %v3147
        %3660 = vst [vmem:[%s264 + $0x968] sm:$0xff] %v3148
        %3661 = vst [vmem:[%s264 + $0x970] sm:$0xff] %v3149
        %3662 = vst [vmem:[%s264 + $0x978] sm:$0xff] %v3150
        %3663 = vst [vmem:[%s264 + $0x980] sm:$0xff] %v3151
        %3664 = vst [vmem:[%s264 + $0x988] sm:$0xff] %v3152
        %3665 = vst [vmem:[%s264 + $0x990] sm:$0xff] %v3153
        %3666 = vst [vmem:[%s264 + $0x998] sm:$0xff] %v3154
        %3667 = vst [vmem:[%s264 + $0x9a0] sm:$0xff] %v3155
        %3668 = vst [vmem:[%s264 + $0x9a8] sm:$0xff] %v3156
        %3669 = vst [vmem:[%s264 + $0x9b0] sm:$0xff] %v3157
        %3670 = vst [vmem:[%s264 + $0x9b8] sm:$0xff] %v3158
        %3671 = vst [vmem:[%s264 + $0x9c0] sm:$0xff] %v3159
        %3672 = vst [vmem:[%s264 + $0x9c8] sm:$0xff] %v3160
        %3673 = vst [vmem:[%s264 + $0x9d0] sm:$0xff] %v3161
        %3674 = vst [vmem:[%s264 + $0x9d8] sm:$0xff] %v3162
        %3675 = vst [vmem:[%s264 + $0x9e0] sm:$0xff] %v3163
        %3676 = vst [vmem:[%s264 + $0x9e8] sm:$0xff] %v3164
        %3677 = vst [vmem:[%s264 + $0x9f0] sm:$0xff] %v3165
        %3678 = vst [vmem:[%s264 + $0x9f8] sm:$0xff] %v3166
        %3679 = vst [vmem:[%s264 + $0xa00] sm:$0xff] %v3167
        %3680 = vst [vmem:[%s264 + $0xa08] sm:$0xff] %v3168
        %3681 = vst [vmem:[%s264 + $0xa10] sm:$0xff] %v3169
        %3682 = vst [vmem:[%s264 + $0xa18] sm:$0xff] %v3170
        %3683 = vst [vmem:[%s264 + $0xa20] sm:$0xff] %v3171
        %3684 = vst [vmem:[%s264 + $0xa28] sm:$0xff] %v3172
        %3685 = vst [vmem:[%s264 + $0xa30] sm:$0xff] %v3173
        %3686 = vst [vmem:[%s264 + $0xa38] sm:$0xff] %v3174
        %3687 = vst [vmem:[%s264 + $0xa40] sm:$0xff] %v3175
        %3688 = vst [vmem:[%s264 + $0xa48] sm:$0xff] %v3176
        %3689 = vst [vmem:[%s264 + $0xa50] sm:$0xff] %v3177
        %3690 = vst [vmem:[%s264 + $0xa58] sm:$0xff] %v3178
        %3691 = vst [vmem:[%s264 + $0xa60] sm:$0xff] %v3179
        %3692 = vst [vmem:[%s264 + $0xa68] sm:$0xff] %v3180
        %3693 = vst [vmem:[%s264 + $0xa70] sm:$0xff] %v3181
        %3694 = vst [vmem:[%s264 + $0xa78] sm:$0xff] %v3182
        %3695 = vst [vmem:[%s264 + $0xa80] sm:$0xff] %v3183
        %3696 = vst [vmem:[%s264 + $0xa88] sm:$0xff] %v3184
        %3697 = vst [vmem:[%s264 + $0xa90] sm:$0xff] %v3185
        %3698 = vst [vmem:[%s264 + $0xa98] sm:$0xff] %v3186
        %3699 = vst [vmem:[%s264 + $0xaa0] sm:$0xff] %v3187
        %3700 = vst [vmem:[%s264 + $0xaa8] sm:$0xff] %v3188
        %3701 = vst [vmem:[%s264 + $0xab0] sm:$0xff] %v3189
        %3702 = vst [vmem:[%s264 + $0xab8] sm:$0xff] %v3190
        %3703 = vst [vmem:[%s264 + $0xac0] sm:$0xff] %v3191
        %3704 = vst [vmem:[%s264 + $0xac8] sm:$0xff] %v3192
        %3705 = vst [vmem:[%s264 + $0xad0] sm:$0xff] %v3193
        %3706 = vst [vmem:[%s264 + $0xad8] sm:$0xff] %v3194
        %3707 = vst [vmem:[%s264 + $0xae0] sm:$0xff] %v3195
        %3708 = vst [vmem:[%s264 + $0xae8] sm:$0xff] %v3196
        %3709 = vst [vmem:[%s264 + $0xaf0] sm:$0xff] %v3197
        %3710 = vst [vmem:[%s264 + $0xaf8] sm:$0xff] %v3198
        %3711 = vst [vmem:[%s264 + $0xb00] sm:$0xff] %v3199
        %3712 = vst [vmem:[%s264 + $0xb08] sm:$0xff] %v3200
        %3713 = vst [vmem:[%s264 + $0xb10] sm:$0xff] %v3201
        %3714 = vst [vmem:[%s264 + $0xb18] sm:$0xff] %v3202
        %3715 = vst [vmem:[%s264 + $0xb20] sm:$0xff] %v3203
        %3716 = vst [vmem:[%s264 + $0xb28] sm:$0xff] %v3204
        %3717 = vst [vmem:[%s264 + $0xb30] sm:$0xff] %v3205
        %3718 = vst [vmem:[%s264 + $0xb38] sm:$0xff] %v3206
        %3719 = vst [vmem:[%s264 + $0xb40] sm:$0xff] %v3207
        %3720 = vst [vmem:[%s264 + $0xb48] sm:$0xff] %v3208
        %3721 = vst [vmem:[%s264 + $0xb50] sm:$0xff] %v3209
        %3722 = vst [vmem:[%s264 + $0xb58] sm:$0xff] %v3210
        %3723 = vst [vmem:[%s264 + $0xb60] sm:$0xff] %v3211
        %3724 = vst [vmem:[%s264 + $0xb68] sm:$0xff] %v3212
        %3725 = vst [vmem:[%s264 + $0xb70] sm:$0xff] %v3213
        %3726 = vst [vmem:[%s264 + $0xb78] sm:$0xff] %v3214
        %3727 = vst [vmem:[%s264 + $0xb80] sm:$0xff] %v3215
        %3728 = vst [vmem:[%s264 + $0xb88] sm:$0xff] %v3216
        %3729 = vst [vmem:[%s264 + $0xb90] sm:$0xff] %v3217
        %3730 = vst [vmem:[%s264 + $0xb98] sm:$0xff] %v3218
        %3731 = vst [vmem:[%s264 + $0xba0] sm:$0xff] %v3219
        %3732 = vst [vmem:[%s264 + $0xba8] sm:$0xff] %v3220
        %3733 = vst [vmem:[%s264 + $0xbb0] sm:$0xff] %v3221
        %3734 = vst [vmem:[%s264 + $0xbb8] sm:$0xff] %v3222
        %3735 = vst [vmem:[%s264 + $0xbc0] sm:$0xff] %v3223
        %3736 = vst [vmem:[%s264 + $0xbc8] sm:$0xff] %v3224
        %3737 = vst [vmem:[%s264 + $0xbd0] sm:$0xff] %v3225
        %3738 = vst [vmem:[%s264 + $0xbd8] sm:$0xff] %v3226
        %3739 = vst [vmem:[%s264 + $0xbe0] sm:$0xff] %v3227
        %3740 = vst [vmem:[%s264 + $0xbe8] sm:$0xff] %v3228
        %3741 = vst [vmem:[%s264 + $0xbf0] sm:$0xff] %v3229
        %3742 = vst [vmem:[%s264 + $0xbf8] sm:$0xff] %v3230
        %3743 = vst [vmem:[%s264 + $0xc00] sm:$0xff] %v3231
        %3744 = vst [vmem:[%s264 + $0xc08] sm:$0xff] %v3232
        %3745 = vst [vmem:[%s264 + $0xc10] sm:$0xff] %v3233
        %3746 = vst [vmem:[%s264 + $0xc18] sm:$0xff] %v3234
        %3747 = vst [vmem:[%s264 + $0xc20] sm:$0xff] %v3235
        %3748 = vst [vmem:[%s264 + $0xc28] sm:$0xff] %v3236
        %3749 = vst [vmem:[%s264 + $0xc30] sm:$0xff] %v3237
        %3750 = vst [vmem:[%s264 + $0xc38] sm:$0xff] %v3238
        %3751 = vst [vmem:[%s264 + $0xc40] sm:$0xff] %v3239
        %3752 = vst [vmem:[%s264 + $0xc48] sm:$0xff] %v3240
        %3753 = vst [vmem:[%s264 + $0xc50] sm:$0xff] %v3241
        %3754 = vst [vmem:[%s264 + $0xc58] sm:$0xff] %v3242
        %3755 = vst [vmem:[%s264 + $0xc60] sm:$0xff] %v3243
        %3756 = vst [vmem:[%s264 + $0xc68] sm:$0xff] %v3244
        %3757 = vst [vmem:[%s264 + $0xc70] sm:$0xff] %v3245
        %3758 = vst [vmem:[%s264 + $0xc78] sm:$0xff] %v3246
        %3759 = vst [vmem:[%s264 + $0xc80] sm:$0xff] %v3247
        %3760 = vst [vmem:[%s264 + $0xc88] sm:$0xff] %v3248
        %3761 = vst [vmem:[%s264 + $0xc90] sm:$0xff] %v3249
        %3762 = vst [vmem:[%s264 + $0xc98] sm:$0xff] %v3250
        %3763 = vst [vmem:[%s264 + $0xca0] sm:$0xff] %v3251
        %3764 = vst [vmem:[%s264 + $0xca8] sm:$0xff] %v3252
        %3765 = vst [vmem:[%s264 + $0xcb0] sm:$0xff] %v3253
        %3766 = vst [vmem:[%s264 + $0xcb8] sm:$0xff] %v3254
        %3767 = vst [vmem:[%s264 + $0xcc0] sm:$0xff] %v3255
        %3768 = vst [vmem:[%s264 + $0xcc8] sm:$0xff] %v3256
        %3769 = vst [vmem:[%s264 + $0xcd0] sm:$0xff] %v3257
        %3770 = vst [vmem:[%s264 + $0xcd8] sm:$0xff] %v3258
        %3771 = vst [vmem:[%s264 + $0xce0] sm:$0xff] %v3259
        %3772 = vst [vmem:[%s264 + $0xce8] sm:$0xff] %v3260
        %3773 = vst [vmem:[%s264 + $0xcf0] sm:$0xff] %v3261
        %3774 = vst [vmem:[%s264 + $0xcf8] sm:$0xff] %v3262
        %3775 = vst [vmem:[%s264 + $0xd00] sm:$0xff] %v3263
        %3776 = vst [vmem:[%s264 + $0xd08] sm:$0xff] %v3264
        %3777 = vst [vmem:[%s264 + $0xd10] sm:$0xff] %v3265
        %3778 = vst [vmem:[%s264 + $0xd18] sm:$0xff] %v3266
        %3779 = vst [vmem:[%s264 + $0xd20] sm:$0xff] %v3267
        %3780 = vst [vmem:[%s264 + $0xd28] sm:$0xff] %v3268
        %3781 = vst [vmem:[%s264 + $0xd30] sm:$0xff] %v3269
        %3782 = vst [vmem:[%s264 + $0xd38] sm:$0xff] %v3270
        %3783 = vst [vmem:[%s264 + $0xd40] sm:$0xff] %v3271
        %3784 = vst [vmem:[%s264 + $0xd48] sm:$0xff] %v3272
        %3785 = vst [vmem:[%s264 + $0xd50] sm:$0xff] %v3273
        %3786 = vst [vmem:[%s264 + $0xd58] sm:$0xff] %v3274
        %3787 = vst [vmem:[%s264 + $0xd60] sm:$0xff] %v3275
        %3788 = vst [vmem:[%s264 + $0xd68] sm:$0xff] %v3276
        %3789 = vst [vmem:[%s264 + $0xd70] sm:$0xff] %v3277
        %3790 = vst [vmem:[%s264 + $0xd78] sm:$0xff] %v3278
        %3791 = vst [vmem:[%s264 + $0xd80] sm:$0xff] %v3279
        %3792 = vst [vmem:[%s264 + $0xd88] sm:$0xff] %v3280
        %3793 = vst [vmem:[%s264 + $0xd90] sm:$0xff] %v3281
        %3794 = vst [vmem:[%s264 + $0xd98] sm:$0xff] %v3282
        %3795 = vst [vmem:[%s264 + $0xda0] sm:$0xff] %v3283
        %3796 = vst [vmem:[%s264 + $0xda8] sm:$0xff] %v3284
        %3797 = vst [vmem:[%s264 + $0xdb0] sm:$0xff] %v3285
        %3798 = vst [vmem:[%s264 + $0xdb8] sm:$0xff] %v3286
        %3799 = vst [vmem:[%s264 + $0xdc0] sm:$0xff] %v3287
        %3800 = vst [vmem:[%s264 + $0xdc8] sm:$0xff] %v3288
        %3801 = vst [vmem:[%s264 + $0xdd0] sm:$0xff] %v3289
        %3802 = vst [vmem:[%s264 + $0xdd8] sm:$0xff] %v3290
        %3803 = vst [vmem:[%s264 + $0xde0] sm:$0xff] %v3291
        %3804 = vst [vmem:[%s264 + $0xde8] sm:$0xff] %v3292
        %3805 = vst [vmem:[%s264 + $0xdf0] sm:$0xff] %v3293
        %3806 = vst [vmem:[%s264 + $0xdf8] sm:$0xff] %v3294
        %3807 = vst [vmem:[%s264 + $0xe00] sm:$0xff] %v3295
        %3808 = vst [vmem:[%s264 + $0xe08] sm:$0xff] %v3296
        %3809 = vst [vmem:[%s264 + $0xe10] sm:$0xff] %v3297
        %3810 = vst [vmem:[%s264 + $0xe18] sm:$0xff] %v3298
        %3811 = vst [vmem:[%s264 + $0xe20] sm:$0xff] %v3299
        %3812 = vst [vmem:[%s264 + $0xe28] sm:$0xff] %v3300
        %3813 = vst [vmem:[%s264 + $0xe30] sm:$0xff] %v3301
        %3814 = vst [vmem:[%s264 + $0xe38] sm:$0xff] %v3302
        %3815 = vst [vmem:[%s264 + $0xe40] sm:$0xff] %v3303
        %3816 = vst [vmem:[%s264 + $0xe48] sm:$0xff] %v3304
        %3817 = vst [vmem:[%s264 + $0xe50] sm:$0xff] %v3305
        %3818 = vst [vmem:[%s264 + $0xe58] sm:$0xff] %v3306
        %3819 = vst [vmem:[%s264 + $0xe60] sm:$0xff] %v3307
        %3820 = vst [vmem:[%s264 + $0xe68] sm:$0xff] %v3308
        %3821 = vst [vmem:[%s264 + $0xe70] sm:$0xff] %v3309
        %3822 = vst [vmem:[%s264 + $0xe78] sm:$0xff] %v3310
        %3823 = vst [vmem:[%s264 + $0xe80] sm:$0xff] %v3311
        %3824 = vst [vmem:[%s264 + $0xe88] sm:$0xff] %v3312
        %3825 = vst [vmem:[%s264 + $0xe90] sm:$0xff] %v3313
        %3826 = vst [vmem:[%s264 + $0xe98] sm:$0xff] %v3314
        %3827 = vst [vmem:[%s264 + $0xea0] sm:$0xff] %v3315
        %3828 = vst [vmem:[%s264 + $0xea8] sm:$0xff] %v3316
        %3829 = vst [vmem:[%s264 + $0xeb0] sm:$0xff] %v3317
        %3830 = vst [vmem:[%s264 + $0xeb8] sm:$0xff] %v3318
        %3831 = vst [vmem:[%s264 + $0xec0] sm:$0xff] %v3319
        %3832 = vst [vmem:[%s264 + $0xec8] sm:$0xff] %v3320
        %3833 = vst [vmem:[%s264 + $0xed0] sm:$0xff] %v3321
        %3834 = vst [vmem:[%s264 + $0xed8] sm:$0xff] %v3322
        %3835 = vst [vmem:[%s264 + $0xee0] sm:$0xff] %v3323
        %3836 = vst [vmem:[%s264 + $0xee8] sm:$0xff] %v3324
        %3837 = vst [vmem:[%s264 + $0xef0] sm:$0xff] %v3325
        %3838 = vst [vmem:[%s264 + $0xef8] sm:$0xff] %v3326
        %3839 = vst [vmem:[%s264 + $0xf00] sm:$0xff] %v3327
        %3840 = vst [vmem:[%s264 + $0xf08] sm:$0xff] %v3328
        %3841 = vst [vmem:[%s264 + $0xf10] sm:$0xff] %v3329
        %3842 = vst [vmem:[%s264 + $0xf18] sm:$0xff] %v3330
        %3843 = vst [vmem:[%s264 + $0xf20] sm:$0xff] %v3331
        %3844 = vst [vmem:[%s264 + $0xf28] sm:$0xff] %v3332
        %3845 = vst [vmem:[%s264 + $0xf30] sm:$0xff] %v3333
        %3846 = vst [vmem:[%s264 + $0xf38] sm:$0xff] %v3334
        %3847 = vst [vmem:[%s264 + $0xf40] sm:$0xff] %v3335
        %3848 = vst [vmem:[%s264 + $0xf48] sm:$0xff] %v3336
        %3849 = vst [vmem:[%s264 + $0xf50] sm:$0xff] %v3337
        %3850 = vst [vmem:[%s264 + $0xf58] sm:$0xff] %v3338
        %3851 = vst [vmem:[%s264 + $0xf60] sm:$0xff] %v3339
        %3852 = vst [vmem:[%s264 + $0xf68] sm:$0xff] %v3340
        %3853 = vst [vmem:[%s264 + $0xf70] sm:$0xff] %v3341
        %3854 = vst [vmem:[%s264 + $0xf78] sm:$0xff] %v3342
        %3855 = vst [vmem:[%s264 + $0xf80] sm:$0xff] %v3343
        %3856 = vst [vmem:[%s264 + $0xf88] sm:$0xff] %v3344
        %3857 = vst [vmem:[%s264 + $0xf90] sm:$0xff] %v3345
        %3858 = vst [vmem:[%s264 + $0xf98] sm:$0xff] %v3346
        %3859 = vst [vmem:[%s264 + $0xfa0] sm:$0xff] %v3347
        %3860 = vst [vmem:[%s264 + $0xfa8] sm:$0xff] %v3348
        %3861 = vst [vmem:[%s264 + $0xfb0] sm:$0xff] %v3349
        %3862 = vst [vmem:[%s264 + $0xfb8] sm:$0xff] %v3350
        %3863 = vst [vmem:[%s264 + $0xfc0] sm:$0xff] %v3351
        %3864 = vst [vmem:[%s264 + $0xfc8] sm:$0xff] %v3352
        %3865 = vst [vmem:[%s264 + $0xfd0] sm:$0xff] %v3353
        %3866 = vst [vmem:[%s264 + $0xfd8] sm:$0xff] %v3354
        %3867 = vst [vmem:[%s264 + $0xfe0] sm:$0xff] %v3355
        %3868 = vst [vmem:[%s264 + $0xfe8] sm:$0xff] %v3356
        %3869 = vst [vmem:[%s264 + $0xff0] sm:$0xff] %v3357
        %3870 = vst [vmem:[%s264 + $0xff8] sm:$0xff] %v3358
        %s3871 = sand.u32 %s105, 1
        %s3872 = scalar_lea.sflag [#allocation4], %s3871
        %s3873 = sand.u32 %s105, 1
        %s3874 = smul.addr %s3873, 4096
        %s3875 = scalar_lea.vmem [#allocation9], %s3874
        // Predicated region
        $region45: #{tpu_custom_call.1} parent=31 // pred_check
          %p3876 = pneg %p115
        $region46: #{tpu_custom_call.1} parent=31 // pred_check_branch
          %3878 = sbr.rel (%p3876) target = $region48
        $region47: #{tpu_custom_call.1} parent=31 // pred_region
          %s3879 = smul.u32 64, %s24
          %s3880 = ssub.s32 80, %s3879
          %p3881 = scmp.lt.s32.totalorder %s3880, 64
          %s3882 = scalar_select %p3881, %s3880, 64
          %s3883 = smul.u32 8, %s3882
          %s3884 = smul.u32 %s3883, 8
          %s3885 = ssub.s32 4096, %s3884
          %s3886 = sshll.u32 %s3885, 4
          %3887 = vsyncadd %s3872, %s3886
          %p3888 = scmp.ne.s32.totalorder 0, %s3884
          %s3889 = smul.addr %s3879, 8
          %s3890 = smul.addr %s3889, 8
          %s3891 = scalar_lea.hbm %s3, %s3890
          %s3892 = smul.u32 64, %s3882
          %s3893 = sshll.u32 %s3875, 4
          %s3894 = int_to_ptr.vmem [resolvable:$true] %s3893
          %s3895 = sshll.u32 %s3891, 4
          %s3896 = int_to_ptr.hbm [resolvable:$true] %s3895
          %s3897 = sshll.u32 %s3892, 4
          %3901 = dma.vmem_to_hbm [thread:$0]  (%p3888), %s3894, %s3897, %s3896, %s3872, 1024, 1024, 64
        $region48: #{tpu_custom_call.1} parent=31 // pred_fallthru
          _
      $region32: #{tpu_custom_call.1} parent=5 // pred_fallthru
        _
      %p3902 = scmp.le.s32.totalorder 2, %s19
      // Predicated region
      $region49: #{tpu_custom_call.1} parent=5 // pred_check
        %p3903 = pneg %p3902
      $region50: #{tpu_custom_call.1} parent=5 // pred_check_branch
        %3905 = sbr.rel (%p3903) target = $region52
      $region51: #{tpu_custom_call.1} parent=5 // pred_region
        %s3906 = ssub.s32 %s19, 2
        // Predicated region
        $region53: #{tpu_custom_call.1} parent=51 // pred_check
          %p3907 = pneg %p121
        $region54: #{tpu_custom_call.1} parent=51 // pred_check_branch
          %3909 = sbr.rel (%p3907) target = $region56
        $region55: #{tpu_custom_call.1} parent=51 // pred_region
          %s3910 = sand.u32 %s106, 1
          %s3911 = scalar_lea.sflag [#allocation4], %s3910
          %s3912 = sand.u32 %s106, 1
          %s3913 = smul.addr %s3912, 4096
          %s3914 = scalar_lea.vmem [#allocation9], %s3913
          %3916 = dma.done %s3911, 65536
        $region56: #{tpu_custom_call.1} parent=51 // pred_fallthru
          _
      $region52: #{tpu_custom_call.1} parent=5 // pred_fallthru
        _
    $region6: #{tpu_custom_call.1} parent=1 // loop_footer
      %s23 = sadd.s32 1, %s19
    $region7: #{tpu_custom_call.1} parent=1 // loop_footer_branch
      %18 = sbr.rel target = $region3
    $region8: #{tpu_custom_call.1} parent=1 // loop_exit
      _
    %3917 = vsyncpa [#allocation3], 1
    %s3918 = scalar_lea.sflag [#allocation3], 1
    %3919 = vsyncpa %s3918, 1
    %3920 = vsyncpa [#allocation8], 1
    %s3921 = scalar_lea.sflag [#allocation8], 1
    %3922 = vsyncpa %s3921, 1
    %3923 = vsyncpa [#allocation4], 1
    %s3924 = scalar_lea.sflag [#allocation4], 1
    %3925 = vsyncpa %s3924, 1
    %3926 = vsyncpa [#allocation5], 1
    %s3927 = scalar_lea.sflag [#allocation5], 1
    %3928 = vsyncpa %s3927, 1

</llo_original>
